<compile_context>
chip_gen: v5e
topology: v5e:2x2
jax: 0.10.0
libtpu: 0.0.40
codegen_flags: <defaults>
</compile_context>

<pallas_src>
import jax
import jax.numpy as jnp
import numpy as np
from jax.experimental import pallas as pl
from jax.experimental.pallas import tpu as pltpu


def _round_up(x, m):
    return ((x + m - 1) // m) * m


def hgn_forward_pallas(user_ids, item_seq_ids, target_item_ids,
                       user_table, item_table, w2_table, b2_table,
                       wfi, bfi, wfu, bfu, inst_gate_item, inst_gate_user,
                       block_b=8):
    """Pallas implementation of _HGN.forward.

    user_ids: (B,) int32, item_seq_ids: (B, L) int32, target_item_ids: (B, T) int32
    user_table: (num_users, D); item_table / w2_table: (num_items, D); b2_table: (num_items, 1)
    wfi / wfu: (D, D) torch nn.Linear layout (out, in); bfi / bfu: (1, D)
    inst_gate_item: (D, 1); inst_gate_user: (D, L)
    returns: (B, T) float32
    """
    B, = user_ids.shape
    L = item_seq_ids.shape[1]
    T = target_item_ids.shape[1]
    D = user_table.shape[1]

    # Static sublane-slice alignment inside the kernel (pad upstream otherwise).
    assert D % 8 == 0, "dims must be a multiple of 8"
    assert L % 8 == 0, "seq_L must be a multiple of 8"

    BB = block_b                      # users processed per grid step
    Bp = _round_up(max(B, 1), BB)     # padded batch
    TP = _round_up(T, 8)              # targets padded to a sublane multiple
    TLANE = _round_up(TP, 128)        # lane-dense output width

    user_ids = user_ids.astype(jnp.int32)
    item_seq_ids = item_seq_ids.astype(jnp.int32)
    target_item_ids = target_item_ids.astype(jnp.int32)

    # Pad id tensors to the blocked batch / target sizes (pad ids = 0, results sliced off).
    uid_p = jnp.zeros((Bp,), jnp.int32).at[:B].set(user_ids)
    iseq_p = jnp.zeros((Bp, L), jnp.int32).at[:B, :].set(item_seq_ids)
    tids_p = jnp.zeros((Bp, TP), jnp.int32).at[:B, :T].set(target_item_ids)

    # ---- parameter preprocessing (pure layout plumbing, hoistable) ----
    # torch Linear computes x @ W.T + b: pre-transpose so the kernel runs a single
    # plain "NN" matmul, fold the two biases.  Rows [0:2D] = [Wfi^T ; Wfu^T],
    # row [2D] = bfi + bfu.
    gate_w = jnp.concatenate(
        [wfi.T, wfu.T, (bfi + bfu).reshape(1, D)], axis=0).astype(jnp.float32)   # (2D+1, D)
    # Instance gates transposed so D is the lane dim; igu rows first so both
    # static sublane slices in the kernel stay 8-aligned.
    inst_w = jnp.concatenate(
        [inst_gate_user.T, inst_gate_item.T], axis=0).astype(jnp.float32)        # (L+1, D)

    def kernel(uid_ref, iseq_ref, tids_ref,             # SMEM scalar-prefetched ids
               user_tbl_ref, item_tbl_ref, w2_tbl_ref,  # VMEM-resident tables
               gate_w_ref, inst_w_ref,                  # VMEM constants
               out_ref,                                 # (BB, TLANE) output block
               u_buf, items_buf, w2_buf):               # VMEM scratch
        g = pl.program_id(0)

        # ---- fused gathers: one dynamic-slice row copy per id, all inside VMEM ----
        for j in range(BB):
            b = g * BB + j
            u_buf[pl.ds(j, 1), :] = user_tbl_ref[pl.ds(uid_ref[b], 1), :]
            for l in range(L):
                items_buf[pl.ds(j * L + l, 1), :] = \
                    item_tbl_ref[pl.ds(iseq_ref[b, l], 1), :]
            for t in range(TP):
                w2_buf[pl.ds(j * TP + t, 1), :] = \
                    w2_tbl_ref[pl.ds(tids_ref[b, t], 1), :]

        items = items_buf[...]                                     # (BB*L, D)
        u = u_buf[...]                                             # (BB, D)
        u_rep = jnp.broadcast_to(u[:, None, :], (BB, L, D)).reshape(BB * L, D)

        # ---- feature gating: ONE fused MXU matmul for the whole user block ----
        x = jnp.concatenate([items, u_rep], axis=-1)               # (BB*L, 2D)
        w_cat = gate_w_ref[0:2 * D, :]                             # (2D, D)
        bias = gate_w_ref[2 * D:2 * D + 1, :]                      # (1, D) = bfi+bfu
        gate = jax.nn.sigmoid(
            jnp.dot(x, w_cat, preferred_element_type=jnp.float32) + bias)
        gated = items * gate                                       # (BB*L, D)

        # ---- instance gating (flat layout, VPU mul + lane reduce) ----
        igu_t = inst_w_ref[0:L, :]                                 # (L, D)
        igi = inst_w_ref[L:L + 1, :]                               # (1, D)
        igu_rep = jnp.broadcast_to(igu_t[None, :, :], (BB, L, D)).reshape(BB * L, D)
        t1 = jnp.sum(gated * igi, axis=-1, keepdims=True)          # (BB*L, 1)
        t2 = jnp.sum(u_rep * igu_rep, axis=-1, keepdims=True)      # (BB*L, 1)
        score = jax.nn.sigmoid(t1 + t2)                            # (BB*L, 1)

        gs = gated * score                                         # (BB*L, D)

        # ---- per-user reductions + distributive combine:
        #      q[b] = u[b] + union[b] + sum_l items[b, l]
        q_rows = []
        for j in range(BB):
            sl = slice(j * L, (j + 1) * L)                         # 8-aligned static slice
            num_j = jnp.sum(gs[sl, :], axis=0, keepdims=True)      # (1, D)
            den_j = jnp.sum(score[sl, :], axis=0, keepdims=True)   # (1, 1)
            isum_j = jnp.sum(items[sl, :], axis=0, keepdims=True)  # (1, D)
            q_rows.append(u[j:j + 1, :] + num_j / den_j + isum_j)
        q = jnp.concatenate(q_rows, axis=0)                        # (BB, D)

        # ---- scoring: broadcast-multiply + lane reduce (VPU/XLU; the per-user
        #      (1,D)x(D,T) MXU op would run at <1% occupancy) ----
        w2 = w2_buf[...].reshape(BB, TP, D)                        # (BB, TP, D)
        res = jnp.sum(jnp.broadcast_to(q[:, None, :], (BB, TP, D)) * w2,
                      axis=-1)                                     # (BB, TP)

        # lane-dense store: pad to TLANE lanes so the output vst is unmasked.
        if TLANE > TP:
            res = jnp.concatenate(
                [res, jnp.zeros((BB, TLANE - TP), jnp.float32)], axis=-1)
        out_ref[...] = res

    grid = (Bp // BB,)
    grid_spec = pltpu.PrefetchScalarGridSpec(
        num_scalar_prefetch=3,
        grid=grid,
        in_specs=[
            # Tables ride as full-array VMEM blocks with a constant block index:
            # DMA'd from HBM once and reused by every grid step.
            pl.BlockSpec(user_table.shape, lambda g, u, i, t: (0, 0)),
            pl.BlockSpec(item_table.shape, lambda g, u, i, t: (0, 0)),
            pl.BlockSpec(w2_table.shape, lambda g, u, i, t: (0, 0)),
            pl.BlockSpec(gate_w.shape, lambda g, u, i, t: (0, 0)),
            pl.BlockSpec(inst_w.shape, lambda g, u, i, t: (0, 0)),
        ],
        out_specs=pl.BlockSpec((BB, TLANE), lambda g, u, i, t: (g, 0)),
        scratch_shapes=[
            pltpu.VMEM((BB, D), jnp.float32),        # gathered user rows
            pltpu.VMEM((BB * L, D), jnp.float32),    # gathered item rows
            pltpu.VMEM((BB * TP, D), jnp.float32),   # gathered W2 rows
        ],
    )

    out = pl.pallas_call(
        kernel,
        out_shape=jax.ShapeDtypeStruct((Bp, TLANE), jnp.float32),
        grid_spec=grid_spec,
        compiler_params=pltpu.CompilerParams(
            dimension_semantics=("parallel",)),
    )(uid_p, iseq_p, tids_p,
      user_table.astype(jnp.float32), item_table.astype(jnp.float32),
      w2_table.astype(jnp.float32), gate_w, inst_w)

    res = out[:B, :T]
    # b2 is one scalar per target item: a single vectorized (B, T) add in the wrapper
    # (removes a masked 6-lane input block from the kernel pipeline).
    b2 = b2_table[target_item_ids, 0].astype(jnp.float32)          # (B, T)
    return res + b2


if __name__ == "__main__":
    # Model hyperparameters (small, consistent with _HGN.__init__)
    num_users, num_items = 50, 100
    D, L, B, T = 32, 8, 2, 6      # dims, seq_L, batch, number of target items

    key = jax.random.PRNGKey(0)
    ks = jax.random.split(key, 10)

    def he_uniform(k, shape):
        bound = np.sqrt(6.0 / shape[1])
        return jax.random.uniform(k, shape, jnp.float32, -bound, bound)

    def xavier_uniform(k, shape):
        bound = np.sqrt(6.0 / (shape[0] + shape[1]))
        return jax.random.uniform(k, shape, jnp.float32, -bound, bound)

    # Deterministic parameter init (mirrors reset_parameters, item_pad_idx=None)
    user_table = 0.01 * jax.random.normal(ks[0], (num_users, D), jnp.float32)
    item_table = 0.01 * jax.random.normal(ks[1], (num_items, D), jnp.float32)
    w2_table = 0.01 * jax.random.normal(ks[2], (num_items, D), jnp.float32)
    b2_table = jnp.zeros((num_items, 1), jnp.float32)

    wfi = he_uniform(ks[3], (D, D))            # feature_gate_item.weight
    wfu = he_uniform(ks[4], (D, D))            # feature_gate_user.weight
    bfi = jnp.zeros((1, D), jnp.float32)
    bfu = jnp.zeros((1, D), jnp.float32)
    inst_gate_item = xavier_uniform(ks[5], (D, 1))
    inst_gate_user = xavier_uniform(ks[6], (D, L))

    # Inputs (forward(user_ids, item_seq_ids, target_item_ids))
    user_ids = jax.random.randint(ks[7], (B,), 0, num_users)
    item_seq_ids = jax.random.randint(ks[8], (B, L), 0, num_items)
    target_item_ids = jax.random.randint(ks[9], (B, T), 0, num_items)

    out = hgn_forward_pallas(user_ids, item_seq_ids, target_item_ids,
                             user_table, item_table, w2_table, b2_table,
                             wfi, bfi, wfu, bfu, inst_gate_item, inst_gate_user)
    out = jax.block_until_ready(out)

    # Pure-JAX reference (mirrors the torch forward exactly)
    item_embs = item_table[item_seq_ids]        # (B, L, D)
    user_emb = user_table[user_ids]             # (B, D)
    w2 = w2_table[target_item_ids]              # (B, T, D)
    b2 = b2_table[target_item_ids][..., 0]      # (B, T)
    fi = item_embs @ wfi.T + bfi[0]
    fu = user_emb @ wfu.T + bfu[0]
    gate = jax.nn.sigmoid(fi + fu[:, None, :])
    gated = item_embs * gate
    t1 = jnp.squeeze(gated @ inst_gate_item, -1)        # (B, L)
    t2 = user_emb @ inst_gate_user                      # (B, L)
    sc = jax.nn.sigmoid(t1 + t2)
    union = jnp.sum(gated * sc[:, :, None], axis=1)
    union = union / jnp.sum(sc, axis=1, keepdims=True)
    ref = b2 + jnp.einsum("btd,bd->bt", w2, user_emb)   # baddbmm + squeeze
    ref = ref + jnp.einsum("bd,btd->bt", union, w2)     # bmm(union, w2^T)
    ref = ref + jnp.einsum("bld,btd->bt", item_embs, w2)  # rel_score summed over L
    ref = jax.block_until_ready(ref)

    assert out.shape == (B, T)
    np.testing.assert_allclose(np.asarray(out), np.asarray(ref),
                               rtol=1e-2, atol=2e-4)
    print("KERNEL_OK")
</pallas_src>

<mosaic_0001>
module attributes {stable_mosaic.version = 11 : i64} {
  func.func @kernel(%arg0: i32, %arg1: memref<8xi32, #tpu.memory_space<smem>>, %arg2: memref<8x8xi32, #tpu.memory_space<smem>>, %arg3: memref<8x8xi32, #tpu.memory_space<smem>>, %arg4: memref<50x32xf32, #tpu.memory_space<vmem>>, %arg5: memref<100x32xf32, #tpu.memory_space<vmem>>, %arg6: memref<100x32xf32, #tpu.memory_space<vmem>>, %arg7: memref<65x32xf32, #tpu.memory_space<vmem>>, %arg8: memref<9x32xf32, #tpu.memory_space<vmem>>, %arg9: memref<8x128xf32, #tpu.memory_space<vmem>>, %arg10: memref<8x32xf32, #tpu.memory_space<vmem>>, %arg11: memref<64x32xf32, #tpu.memory_space<vmem>>, %arg12: memref<64x32xf32, #tpu.memory_space<vmem>>) attributes {dimension_semantics = [#tpu.dimension_semantics<parallel>], iteration_bounds = array<i64: 1>, scalar_prefetch = 3 : i64, scratch_operands = 3 : i64, tpu.core_type = #tpu.core_type<tc>, window_params = [{pipeline_mode = #tpu.pipeline_mode<synchronous>, transform_indices = @transform_0, window_bounds = array<i64: 50, 32>}, {pipeline_mode = #tpu.pipeline_mode<synchronous>, transform_indices = @transform_1, window_bounds = array<i64: 100, 32>}, {pipeline_mode = #tpu.pipeline_mode<synchronous>, transform_indices = @transform_2, window_bounds = array<i64: 100, 32>}, {pipeline_mode = #tpu.pipeline_mode<synchronous>, transform_indices = @transform_3, window_bounds = array<i64: 65, 32>}, {pipeline_mode = #tpu.pipeline_mode<synchronous>, transform_indices = @transform_4, window_bounds = array<i64: 9, 32>}, {transform_indices = @transform_5, window_bounds = array<i64: 8, 128>}]} {
    %c8_i32 = arith.constant 8 : i32
    %0 = arith.muli %arg0, %c8_i32 : i32
    %c0_i32 = arith.constant 0 : i32
    %1 = arith.addi %0, %c0_i32 : i32
    %2 = arith.index_cast %1 : i32 to index
    %3 = memref.load %arg1[%2] : memref<8xi32, #tpu.memory_space<smem>>
    %4 = arith.index_cast %3 : i32 to index
    %c0 = arith.constant 0 : index
    %5 = vector.load %arg4[%4, %c0] : memref<50x32xf32, #tpu.memory_space<vmem>>, vector<1x32xf32>
    %c0_0 = arith.constant 0 : index
    %c0_1 = arith.constant 0 : index
    %6 = vector.load %arg10[%c0_0, %c0_1] : memref<8x32xf32, #tpu.memory_space<vmem>>, vector<1x32xf32>
    tpu.vector_store %arg10[%c0_0, %c0_1], %5 {strides = array<i32>} : memref<8x32xf32, #tpu.memory_space<vmem>>, vector<1x32xf32>,
    %7 = arith.index_cast %1 : i32 to index
    %c0_2 = arith.constant 0 : index
    %8 = memref.load %arg2[%7, %c0_2] : memref<8x8xi32, #tpu.memory_space<smem>>
    %9 = arith.index_cast %8 : i32 to index
    %c0_3 = arith.constant 0 : index
    %10 = vector.load %arg5[%9, %c0_3] : memref<100x32xf32, #tpu.memory_space<vmem>>, vector<1x32xf32>
    %c0_4 = arith.constant 0 : index
    %c0_5 = arith.constant 0 : index
    %11 = vector.load %arg11[%c0_4, %c0_5] : memref<64x32xf32, #tpu.memory_space<vmem>>, vector<1x32xf32>
    tpu.vector_store %arg11[%c0_4, %c0_5], %10 {strides = array<i32>} : memref<64x32xf32, #tpu.memory_space<vmem>>, vector<1x32xf32>,
    %12 = arith.index_cast %1 : i32 to index
    %c1 = arith.constant 1 : index
    %13 = memref.load %arg2[%12, %c1] : memref<8x8xi32, #tpu.memory_space<smem>>
    %14 = arith.index_cast %13 : i32 to index
    %c0_6 = arith.constant 0 : index
    %15 = vector.load %arg5[%14, %c0_6] : memref<100x32xf32, #tpu.memory_space<vmem>>, vector<1x32xf32>
    %c1_7 = arith.constant 1 : index
    %c0_8 = arith.constant 0 : index
    %16 = vector.load %arg11[%c1_7, %c0_8] : memref<64x32xf32, #tpu.memory_space<vmem>>, vector<1x32xf32>
    tpu.vector_store %arg11[%c1_7, %c0_8], %15 {strides = array<i32>} : memref<64x32xf32, #tpu.memory_space<vmem>>, vector<1x32xf32>,
    %17 = arith.index_cast %1 : i32 to index
    %c2 = arith.constant 2 : index
    %18 = memref.load %arg2[%17, %c2] : memref<8x8xi32, #tpu.memory_space<smem>>
    %19 = arith.index_cast %18 : i32 to index
    %c0_9 = arith.constant 0 : index
    %20 = vector.load %arg5[%19, %c0_9] : memref<100x32xf32, #tpu.memory_space<vmem>>, vector<1x32xf32>
    %c2_10 = arith.constant 2 : index
    %c0_11 = arith.constant 0 : index
    %21 = vector.load %arg11[%c2_10, %c0_11] : memref<64x32xf32, #tpu.memory_space<vmem>>, vector<1x32xf32>
    tpu.vector_store %arg11[%c2_10, %c0_11], %20 {strides = array<i32>} : memref<64x32xf32, #tpu.memory_space<vmem>>, vector<1x32xf32>,
    %22 = arith.index_cast %1 : i32 to index
    %c3 = arith.constant 3 : index
    %23 = memref.load %arg2[%22, %c3] : memref<8x8xi32, #tpu.memory_space<smem>>
    %24 = arith.index_cast %23 : i32 to index
    %c0_12 = arith.constant 0 : index
    %25 = vector.load %arg5[%24, %c0_12] : memref<100x32xf32, #tpu.memory_space<vmem>>, vector<1x32xf32>
    %c3_13 = arith.constant 3 : index
    %c0_14 = arith.constant 0 : index
    %26 = vector.load %arg11[%c3_13, %c0_14] : memref<64x32xf32, #tpu.memory_space<vmem>>, vector<1x32xf32>
    tpu.vector_store %arg11[%c3_13, %c0_14], %25 {strides = array<i32>} : memref<64x32xf32, #tpu.memory_space<vmem>>, vector<1x32xf32>,
    %27 = arith.index_cast %1 : i32 to index
    %c4 = arith.constant 4 : index
    %28 = memref.load %arg2[%27, %c4] : memref<8x8xi32, #tpu.memory_space<smem>>
    %29 = arith.index_cast %28 : i32 to index
    %c0_15 = arith.constant 0 : index
    %30 = vector.load %arg5[%29, %c0_15] : memref<100x32xf32, #tpu.memory_space<vmem>>, vector<1x32xf32>
    %c4_16 = arith.constant 4 : index
    %c0_17 = arith.constant 0 : index
    %31 = vector.load %arg11[%c4_16, %c0_17] : memref<64x32xf32, #tpu.memory_space<vmem>>, vector<1x32xf32>
    tpu.vector_store %arg11[%c4_16, %c0_17], %30 {strides = array<i32>} : memref<64x32xf32, #tpu.memory_space<vmem>>, vector<1x32xf32>,
    %32 = arith.index_cast %1 : i32 to index
    %c5 = arith.constant 5 : index
    %33 = memref.load %arg2[%32, %c5] : memref<8x8xi32, #tpu.memory_space<smem>>
    %34 = arith.index_cast %33 : i32 to index
    %c0_18 = arith.constant 0 : index
    %35 = vector.load %arg5[%34, %c0_18] : memref<100x32xf32, #tpu.memory_space<vmem>>, vector<1x32xf32>
    %c5_19 = arith.constant 5 : index
    %c0_20 = arith.constant 0 : index
    %36 = vector.load %arg11[%c5_19, %c0_20] : memref<64x32xf32, #tpu.memory_space<vmem>>, vector<1x32xf32>
    tpu.vector_store %arg11[%c5_19, %c0_20], %35 {strides = array<i32>} : memref<64x32xf32, #tpu.memory_space<vmem>>, vector<1x32xf32>,
    %37 = arith.index_cast %1 : i32 to index
    %c6 = arith.constant 6 : index
    %38 = memref.load %arg2[%37, %c6] : memref<8x8xi32, #tpu.memory_space<smem>>
    %39 = arith.index_cast %38 : i32 to index
    %c0_21 = arith.constant 0 : index
    %40 = vector.load %arg5[%39, %c0_21] : memref<100x32xf32, #tpu.memory_space<vmem>>, vector<1x32xf32>
    %c6_22 = arith.constant 6 : index
    %c0_23 = arith.constant 0 : index
    %41 = vector.load %arg11[%c6_22, %c0_23] : memref<64x32xf32, #tpu.memory_space<vmem>>, vector<1x32xf32>
    tpu.vector_store %arg11[%c6_22, %c0_23], %40 {strides = array<i32>} : memref<64x32xf32, #tpu.memory_space<vmem>>, vector<1x32xf32>,
    %42 = arith.index_cast %1 : i32 to index
    %c7 = arith.constant 7 : index
    %43 = memref.load %arg2[%42, %c7] : memref<8x8xi32, #tpu.memory_space<smem>>
    %44 = arith.index_cast %43 : i32 to index
    %c0_24 = arith.constant 0 : index
    %45 = vector.load %arg5[%44, %c0_24] : memref<100x32xf32, #tpu.memory_space<vmem>>, vector<1x32xf32>
    %c7_25 = arith.constant 7 : index
    %c0_26 = arith.constant 0 : index
    %46 = vector.load %arg11[%c7_25, %c0_26] : memref<64x32xf32, #tpu.memory_space<vmem>>, vector<1x32xf32>
    tpu.vector_store %arg11[%c7_25, %c0_26], %45 {strides = array<i32>} : memref<64x32xf32, #tpu.memory_space<vmem>>, vector<1x32xf32>,
    %47 = arith.index_cast %1 : i32 to index
    %c0_27 = arith.constant 0 : index
    %48 = memref.load %arg3[%47, %c0_27] : memref<8x8xi32, #tpu.memory_space<smem>>
    %49 = arith.index_cast %48 : i32 to index
    %c0_28 = arith.constant 0 : index
    %50 = vector.load %arg6[%49, %c0_28] : memref<100x32xf32, #tpu.memory_space<vmem>>, vector<1x32xf32>
    %c0_29 = arith.constant 0 : index
    %c0_30 = arith.constant 0 : index
    %51 = vector.load %arg12[%c0_29, %c0_30] : memref<64x32xf32, #tpu.memory_space<vmem>>, vector<1x32xf32>
    tpu.vector_store %arg12[%c0_29, %c0_30], %50 {strides = array<i32>} : memref<64x32xf32, #tpu.memory_space<vmem>>, vector<1x32xf32>,
    %52 = arith.index_cast %1 : i32 to index
    %c1_31 = arith.constant 1 : index
    %53 = memref.load %arg3[%52, %c1_31] : memref<8x8xi32, #tpu.memory_space<smem>>
    %54 = arith.index_cast %53 : i32 to index
    %c0_32 = arith.constant 0 : index
    %55 = vector.load %arg6[%54, %c0_32] : memref<100x32xf32, #tpu.memory_space<vmem>>, vector<1x32xf32>
    %c1_33 = arith.constant 1 : index
    %c0_34 = arith.constant 0 : index
    %56 = vector.load %arg12[%c1_33, %c0_34] : memref<64x32xf32, #tpu.memory_space<vmem>>, vector<1x32xf32>
    tpu.vector_store %arg12[%c1_33, %c0_34], %55 {strides = array<i32>} : memref<64x32xf32, #tpu.memory_space<vmem>>, vector<1x32xf32>,
    %57 = arith.index_cast %1 : i32 to index
    %c2_35 = arith.constant 2 : index
    %58 = memref.load %arg3[%57, %c2_35] : memref<8x8xi32, #tpu.memory_space<smem>>
    %59 = arith.index_cast %58 : i32 to index
    %c0_36 = arith.constant 0 : index
    %60 = vector.load %arg6[%59, %c0_36] : memref<100x32xf32, #tpu.memory_space<vmem>>, vector<1x32xf32>
    %c2_37 = arith.constant 2 : index
    %c0_38 = arith.constant 0 : index
    %61 = vector.load %arg12[%c2_37, %c0_38] : memref<64x32xf32, #tpu.memory_space<vmem>>, vector<1x32xf32>
    tpu.vector_store %arg12[%c2_37, %c0_38], %60 {strides = array<i32>} : memref<64x32xf32, #tpu.memory_space<vmem>>, vector<1x32xf32>,
    %62 = arith.index_cast %1 : i32 to index
    %c3_39 = arith.constant 3 : index
    %63 = memref.load %arg3[%62, %c3_39] : memref<8x8xi32, #tpu.memory_space<smem>>
    %64 = arith.index_cast %63 : i32 to index
    %c0_40 = arith.constant 0 : index
    %65 = vector.load %arg6[%64, %c0_40] : memref<100x32xf32, #tpu.memory_space<vmem>>, vector<1x32xf32>
    %c3_41 = arith.constant 3 : index
    %c0_42 = arith.constant 0 : index
    %66 = vector.load %arg12[%c3_41, %c0_42] : memref<64x32xf32, #tpu.memory_space<vmem>>, vector<1x32xf32>
    tpu.vector_store %arg12[%c3_41, %c0_42], %65 {strides = array<i32>} : memref<64x32xf32, #tpu.memory_space<vmem>>, vector<1x32xf32>,
    %67 = arith.index_cast %1 : i32 to index
    %c4_43 = arith.constant 4 : index
    %68 = memref.load %arg3[%67, %c4_43] : memref<8x8xi32, #tpu.memory_space<smem>>
    %69 = arith.index_cast %68 : i32 to index
    %c0_44 = arith.constant 0 : index
    %70 = vector.load %arg6[%69, %c0_44] : memref<100x32xf32, #tpu.memory_space<vmem>>, vector<1x32xf32>
    %c4_45 = arith.constant 4 : index
    %c0_46 = arith.constant 0 : index
    %71 = vector.load %arg12[%c4_45, %c0_46] : memref<64x32xf32, #tpu.memory_space<vmem>>, vector<1x32xf32>
    tpu.vector_store %arg12[%c4_45, %c0_46], %70 {strides = array<i32>} : memref<64x32xf32, #tpu.memory_space<vmem>>, vector<1x32xf32>,
    %72 = arith.index_cast %1 : i32 to index
    %c5_47 = arith.constant 5 : index
    %73 = memref.load %arg3[%72, %c5_47] : memref<8x8xi32, #tpu.memory_space<smem>>
    %74 = arith.index_cast %73 : i32 to index
    %c0_48 = arith.constant 0 : index
    %75 = vector.load %arg6[%74, %c0_48] : memref<100x32xf32, #tpu.memory_space<vmem>>, vector<1x32xf32>
    %c5_49 = arith.constant 5 : index
    %c0_50 = arith.constant 0 : index
    %76 = vector.load %arg12[%c5_49, %c0_50] : memref<64x32xf32, #tpu.memory_space<vmem>>, vector<1x32xf32>
    tpu.vector_store %arg12[%c5_49, %c0_50], %75 {strides = array<i32>} : memref<64x32xf32, #tpu.memory_space<vmem>>, vector<1x32xf32>,
    %77 = arith.index_cast %1 : i32 to index
    %c6_51 = arith.constant 6 : index
    %78 = memref.load %arg3[%77, %c6_51] : memref<8x8xi32, #tpu.memory_space<smem>>
    %79 = arith.index_cast %78 : i32 to index
    %c0_52 = arith.constant 0 : index
    %80 = vector.load %arg6[%79, %c0_52] : memref<100x32xf32, #tpu.memory_space<vmem>>, vector<1x32xf32>
    %c6_53 = arith.constant 6 : index
    %c0_54 = arith.constant 0 : index
    %81 = vector.load %arg12[%c6_53, %c0_54] : memref<64x32xf32, #tpu.memory_space<vmem>>, vector<1x32xf32>
    tpu.vector_store %arg12[%c6_53, %c0_54], %80 {strides = array<i32>} : memref<64x32xf32, #tpu.memory_space<vmem>>, vector<1x32xf32>,
    %82 = arith.index_cast %1 : i32 to index
    %c7_55 = arith.constant 7 : index
    %83 = memref.load %arg3[%82, %c7_55] : memref<8x8xi32, #tpu.memory_space<smem>>
    %84 = arith.index_cast %83 : i32 to index
    %c0_56 = arith.constant 0 : index
    %85 = vector.load %arg6[%84, %c0_56] : memref<100x32xf32, #tpu.memory_space<vmem>>, vector<1x32xf32>
    %c7_57 = arith.constant 7 : index
    %c0_58 = arith.constant 0 : index
    %86 = vector.load %arg12[%c7_57, %c0_58] : memref<64x32xf32, #tpu.memory_space<vmem>>, vector<1x32xf32>
    tpu.vector_store %arg12[%c7_57, %c0_58], %85 {strides = array<i32>} : memref<64x32xf32, #tpu.memory_space<vmem>>, vector<1x32xf32>,
    %c8_i32_59 = arith.constant 8 : i32
    %87 = arith.muli %arg0, %c8_i32_59 : i32
    %c1_i32 = arith.constant 1 : i32
    %88 = arith.addi %87, %c1_i32 : i32
    %89 = arith.index_cast %88 : i32 to index
    %90 = memref.load %arg1[%89] : memref<8xi32, #tpu.memory_space<smem>>
    %91 = arith.index_cast %90 : i32 to index
    %c0_60 = arith.constant 0 : index
    %92 = vector.load %arg4[%91, %c0_60] : memref<50x32xf32, #tpu.memory_space<vmem>>, vector<1x32xf32>
    %c1_61 = arith.constant 1 : index
    %c0_62 = arith.constant 0 : index
    %93 = vector.load %arg10[%c1_61, %c0_62] : memref<8x32xf32, #tpu.memory_space<vmem>>, vector<1x32xf32>
    tpu.vector_store %arg10[%c1_61, %c0_62], %92 {strides = array<i32>} : memref<8x32xf32, #tpu.memory_space<vmem>>, vector<1x32xf32>,
    %94 = arith.index_cast %88 : i32 to index
    %c0_63 = arith.constant 0 : index
    %95 = memref.load %arg2[%94, %c0_63] : memref<8x8xi32, #tpu.memory_space<smem>>
    %96 = arith.index_cast %95 : i32 to index
    %c0_64 = arith.constant 0 : index
    %97 = vector.load %arg5[%96, %c0_64] : memref<100x32xf32, #tpu.memory_space<vmem>>, vector<1x32xf32>
    %c8 = arith.constant 8 : index
    %c0_65 = arith.constant 0 : index
    %98 = vector.load %arg11[%c8, %c0_65] : memref<64x32xf32, #tpu.memory_space<vmem>>, vector<1x32xf32>
    tpu.vector_store %arg11[%c8, %c0_65], %97 {strides = array<i32>} : memref<64x32xf32, #tpu.memory_space<vmem>>, vector<1x32xf32>,
    %99 = arith.index_cast %88 : i32 to index
    %c1_66 = arith.constant 1 : index
    %100 = memref.load %arg2[%99, %c1_66] : memref<8x8xi32, #tpu.memory_space<smem>>
    %101 = arith.index_cast %100 : i32 to index
    %c0_67 = arith.constant 0 : index
    %102 = vector.load %arg5[%101, %c0_67] : memref<100x32xf32, #tpu.memory_space<vmem>>, vector<1x32xf32>
    %c9 = arith.constant 9 : index
    %c0_68 = arith.constant 0 : index
    %103 = vector.load %arg11[%c9, %c0_68] : memref<64x32xf32, #tpu.memory_space<vmem>>, vector<1x32xf32>
    tpu.vector_store %arg11[%c9, %c0_68], %102 {strides = array<i32>} : memref<64x32xf32, #tpu.memory_space<vmem>>, vector<1x32xf32>,
    %104 = arith.index_cast %88 : i32 to index
    %c2_69 = arith.constant 2 : index
    %105 = memref.load %arg2[%104, %c2_69] : memref<8x8xi32, #tpu.memory_space<smem>>
    %106 = arith.index_cast %105 : i32 to index
    %c0_70 = arith.constant 0 : index
    %107 = vector.load %arg5[%106, %c0_70] : memref<100x32xf32, #tpu.memory_space<vmem>>, vector<1x32xf32>
    %c10 = arith.constant 10 : index
    %c0_71 = arith.constant 0 : index
    %108 = vector.load %arg11[%c10, %c0_71] : memref<64x32xf32, #tpu.memory_space<vmem>>, vector<1x32xf32>
    tpu.vector_store %arg11[%c10, %c0_71], %107 {strides = array<i32>} : memref<64x32xf32, #tpu.memory_space<vmem>>, vector<1x32xf32>,
    %109 = arith.index_cast %88 : i32 to index
    %c3_72 = arith.constant 3 : index
    %110 = memref.load %arg2[%109, %c3_72] : memref<8x8xi32, #tpu.memory_space<smem>>
    %111 = arith.index_cast %110 : i32 to index
    %c0_73 = arith.constant 0 : index
    %112 = vector.load %arg5[%111, %c0_73] : memref<100x32xf32, #tpu.memory_space<vmem>>, vector<1x32xf32>
    %c11 = arith.constant 11 : index
    %c0_74 = arith.constant 0 : index
    %113 = vector.load %arg11[%c11, %c0_74] : memref<64x32xf32, #tpu.memory_space<vmem>>, vector<1x32xf32>
    tpu.vector_store %arg11[%c11, %c0_74], %112 {strides = array<i32>} : memref<64x32xf32, #tpu.memory_space<vmem>>, vector<1x32xf32>,
    %114 = arith.index_cast %88 : i32 to index
    %c4_75 = arith.constant 4 : index
    %115 = memref.load %arg2[%114, %c4_75] : memref<8x8xi32, #tpu.memory_space<smem>>
    %116 = arith.index_cast %115 : i32 to index
    %c0_76 = arith.constant 0 : index
    %117 = vector.load %arg5[%116, %c0_76] : memref<100x32xf32, #tpu.memory_space<vmem>>, vector<1x32xf32>
    %c12 = arith.constant 12 : index
    %c0_77 = arith.constant 0 : index
    %118 = vector.load %arg11[%c12, %c0_77] : memref<64x32xf32, #tpu.memory_space<vmem>>, vector<1x32xf32>
    tpu.vector_store %arg11[%c12, %c0_77], %117 {strides = array<i32>} : memref<64x32xf32, #tpu.memory_space<vmem>>, vector<1x32xf32>,
    %119 = arith.index_cast %88 : i32 to index
    %c5_78 = arith.constant 5 : index
    %120 = memref.load %arg2[%119, %c5_78] : memref<8x8xi32, #tpu.memory_space<smem>>
    %121 = arith.index_cast %120 : i32 to index
    %c0_79 = arith.constant 0 : index
    %122 = vector.load %arg5[%121, %c0_79] : memref<100x32xf32, #tpu.memory_space<vmem>>, vector<1x32xf32>
    %c13 = arith.constant 13 : index
    %c0_80 = arith.constant 0 : index
    %123 = vector.load %arg11[%c13, %c0_80] : memref<64x32xf32, #tpu.memory_space<vmem>>, vector<1x32xf32>
    tpu.vector_store %arg11[%c13, %c0_80], %122 {strides = array<i32>} : memref<64x32xf32, #tpu.memory_space<vmem>>, vector<1x32xf32>,
    %124 = arith.index_cast %88 : i32 to index
    %c6_81 = arith.constant 6 : index
    %125 = memref.load %arg2[%124, %c6_81] : memref<8x8xi32, #tpu.memory_space<smem>>
    %126 = arith.index_cast %125 : i32 to index
    %c0_82 = arith.constant 0 : index
    %127 = vector.load %arg5[%126, %c0_82] : memref<100x32xf32, #tpu.memory_space<vmem>>, vector<1x32xf32>
    %c14 = arith.constant 14 : index
    %c0_83 = arith.constant 0 : index
    %128 = vector.load %arg11[%c14, %c0_83] : memref<64x32xf32, #tpu.memory_space<vmem>>, vector<1x32xf32>
    tpu.vector_store %arg11[%c14, %c0_83], %127 {strides = array<i32>} : memref<64x32xf32, #tpu.memory_space<vmem>>, vector<1x32xf32>,
    %129 = arith.index_cast %88 : i32 to index
    %c7_84 = arith.constant 7 : index
    %130 = memref.load %arg2[%129, %c7_84] : memref<8x8xi32, #tpu.memory_space<smem>>
    %131 = arith.index_cast %130 : i32 to index
    %c0_85 = arith.constant 0 : index
    %132 = vector.load %arg5[%131, %c0_85] : memref<100x32xf32, #tpu.memory_space<vmem>>, vector<1x32xf32>
    %c15 = arith.constant 15 : index
    %c0_86 = arith.constant 0 : index
    %133 = vector.load %arg11[%c15, %c0_86] : memref<64x32xf32, #tpu.memory_space<vmem>>, vector<1x32xf32>
    tpu.vector_store %arg11[%c15, %c0_86], %132 {strides = array<i32>} : memref<64x32xf32, #tpu.memory_space<vmem>>, vector<1x32xf32>,
    %134 = arith.index_cast %88 : i32 to index
    %c0_87 = arith.constant 0 : index
    %135 = memref.load %arg3[%134, %c0_87] : memref<8x8xi32, #tpu.memory_space<smem>>
    %136 = arith.index_cast %135 : i32 to index
    %c0_88 = arith.constant 0 : index
    %137 = vector.load %arg6[%136, %c0_88] : memref<100x32xf32, #tpu.memory_space<vmem>>, vector<1x32xf32>
    %c8_89 = arith.constant 8 : index
    %c0_90 = arith.constant 0 : index
    %138 = vector.load %arg12[%c8_89, %c0_90] : memref<64x32xf32, #tpu.memory_space<vmem>>, vector<1x32xf32>
    tpu.vector_store %arg12[%c8_89, %c0_90], %137 {strides = array<i32>} : memref<64x32xf32, #tpu.memory_space<vmem>>, vector<1x32xf32>,
    %139 = arith.index_cast %88 : i32 to index
    %c1_91 = arith.constant 1 : index
    %140 = memref.load %arg3[%139, %c1_91] : memref<8x8xi32, #tpu.memory_space<smem>>
    %141 = arith.index_cast %140 : i32 to index
    %c0_92 = arith.constant 0 : index
    %142 = vector.load %arg6[%141, %c0_92] : memref<100x32xf32, #tpu.memory_space<vmem>>, vector<1x32xf32>
    %c9_93 = arith.constant 9 : index
    %c0_94 = arith.constant 0 : index
    %143 = vector.load %arg12[%c9_93, %c0_94] : memref<64x32xf32, #tpu.memory_space<vmem>>, vector<1x32xf32>
    tpu.vector_store %arg12[%c9_93, %c0_94], %142 {strides = array<i32>} : memref<64x32xf32, #tpu.memory_space<vmem>>, vector<1x32xf32>,
    %144 = arith.index_cast %88 : i32 to index
    %c2_95 = arith.constant 2 : index
    %145 = memref.load %arg3[%144, %c2_95] : memref<8x8xi32, #tpu.memory_space<smem>>
    %146 = arith.index_cast %145 : i32 to index
    %c0_96 = arith.constant 0 : index
    %147 = vector.load %arg6[%146, %c0_96] : memref<100x32xf32, #tpu.memory_space<vmem>>, vector<1x32xf32>
    %c10_97 = arith.constant 10 : index
    %c0_98 = arith.constant 0 : index
    %148 = vector.load %arg12[%c10_97, %c0_98] : memref<64x32xf32, #tpu.memory_space<vmem>>, vector<1x32xf32>
    tpu.vector_store %arg12[%c10_97, %c0_98], %147 {strides = array<i32>} : memref<64x32xf32, #tpu.memory_space<vmem>>, vector<1x32xf32>,
    %149 = arith.index_cast %88 : i32 to index
    %c3_99 = arith.constant 3 : index
    %150 = memref.load %arg3[%149, %c3_99] : memref<8x8xi32, #tpu.memory_space<smem>>
    %151 = arith.index_cast %150 : i32 to index
    %c0_100 = arith.constant 0 : index
    %152 = vector.load %arg6[%151, %c0_100] : memref<100x32xf32, #tpu.memory_space<vmem>>, vector<1x32xf32>
    %c11_101 = arith.constant 11 : index
    %c0_102 = arith.constant 0 : index
    %153 = vector.load %arg12[%c11_101, %c0_102] : memref<64x32xf32, #tpu.memory_space<vmem>>, vector<1x32xf32>
    tpu.vector_store %arg12[%c11_101, %c0_102], %152 {strides = array<i32>} : memref<64x32xf32, #tpu.memory_space<vmem>>, vector<1x32xf32>,
    %154 = arith.index_cast %88 : i32 to index
    %c4_103 = arith.constant 4 : index
    %155 = memref.load %arg3[%154, %c4_103] : memref<8x8xi32, #tpu.memory_space<smem>>
    %156 = arith.index_cast %155 : i32 to index
    %c0_104 = arith.constant 0 : index
    %157 = vector.load %arg6[%156, %c0_104] : memref<100x32xf32, #tpu.memory_space<vmem>>, vector<1x32xf32>
    %c12_105 = arith.constant 12 : index
    %c0_106 = arith.constant 0 : index
    %158 = vector.load %arg12[%c12_105, %c0_106] : memref<64x32xf32, #tpu.memory_space<vmem>>, vector<1x32xf32>
    tpu.vector_store %arg12[%c12_105, %c0_106], %157 {strides = array<i32>} : memref<64x32xf32, #tpu.memory_space<vmem>>, vector<1x32xf32>,
    %159 = arith.index_cast %88 : i32 to index
    %c5_107 = arith.constant 5 : index
    %160 = memref.load %arg3[%159, %c5_107] : memref<8x8xi32, #tpu.memory_space<smem>>
    %161 = arith.index_cast %160 : i32 to index
    %c0_108 = arith.constant 0 : index
    %162 = vector.load %arg6[%161, %c0_108] : memref<100x32xf32, #tpu.memory_space<vmem>>, vector<1x32xf32>
    %c13_109 = arith.constant 13 : index
    %c0_110 = arith.constant 0 : index
    %163 = vector.load %arg12[%c13_109, %c0_110] : memref<64x32xf32, #tpu.memory_space<vmem>>, vector<1x32xf32>
    tpu.vector_store %arg12[%c13_109, %c0_110], %162 {strides = array<i32>} : memref<64x32xf32, #tpu.memory_space<vmem>>, vector<1x32xf32>,
    %164 = arith.index_cast %88 : i32 to index
    %c6_111 = arith.constant 6 : index
    %165 = memref.load %arg3[%164, %c6_111] : memref<8x8xi32, #tpu.memory_space<smem>>
    %166 = arith.index_cast %165 : i32 to index
    %c0_112 = arith.constant 0 : index
    %167 = vector.load %arg6[%166, %c0_112] : memref<100x32xf32, #tpu.memory_space<vmem>>, vector<1x32xf32>
    %c14_113 = arith.constant 14 : index
    %c0_114 = arith.constant 0 : index
    %168 = vector.load %arg12[%c14_113, %c0_114] : memref<64x32xf32, #tpu.memory_space<vmem>>, vector<1x32xf32>
    tpu.vector_store %arg12[%c14_113, %c0_114], %167 {strides = array<i32>} : memref<64x32xf32, #tpu.memory_space<vmem>>, vector<1x32xf32>,
    %169 = arith.index_cast %88 : i32 to index
    %c7_115 = arith.constant 7 : index
    %170 = memref.load %arg3[%169, %c7_115] : memref<8x8xi32, #tpu.memory_space<smem>>
    %171 = arith.index_cast %170 : i32 to index
    %c0_116 = arith.constant 0 : index
    %172 = vector.load %arg6[%171, %c0_116] : memref<100x32xf32, #tpu.memory_space<vmem>>, vector<1x32xf32>
    %c15_117 = arith.constant 15 : index
    %c0_118 = arith.constant 0 : index
    %173 = vector.load %arg12[%c15_117, %c0_118] : memref<64x32xf32, #tpu.memory_space<vmem>>, vector<1x32xf32>
    tpu.vector_store %arg12[%c15_117, %c0_118], %172 {strides = array<i32>} : memref<64x32xf32, #tpu.memory_space<vmem>>, vector<1x32xf32>,
    %c8_i32_119 = arith.constant 8 : i32
    %174 = arith.muli %arg0, %c8_i32_119 : i32
    %c2_i32 = arith.constant 2 : i32
    %175 = arith.addi %174, %c2_i32 : i32
    %176 = arith.index_cast %175 : i32 to index
    %177 = memref.load %arg1[%176] : memref<8xi32, #tpu.memory_space<smem>>
    %178 = arith.index_cast %177 : i32 to index
    %c0_120 = arith.constant 0 : index
    %179 = vector.load %arg4[%178, %c0_120] : memref<50x32xf32, #tpu.memory_space<vmem>>, vector<1x32xf32>
    %c2_121 = arith.constant 2 : index
    %c0_122 = arith.constant 0 : index
    %180 = vector.load %arg10[%c2_121, %c0_122] : memref<8x32xf32, #tpu.memory_space<vmem>>, vector<1x32xf32>
    tpu.vector_store %arg10[%c2_121, %c0_122], %179 {strides = array<i32>} : memref<8x32xf32, #tpu.memory_space<vmem>>, vector<1x32xf32>,
    %181 = arith.index_cast %175 : i32 to index
    %c0_123 = arith.constant 0 : index
    %182 = memref.load %arg2[%181, %c0_123] : memref<8x8xi32, #tpu.memory_space<smem>>
    %183 = arith.index_cast %182 : i32 to index
    %c0_124 = arith.constant 0 : index
    %184 = vector.load %arg5[%183, %c0_124] : memref<100x32xf32, #tpu.memory_space<vmem>>, vector<1x32xf32>
    %c16 = arith.constant 16 : index
    %c0_125 = arith.constant 0 : index
    %185 = vector.load %arg11[%c16, %c0_125] : memref<64x32xf32, #tpu.memory_space<vmem>>, vector<1x32xf32>
    tpu.vector_store %arg11[%c16, %c0_125], %184 {strides = array<i32>} : memref<64x32xf32, #tpu.memory_space<vmem>>, vector<1x32xf32>,
    %186 = arith.index_cast %175 : i32 to index
    %c1_126 = arith.constant 1 : index
    %187 = memref.load %arg2[%186, %c1_126] : memref<8x8xi32, #tpu.memory_space<smem>>
    %188 = arith.index_cast %187 : i32 to index
    %c0_127 = arith.constant 0 : index
    %189 = vector.load %arg5[%188, %c0_127] : memref<100x32xf32, #tpu.memory_space<vmem>>, vector<1x32xf32>
    %c17 = arith.constant 17 : index
    %c0_128 = arith.constant 0 : index
    %190 = vector.load %arg11[%c17, %c0_128] : memref<64x32xf32, #tpu.memory_space<vmem>>, vector<1x32xf32>
    tpu.vector_store %arg11[%c17, %c0_128], %189 {strides = array<i32>} : memref<64x32xf32, #tpu.memory_space<vmem>>, vector<1x32xf32>,
    %191 = arith.index_cast %175 : i32 to index
    %c2_129 = arith.constant 2 : index
    %192 = memref.load %arg2[%191, %c2_129] : memref<8x8xi32, #tpu.memory_space<smem>>
    %193 = arith.index_cast %192 : i32 to index
    %c0_130 = arith.constant 0 : index
    %194 = vector.load %arg5[%193, %c0_130] : memref<100x32xf32, #tpu.memory_space<vmem>>, vector<1x32xf32>
    %c18 = arith.constant 18 : index
    %c0_131 = arith.constant 0 : index
    %195 = vector.load %arg11[%c18, %c0_131] : memref<64x32xf32, #tpu.memory_space<vmem>>, vector<1x32xf32>
    tpu.vector_store %arg11[%c18, %c0_131], %194 {strides = array<i32>} : memref<64x32xf32, #tpu.memory_space<vmem>>, vector<1x32xf32>,
    %196 = arith.index_cast %175 : i32 to index
    %c3_132 = arith.constant 3 : index
    %197 = memref.load %arg2[%196, %c3_132] : memref<8x8xi32, #tpu.memory_space<smem>>
    %198 = arith.index_cast %197 : i32 to index
    %c0_133 = arith.constant 0 : index
    %199 = vector.load %arg5[%198, %c0_133] : memref<100x32xf32, #tpu.memory_space<vmem>>, vector<1x32xf32>
    %c19 = arith.constant 19 : index
    %c0_134 = arith.constant 0 : index
    %200 = vector.load %arg11[%c19, %c0_134] : memref<64x32xf32, #tpu.memory_space<vmem>>, vector<1x32xf32>
    tpu.vector_store %arg11[%c19, %c0_134], %199 {strides = array<i32>} : memref<64x32xf32, #tpu.memory_space<vmem>>, vector<1x32xf32>,
    %201 = arith.index_cast %175 : i32 to index
    %c4_135 = arith.constant 4 : index
    %202 = memref.load %arg2[%201, %c4_135] : memref<8x8xi32, #tpu.memory_space<smem>>
    %203 = arith.index_cast %202 : i32 to index
    %c0_136 = arith.constant 0 : index
    %204 = vector.load %arg5[%203, %c0_136] : memref<100x32xf32, #tpu.memory_space<vmem>>, vector<1x32xf32>
    %c20 = arith.constant 20 : index
    %c0_137 = arith.constant 0 : index
    %205 = vector.load %arg11[%c20, %c0_137] : memref<64x32xf32, #tpu.memory_space<vmem>>, vector<1x32xf32>
    tpu.vector_store %arg11[%c20, %c0_137], %204 {strides = array<i32>} : memref<64x32xf32, #tpu.memory_space<vmem>>, vector<1x32xf32>,
    %206 = arith.index_cast %175 : i32 to index
    %c5_138 = arith.constant 5 : index
    %207 = memref.load %arg2[%206, %c5_138] : memref<8x8xi32, #tpu.memory_space<smem>>
    %208 = arith.index_cast %207 : i32 to index
    %c0_139 = arith.constant 0 : index
    %209 = vector.load %arg5[%208, %c0_139] : memref<100x32xf32, #tpu.memory_space<vmem>>, vector<1x32xf32>
    %c21 = arith.constant 21 : index
    %c0_140 = arith.constant 0 : index
    %210 = vector.load %arg11[%c21, %c0_140] : memref<64x32xf32, #tpu.memory_space<vmem>>, vector<1x32xf32>
    tpu.vector_store %arg11[%c21, %c0_140], %209 {strides = array<i32>} : memref<64x32xf32, #tpu.memory_space<vmem>>, vector<1x32xf32>,
    %211 = arith.index_cast %175 : i32 to index
    %c6_141 = arith.constant 6 : index
    %212 = memref.load %arg2[%211, %c6_141] : memref<8x8xi32, #tpu.memory_space<smem>>
    %213 = arith.index_cast %212 : i32 to index
    %c0_142 = arith.constant 0 : index
    %214 = vector.load %arg5[%213, %c0_142] : memref<100x32xf32, #tpu.memory_space<vmem>>, vector<1x32xf32>
    %c22 = arith.constant 22 : index
    %c0_143 = arith.constant 0 : index
    %215 = vector.load %arg11[%c22, %c0_143] : memref<64x32xf32, #tpu.memory_space<vmem>>, vector<1x32xf32>
    tpu.vector_store %arg11[%c22, %c0_143], %214 {strides = array<i32>} : memref<64x32xf32, #tpu.memory_space<vmem>>, vector<1x32xf32>,
    %216 = arith.index_cast %175 : i32 to index
    %c7_144 = arith.constant 7 : index
    %217 = memref.load %arg2[%216, %c7_144] : memref<8x8xi32, #tpu.memory_space<smem>>
    %218 = arith.index_cast %217 : i32 to index
    %c0_145 = arith.constant 0 : index
    %219 = vector.load %arg5[%218, %c0_145] : memref<100x32xf32, #tpu.memory_space<vmem>>, vector<1x32xf32>
    %c23 = arith.constant 23 : index
    %c0_146 = arith.constant 0 : index
    %220 = vector.load %arg11[%c23, %c0_146] : memref<64x32xf32, #tpu.memory_space<vmem>>, vector<1x32xf32>
    tpu.vector_store %arg11[%c23, %c0_146], %219 {strides = array<i32>} : memref<64x32xf32, #tpu.memory_space<vmem>>, vector<1x32xf32>,
    %221 = arith.index_cast %175 : i32 to index
    %c0_147 = arith.constant 0 : index
    %222 = memref.load %arg3[%221, %c0_147] : memref<8x8xi32, #tpu.memory_space<smem>>
    %223 = arith.index_cast %222 : i32 to index
    %c0_148 = arith.constant 0 : index
    %224 = vector.load %arg6[%223, %c0_148] : memref<100x32xf32, #tpu.memory_space<vmem>>, vector<1x32xf32>
    %c16_149 = arith.constant 16 : index
    %c0_150 = arith.constant 0 : index
    %225 = vector.load %arg12[%c16_149, %c0_150] : memref<64x32xf32, #tpu.memory_space<vmem>>, vector<1x32xf32>
    tpu.vector_store %arg12[%c16_149, %c0_150], %224 {strides = array<i32>} : memref<64x32xf32, #tpu.memory_space<vmem>>, vector<1x32xf32>,
    %226 = arith.index_cast %175 : i32 to index
    %c1_151 = arith.constant 1 : index
    %227 = memref.load %arg3[%226, %c1_151] : memref<8x8xi32, #tpu.memory_space<smem>>
    %228 = arith.index_cast %227 : i32 to index
    %c0_152 = arith.constant 0 : index
    %229 = vector.load %arg6[%228, %c0_152] : memref<100x32xf32, #tpu.memory_space<vmem>>, vector<1x32xf32>
    %c17_153 = arith.constant 17 : index
    %c0_154 = arith.constant 0 : index
    %230 = vector.load %arg12[%c17_153, %c0_154] : memref<64x32xf32, #tpu.memory_space<vmem>>, vector<1x32xf32>
    tpu.vector_store %arg12[%c17_153, %c0_154], %229 {strides = array<i32>} : memref<64x32xf32, #tpu.memory_space<vmem>>, vector<1x32xf32>,
    %231 = arith.index_cast %175 : i32 to index
    %c2_155 = arith.constant 2 : index
    %232 = memref.load %arg3[%231, %c2_155] : memref<8x8xi32, #tpu.memory_space<smem>>
    %233 = arith.index_cast %232 : i32 to index
    %c0_156 = arith.constant 0 : index
    %234 = vector.load %arg6[%233, %c0_156] : memref<100x32xf32, #tpu.memory_space<vmem>>, vector<1x32xf32>
    %c18_157 = arith.constant 18 : index
    %c0_158 = arith.constant 0 : index
    %235 = vector.load %arg12[%c18_157, %c0_158] : memref<64x32xf32, #tpu.memory_space<vmem>>, vector<1x32xf32>
    tpu.vector_store %arg12[%c18_157, %c0_158], %234 {strides = array<i32>} : memref<64x32xf32, #tpu.memory_space<vmem>>, vector<1x32xf32>,
    %236 = arith.index_cast %175 : i32 to index
    %c3_159 = arith.constant 3 : index
    %237 = memref.load %arg3[%236, %c3_159] : memref<8x8xi32, #tpu.memory_space<smem>>
    %238 = arith.index_cast %237 : i32 to index
    %c0_160 = arith.constant 0 : index
    %239 = vector.load %arg6[%238, %c0_160] : memref<100x32xf32, #tpu.memory_space<vmem>>, vector<1x32xf32>
    %c19_161 = arith.constant 19 : index
    %c0_162 = arith.constant 0 : index
    %240 = vector.load %arg12[%c19_161, %c0_162] : memref<64x32xf32, #tpu.memory_space<vmem>>, vector<1x32xf32>
    tpu.vector_store %arg12[%c19_161, %c0_162], %239 {strides = array<i32>} : memref<64x32xf32, #tpu.memory_space<vmem>>, vector<1x32xf32>,
    %241 = arith.index_cast %175 : i32 to index
    %c4_163 = arith.constant 4 : index
    %242 = memref.load %arg3[%241, %c4_163] : memref<8x8xi32, #tpu.memory_space<smem>>
    %243 = arith.index_cast %242 : i32 to index
    %c0_164 = arith.constant 0 : index
    %244 = vector.load %arg6[%243, %c0_164] : memref<100x32xf32, #tpu.memory_space<vmem>>, vector<1x32xf32>
    %c20_165 = arith.constant 20 : index
    %c0_166 = arith.constant 0 : index
    %245 = vector.load %arg12[%c20_165, %c0_166] : memref<64x32xf32, #tpu.memory_space<vmem>>, vector<1x32xf32>
    tpu.vector_store %arg12[%c20_165, %c0_166], %244 {strides = array<i32>} : memref<64x32xf32, #tpu.memory_space<vmem>>, vector<1x32xf32>,
    %246 = arith.index_cast %175 : i32 to index
    %c5_167 = arith.constant 5 : index
    %247 = memref.load %arg3[%246, %c5_167] : memref<8x8xi32, #tpu.memory_space<smem>>
    %248 = arith.index_cast %247 : i32 to index
    %c0_168 = arith.constant 0 : index
    %249 = vector.load %arg6[%248, %c0_168] : memref<100x32xf32, #tpu.memory_space<vmem>>, vector<1x32xf32>
    %c21_169 = arith.constant 21 : index
    %c0_170 = arith.constant 0 : index
    %250 = vector.load %arg12[%c21_169, %c0_170] : memref<64x32xf32, #tpu.memory_space<vmem>>, vector<1x32xf32>
    tpu.vector_store %arg12[%c21_169, %c0_170], %249 {strides = array<i32>} : memref<64x32xf32, #tpu.memory_space<vmem>>, vector<1x32xf32>,
    %251 = arith.index_cast %175 : i32 to index
    %c6_171 = arith.constant 6 : index
    %252 = memref.load %arg3[%251, %c6_171] : memref<8x8xi32, #tpu.memory_space<smem>>
    %253 = arith.index_cast %252 : i32 to index
    %c0_172 = arith.constant 0 : index
    %254 = vector.load %arg6[%253, %c0_172] : memref<100x32xf32, #tpu.memory_space<vmem>>, vector<1x32xf32>
    %c22_173 = arith.constant 22 : index
    %c0_174 = arith.constant 0 : index
    %255 = vector.load %arg12[%c22_173, %c0_174] : memref<64x32xf32, #tpu.memory_space<vmem>>, vector<1x32xf32>
    tpu.vector_store %arg12[%c22_173, %c0_174], %254 {strides = array<i32>} : memref<64x32xf32, #tpu.memory_space<vmem>>, vector<1x32xf32>,
    %256 = arith.index_cast %175 : i32 to index
    %c7_175 = arith.constant 7 : index
    %257 = memref.load %arg3[%256, %c7_175] : memref<8x8xi32, #tpu.memory_space<smem>>
    %258 = arith.index_cast %257 : i32 to index
    %c0_176 = arith.constant 0 : index
    %259 = vector.load %arg6[%258, %c0_176] : memref<100x32xf32, #tpu.memory_space<vmem>>, vector<1x32xf32>
    %c23_177 = arith.constant 23 : index
    %c0_178 = arith.constant 0 : index
    %260 = vector.load %arg12[%c23_177, %c0_178] : memref<64x32xf32, #tpu.memory_space<vmem>>, vector<1x32xf32>
    tpu.vector_store %arg12[%c23_177, %c0_178], %259 {strides = array<i32>} : memref<64x32xf32, #tpu.memory_space<vmem>>, vector<1x32xf32>,
    %c8_i32_179 = arith.constant 8 : i32
    %261 = arith.muli %arg0, %c8_i32_179 : i32
    %c3_i32 = arith.constant 3 : i32
    %262 = arith.addi %261, %c3_i32 : i32
    %263 = arith.index_cast %262 : i32 to index
    %264 = memref.load %arg1[%263] : memref<8xi32, #tpu.memory_space<smem>>
    %265 = arith.index_cast %264 : i32 to index
    %c0_180 = arith.constant 0 : index
    %266 = vector.load %arg4[%265, %c0_180] : memref<50x32xf32, #tpu.memory_space<vmem>>, vector<1x32xf32>
    %c3_181 = arith.constant 3 : index
    %c0_182 = arith.constant 0 : index
    %267 = vector.load %arg10[%c3_181, %c0_182] : memref<8x32xf32, #tpu.memory_space<vmem>>, vector<1x32xf32>
    tpu.vector_store %arg10[%c3_181, %c0_182], %266 {strides = array<i32>} : memref<8x32xf32, #tpu.memory_space<vmem>>, vector<1x32xf32>,
    %268 = arith.index_cast %262 : i32 to index
    %c0_183 = arith.constant 0 : index
    %269 = memref.load %arg2[%268, %c0_183] : memref<8x8xi32, #tpu.memory_space<smem>>
    %270 = arith.index_cast %269 : i32 to index
    %c0_184 = arith.constant 0 : index
    %271 = vector.load %arg5[%270, %c0_184] : memref<100x32xf32, #tpu.memory_space<vmem>>, vector<1x32xf32>
    %c24 = arith.constant 24 : index
    %c0_185 = arith.constant 0 : index
    %272 = vector.load %arg11[%c24, %c0_185] : memref<64x32xf32, #tpu.memory_space<vmem>>, vector<1x32xf32>
    tpu.vector_store %arg11[%c24, %c0_185], %271 {strides = array<i32>} : memref<64x32xf32, #tpu.memory_space<vmem>>, vector<1x32xf32>,
    %273 = arith.index_cast %262 : i32 to index
    %c1_186 = arith.constant 1 : index
    %274 = memref.load %arg2[%273, %c1_186] : memref<8x8xi32, #tpu.memory_space<smem>>
    %275 = arith.index_cast %274 : i32 to index
    %c0_187 = arith.constant 0 : index
    %276 = vector.load %arg5[%275, %c0_187] : memref<100x32xf32, #tpu.memory_space<vmem>>, vector<1x32xf32>
    %c25 = arith.constant 25 : index
    %c0_188 = arith.constant 0 : index
    %277 = vector.load %arg11[%c25, %c0_188] : memref<64x32xf32, #tpu.memory_space<vmem>>, vector<1x32xf32>
    tpu.vector_store %arg11[%c25, %c0_188], %276 {strides = array<i32>} : memref<64x32xf32, #tpu.memory_space<vmem>>, vector<1x32xf32>,
    %278 = arith.index_cast %262 : i32 to index
    %c2_189 = arith.constant 2 : index
    %279 = memref.load %arg2[%278, %c2_189] : memref<8x8xi32, #tpu.memory_space<smem>>
    %280 = arith.index_cast %279 : i32 to index
    %c0_190 = arith.constant 0 : index
    %281 = vector.load %arg5[%280, %c0_190] : memref<100x32xf32, #tpu.memory_space<vmem>>, vector<1x32xf32>
    %c26 = arith.constant 26 : index
    %c0_191 = arith.constant 0 : index
    %282 = vector.load %arg11[%c26, %c0_191] : memref<64x32xf32, #tpu.memory_space<vmem>>, vector<1x32xf32>
    tpu.vector_store %arg11[%c26, %c0_191], %281 {strides = array<i32>} : memref<64x32xf32, #tpu.memory_space<vmem>>, vector<1x32xf32>,
    %283 = arith.index_cast %262 : i32 to index
    %c3_192 = arith.constant 3 : index
    %284 = memref.load %arg2[%283, %c3_192] : memref<8x8xi32, #tpu.memory_space<smem>>
    %285 = arith.index_cast %284 : i32 to index
    %c0_193 = arith.constant 0 : index
    %286 = vector.load %arg5[%285, %c0_193] : memref<100x32xf32, #tpu.memory_space<vmem>>, vector<1x32xf32>
    %c27 = arith.constant 27 : index
    %c0_194 = arith.constant 0 : index
    %287 = vector.load %arg11[%c27, %c0_194] : memref<64x32xf32, #tpu.memory_space<vmem>>, vector<1x32xf32>
    tpu.vector_store %arg11[%c27, %c0_194], %286 {strides = array<i32>} : memref<64x32xf32, #tpu.memory_space<vmem>>, vector<1x32xf32>,
    %288 = arith.index_cast %262 : i32 to index
    %c4_195 = arith.constant 4 : index
    %289 = memref.load %arg2[%288, %c4_195] : memref<8x8xi32, #tpu.memory_space<smem>>
    %290 = arith.index_cast %289 : i32 to index
    %c0_196 = arith.constant 0 : index
    %291 = vector.load %arg5[%290, %c0_196] : memref<100x32xf32, #tpu.memory_space<vmem>>, vector<1x32xf32>
    %c28 = arith.constant 28 : index
    %c0_197 = arith.constant 0 : index
    %292 = vector.load %arg11[%c28, %c0_197] : memref<64x32xf32, #tpu.memory_space<vmem>>, vector<1x32xf32>
    tpu.vector_store %arg11[%c28, %c0_197], %291 {strides = array<i32>} : memref<64x32xf32, #tpu.memory_space<vmem>>, vector<1x32xf32>,
    %293 = arith.index_cast %262 : i32 to index
    %c5_198 = arith.constant 5 : index
    %294 = memref.load %arg2[%293, %c5_198] : memref<8x8xi32, #tpu.memory_space<smem>>
    %295 = arith.index_cast %294 : i32 to index
    %c0_199 = arith.constant 0 : index
    %296 = vector.load %arg5[%295, %c0_199] : memref<100x32xf32, #tpu.memory_space<vmem>>, vector<1x32xf32>
    %c29 = arith.constant 29 : index
    %c0_200 = arith.constant 0 : index
    %297 = vector.load %arg11[%c29, %c0_200] : memref<64x32xf32, #tpu.memory_space<vmem>>, vector<1x32xf32>
    tpu.vector_store %arg11[%c29, %c0_200], %296 {strides = array<i32>} : memref<64x32xf32, #tpu.memory_space<vmem>>, vector<1x32xf32>,
    %298 = arith.index_cast %262 : i32 to index
    %c6_201 = arith.constant 6 : index
    %299 = memref.load %arg2[%298, %c6_201] : memref<8x8xi32, #tpu.memory_space<smem>>
    %300 = arith.index_cast %299 : i32 to index
    %c0_202 = arith.constant 0 : index
    %301 = vector.load %arg5[%300, %c0_202] : memref<100x32xf32, #tpu.memory_space<vmem>>, vector<1x32xf32>
    %c30 = arith.constant 30 : index
    %c0_203 = arith.constant 0 : index
    %302 = vector.load %arg11[%c30, %c0_203] : memref<64x32xf32, #tpu.memory_space<vmem>>, vector<1x32xf32>
    tpu.vector_store %arg11[%c30, %c0_203], %301 {strides = array<i32>} : memref<64x32xf32, #tpu.memory_space<vmem>>, vector<1x32xf32>,
    %303 = arith.index_cast %262 : i32 to index
    %c7_204 = arith.constant 7 : index
    %304 = memref.load %arg2[%303, %c7_204] : memref<8x8xi32, #tpu.memory_space<smem>>
    %305 = arith.index_cast %304 : i32 to index
    %c0_205 = arith.constant 0 : index
    %306 = vector.load %arg5[%305, %c0_205] : memref<100x32xf32, #tpu.memory_space<vmem>>, vector<1x32xf32>
    %c31 = arith.constant 31 : index
    %c0_206 = arith.constant 0 : index
    %307 = vector.load %arg11[%c31, %c0_206] : memref<64x32xf32, #tpu.memory_space<vmem>>, vector<1x32xf32>
    tpu.vector_store %arg11[%c31, %c0_206], %306 {strides = array<i32>} : memref<64x32xf32, #tpu.memory_space<vmem>>, vector<1x32xf32>,
    %308 = arith.index_cast %262 : i32 to index
    %c0_207 = arith.constant 0 : index
    %309 = memref.load %arg3[%308, %c0_207] : memref<8x8xi32, #tpu.memory_space<smem>>
    %310 = arith.index_cast %309 : i32 to index
    %c0_208 = arith.constant 0 : index
    %311 = vector.load %arg6[%310, %c0_208] : memref<100x32xf32, #tpu.memory_space<vmem>>, vector<1x32xf32>
    %c24_209 = arith.constant 24 : index
    %c0_210 = arith.constant 0 : index
    %312 = vector.load %arg12[%c24_209, %c0_210] : memref<64x32xf32, #tpu.memory_space<vmem>>, vector<1x32xf32>
    tpu.vector_store %arg12[%c24_209, %c0_210], %311 {strides = array<i32>} : memref<64x32xf32, #tpu.memory_space<vmem>>, vector<1x32xf32>,
    %313 = arith.index_cast %262 : i32 to index
    %c1_211 = arith.constant 1 : index
    %314 = memref.load %arg3[%313, %c1_211] : memref<8x8xi32, #tpu.memory_space<smem>>
    %315 = arith.index_cast %314 : i32 to index
    %c0_212 = arith.constant 0 : index
    %316 = vector.load %arg6[%315, %c0_212] : memref<100x32xf32, #tpu.memory_space<vmem>>, vector<1x32xf32>
    %c25_213 = arith.constant 25 : index
    %c0_214 = arith.constant 0 : index
    %317 = vector.load %arg12[%c25_213, %c0_214] : memref<64x32xf32, #tpu.memory_space<vmem>>, vector<1x32xf32>
    tpu.vector_store %arg12[%c25_213, %c0_214], %316 {strides = array<i32>} : memref<64x32xf32, #tpu.memory_space<vmem>>, vector<1x32xf32>,
    %318 = arith.index_cast %262 : i32 to index
    %c2_215 = arith.constant 2 : index
    %319 = memref.load %arg3[%318, %c2_215] : memref<8x8xi32, #tpu.memory_space<smem>>
    %320 = arith.index_cast %319 : i32 to index
    %c0_216 = arith.constant 0 : index
    %321 = vector.load %arg6[%320, %c0_216] : memref<100x32xf32, #tpu.memory_space<vmem>>, vector<1x32xf32>
    %c26_217 = arith.constant 26 : index
    %c0_218 = arith.constant 0 : index
    %322 = vector.load %arg12[%c26_217, %c0_218] : memref<64x32xf32, #tpu.memory_space<vmem>>, vector<1x32xf32>
    tpu.vector_store %arg12[%c26_217, %c0_218], %321 {strides = array<i32>} : memref<64x32xf32, #tpu.memory_space<vmem>>, vector<1x32xf32>,
    %323 = arith.index_cast %262 : i32 to index
    %c3_219 = arith.constant 3 : index
    %324 = memref.load %arg3[%323, %c3_219] : memref<8x8xi32, #tpu.memory_space<smem>>
    %325 = arith.index_cast %324 : i32 to index
    %c0_220 = arith.constant 0 : index
    %326 = vector.load %arg6[%325, %c0_220] : memref<100x32xf32, #tpu.memory_space<vmem>>, vector<1x32xf32>
    %c27_221 = arith.constant 27 : index
    %c0_222 = arith.constant 0 : index
    %327 = vector.load %arg12[%c27_221, %c0_222] : memref<64x32xf32, #tpu.memory_space<vmem>>, vector<1x32xf32>
    tpu.vector_store %arg12[%c27_221, %c0_222], %326 {strides = array<i32>} : memref<64x32xf32, #tpu.memory_space<vmem>>, vector<1x32xf32>,
    %328 = arith.index_cast %262 : i32 to index
    %c4_223 = arith.constant 4 : index
    %329 = memref.load %arg3[%328, %c4_223] : memref<8x8xi32, #tpu.memory_space<smem>>
    %330 = arith.index_cast %329 : i32 to index
    %c0_224 = arith.constant 0 : index
    %331 = vector.load %arg6[%330, %c0_224] : memref<100x32xf32, #tpu.memory_space<vmem>>, vector<1x32xf32>
    %c28_225 = arith.constant 28 : index
    %c0_226 = arith.constant 0 : index
    %332 = vector.load %arg12[%c28_225, %c0_226] : memref<64x32xf32, #tpu.memory_space<vmem>>, vector<1x32xf32>
    tpu.vector_store %arg12[%c28_225, %c0_226], %331 {strides = array<i32>} : memref<64x32xf32, #tpu.memory_space<vmem>>, vector<1x32xf32>,
    %333 = arith.index_cast %262 : i32 to index
    %c5_227 = arith.constant 5 : index
    %334 = memref.load %arg3[%333, %c5_227] : memref<8x8xi32, #tpu.memory_space<smem>>
    %335 = arith.index_cast %334 : i32 to index
    %c0_228 = arith.constant 0 : index
    %336 = vector.load %arg6[%335, %c0_228] : memref<100x32xf32, #tpu.memory_space<vmem>>, vector<1x32xf32>
    %c29_229 = arith.constant 29 : index
    %c0_230 = arith.constant 0 : index
    %337 = vector.load %arg12[%c29_229, %c0_230] : memref<64x32xf32, #tpu.memory_space<vmem>>, vector<1x32xf32>
    tpu.vector_store %arg12[%c29_229, %c0_230], %336 {strides = array<i32>} : memref<64x32xf32, #tpu.memory_space<vmem>>, vector<1x32xf32>,
    %338 = arith.index_cast %262 : i32 to index
    %c6_231 = arith.constant 6 : index
    %339 = memref.load %arg3[%338, %c6_231] : memref<8x8xi32, #tpu.memory_space<smem>>
    %340 = arith.index_cast %339 : i32 to index
    %c0_232 = arith.constant 0 : index
    %341 = vector.load %arg6[%340, %c0_232] : memref<100x32xf32, #tpu.memory_space<vmem>>, vector<1x32xf32>
    %c30_233 = arith.constant 30 : index
    %c0_234 = arith.constant 0 : index
    %342 = vector.load %arg12[%c30_233, %c0_234] : memref<64x32xf32, #tpu.memory_space<vmem>>, vector<1x32xf32>
    tpu.vector_store %arg12[%c30_233, %c0_234], %341 {strides = array<i32>} : memref<64x32xf32, #tpu.memory_space<vmem>>, vector<1x32xf32>,
    %343 = arith.index_cast %262 : i32 to index
    %c7_235 = arith.constant 7 : index
    %344 = memref.load %arg3[%343, %c7_235] : memref<8x8xi32, #tpu.memory_space<smem>>
    %345 = arith.index_cast %344 : i32 to index
    %c0_236 = arith.constant 0 : index
    %346 = vector.load %arg6[%345, %c0_236] : memref<100x32xf32, #tpu.memory_space<vmem>>, vector<1x32xf32>
    %c31_237 = arith.constant 31 : index
    %c0_238 = arith.constant 0 : index
    %347 = vector.load %arg12[%c31_237, %c0_238] : memref<64x32xf32, #tpu.memory_space<vmem>>, vector<1x32xf32>
    tpu.vector_store %arg12[%c31_237, %c0_238], %346 {strides = array<i32>} : memref<64x32xf32, #tpu.memory_space<vmem>>, vector<1x32xf32>,
    %c8_i32_239 = arith.constant 8 : i32
    %348 = arith.muli %arg0, %c8_i32_239 : i32
    %c4_i32 = arith.constant 4 : i32
    %349 = arith.addi %348, %c4_i32 : i32
    %350 = arith.index_cast %349 : i32 to index
    %351 = memref.load %arg1[%350] : memref<8xi32, #tpu.memory_space<smem>>
    %352 = arith.index_cast %351 : i32 to index
    %c0_240 = arith.constant 0 : index
    %353 = vector.load %arg4[%352, %c0_240] : memref<50x32xf32, #tpu.memory_space<vmem>>, vector<1x32xf32>
    %c4_241 = arith.constant 4 : index
    %c0_242 = arith.constant 0 : index
    %354 = vector.load %arg10[%c4_241, %c0_242] : memref<8x32xf32, #tpu.memory_space<vmem>>, vector<1x32xf32>
    tpu.vector_store %arg10[%c4_241, %c0_242], %353 {strides = array<i32>} : memref<8x32xf32, #tpu.memory_space<vmem>>, vector<1x32xf32>,
    %355 = arith.index_cast %349 : i32 to index
    %c0_243 = arith.constant 0 : index
    %356 = memref.load %arg2[%355, %c0_243] : memref<8x8xi32, #tpu.memory_space<smem>>
    %357 = arith.index_cast %356 : i32 to index
    %c0_244 = arith.constant 0 : index
    %358 = vector.load %arg5[%357, %c0_244] : memref<100x32xf32, #tpu.memory_space<vmem>>, vector<1x32xf32>
    %c32 = arith.constant 32 : index
    %c0_245 = arith.constant 0 : index
    %359 = vector.load %arg11[%c32, %c0_245] : memref<64x32xf32, #tpu.memory_space<vmem>>, vector<1x32xf32>
    tpu.vector_store %arg11[%c32, %c0_245], %358 {strides = array<i32>} : memref<64x32xf32, #tpu.memory_space<vmem>>, vector<1x32xf32>,
    %360 = arith.index_cast %349 : i32 to index
    %c1_246 = arith.constant 1 : index
    %361 = memref.load %arg2[%360, %c1_246] : memref<8x8xi32, #tpu.memory_space<smem>>
    %362 = arith.index_cast %361 : i32 to index
    %c0_247 = arith.constant 0 : index
    %363 = vector.load %arg5[%362, %c0_247] : memref<100x32xf32, #tpu.memory_space<vmem>>, vector<1x32xf32>
    %c33 = arith.constant 33 : index
    %c0_248 = arith.constant 0 : index
    %364 = vector.load %arg11[%c33, %c0_248] : memref<64x32xf32, #tpu.memory_space<vmem>>, vector<1x32xf32>
    tpu.vector_store %arg11[%c33, %c0_248], %363 {strides = array<i32>} : memref<64x32xf32, #tpu.memory_space<vmem>>, vector<1x32xf32>,
    %365 = arith.index_cast %349 : i32 to index
    %c2_249 = arith.constant 2 : index
    %366 = memref.load %arg2[%365, %c2_249] : memref<8x8xi32, #tpu.memory_space<smem>>
    %367 = arith.index_cast %366 : i32 to index
    %c0_250 = arith.constant 0 : index
    %368 = vector.load %arg5[%367, %c0_250] : memref<100x32xf32, #tpu.memory_space<vmem>>, vector<1x32xf32>
    %c34 = arith.constant 34 : index
    %c0_251 = arith.constant 0 : index
    %369 = vector.load %arg11[%c34, %c0_251] : memref<64x32xf32, #tpu.memory_space<vmem>>, vector<1x32xf32>
    tpu.vector_store %arg11[%c34, %c0_251], %368 {strides = array<i32>} : memref<64x32xf32, #tpu.memory_space<vmem>>, vector<1x32xf32>,
    %370 = arith.index_cast %349 : i32 to index
    %c3_252 = arith.constant 3 : index
    %371 = memref.load %arg2[%370, %c3_252] : memref<8x8xi32, #tpu.memory_space<smem>>
    %372 = arith.index_cast %371 : i32 to index
    %c0_253 = arith.constant 0 : index
    %373 = vector.load %arg5[%372, %c0_253] : memref<100x32xf32, #tpu.memory_space<vmem>>, vector<1x32xf32>
    %c35 = arith.constant 35 : index
    %c0_254 = arith.constant 0 : index
    %374 = vector.load %arg11[%c35, %c0_254] : memref<64x32xf32, #tpu.memory_space<vmem>>, vector<1x32xf32>
    tpu.vector_store %arg11[%c35, %c0_254], %373 {strides = array<i32>} : memref<64x32xf32, #tpu.memory_space<vmem>>, vector<1x32xf32>,
    %375 = arith.index_cast %349 : i32 to index
    %c4_255 = arith.constant 4 : index
    %376 = memref.load %arg2[%375, %c4_255] : memref<8x8xi32, #tpu.memory_space<smem>>
    %377 = arith.index_cast %376 : i32 to index
    %c0_256 = arith.constant 0 : index
    %378 = vector.load %arg5[%377, %c0_256] : memref<100x32xf32, #tpu.memory_space<vmem>>, vector<1x32xf32>
    %c36 = arith.constant 36 : index
    %c0_257 = arith.constant 0 : index
    %379 = vector.load %arg11[%c36, %c0_257] : memref<64x32xf32, #tpu.memory_space<vmem>>, vector<1x32xf32>
    tpu.vector_store %arg11[%c36, %c0_257], %378 {strides = array<i32>} : memref<64x32xf32, #tpu.memory_space<vmem>>, vector<1x32xf32>,
    %380 = arith.index_cast %349 : i32 to index
    %c5_258 = arith.constant 5 : index
    %381 = memref.load %arg2[%380, %c5_258] : memref<8x8xi32, #tpu.memory_space<smem>>
    %382 = arith.index_cast %381 : i32 to index
    %c0_259 = arith.constant 0 : index
    %383 = vector.load %arg5[%382, %c0_259] : memref<100x32xf32, #tpu.memory_space<vmem>>, vector<1x32xf32>
    %c37 = arith.constant 37 : index
    %c0_260 = arith.constant 0 : index
    %384 = vector.load %arg11[%c37, %c0_260] : memref<64x32xf32, #tpu.memory_space<vmem>>, vector<1x32xf32>
    tpu.vector_store %arg11[%c37, %c0_260], %383 {strides = array<i32>} : memref<64x32xf32, #tpu.memory_space<vmem>>, vector<1x32xf32>,
    %385 = arith.index_cast %349 : i32 to index
    %c6_261 = arith.constant 6 : index
    %386 = memref.load %arg2[%385, %c6_261] : memref<8x8xi32, #tpu.memory_space<smem>>
    %387 = arith.index_cast %386 : i32 to index
    %c0_262 = arith.constant 0 : index
    %388 = vector.load %arg5[%387, %c0_262] : memref<100x32xf32, #tpu.memory_space<vmem>>, vector<1x32xf32>
    %c38 = arith.constant 38 : index
    %c0_263 = arith.constant 0 : index
    %389 = vector.load %arg11[%c38, %c0_263] : memref<64x32xf32, #tpu.memory_space<vmem>>, vector<1x32xf32>
    tpu.vector_store %arg11[%c38, %c0_263], %388 {strides = array<i32>} : memref<64x32xf32, #tpu.memory_space<vmem>>, vector<1x32xf32>,
    %390 = arith.index_cast %349 : i32 to index
    %c7_264 = arith.constant 7 : index
    %391 = memref.load %arg2[%390, %c7_264] : memref<8x8xi32, #tpu.memory_space<smem>>
    %392 = arith.index_cast %391 : i32 to index
    %c0_265 = arith.constant 0 : index
    %393 = vector.load %arg5[%392, %c0_265] : memref<100x32xf32, #tpu.memory_space<vmem>>, vector<1x32xf32>
    %c39 = arith.constant 39 : index
    %c0_266 = arith.constant 0 : index
    %394 = vector.load %arg11[%c39, %c0_266] : memref<64x32xf32, #tpu.memory_space<vmem>>, vector<1x32xf32>
    tpu.vector_store %arg11[%c39, %c0_266], %393 {strides = array<i32>} : memref<64x32xf32, #tpu.memory_space<vmem>>, vector<1x32xf32>,
    %395 = arith.index_cast %349 : i32 to index
    %c0_267 = arith.constant 0 : index
    %396 = memref.load %arg3[%395, %c0_267] : memref<8x8xi32, #tpu.memory_space<smem>>
    %397 = arith.index_cast %396 : i32 to index
    %c0_268 = arith.constant 0 : index
    %398 = vector.load %arg6[%397, %c0_268] : memref<100x32xf32, #tpu.memory_space<vmem>>, vector<1x32xf32>
    %c32_269 = arith.constant 32 : index
    %c0_270 = arith.constant 0 : index
    %399 = vector.load %arg12[%c32_269, %c0_270] : memref<64x32xf32, #tpu.memory_space<vmem>>, vector<1x32xf32>
    tpu.vector_store %arg12[%c32_269, %c0_270], %398 {strides = array<i32>} : memref<64x32xf32, #tpu.memory_space<vmem>>, vector<1x32xf32>,
    %400 = arith.index_cast %349 : i32 to index
    %c1_271 = arith.constant 1 : index
    %401 = memref.load %arg3[%400, %c1_271] : memref<8x8xi32, #tpu.memory_space<smem>>
    %402 = arith.index_cast %401 : i32 to index
    %c0_272 = arith.constant 0 : index
    %403 = vector.load %arg6[%402, %c0_272] : memref<100x32xf32, #tpu.memory_space<vmem>>, vector<1x32xf32>
    %c33_273 = arith.constant 33 : index
    %c0_274 = arith.constant 0 : index
    %404 = vector.load %arg12[%c33_273, %c0_274] : memref<64x32xf32, #tpu.memory_space<vmem>>, vector<1x32xf32>
    tpu.vector_store %arg12[%c33_273, %c0_274], %403 {strides = array<i32>} : memref<64x32xf32, #tpu.memory_space<vmem>>, vector<1x32xf32>,
    %405 = arith.index_cast %349 : i32 to index
    %c2_275 = arith.constant 2 : index
    %406 = memref.load %arg3[%405, %c2_275] : memref<8x8xi32, #tpu.memory_space<smem>>
    %407 = arith.index_cast %406 : i32 to index
    %c0_276 = arith.constant 0 : index
    %408 = vector.load %arg6[%407, %c0_276] : memref<100x32xf32, #tpu.memory_space<vmem>>, vector<1x32xf32>
    %c34_277 = arith.constant 34 : index
    %c0_278 = arith.constant 0 : index
    %409 = vector.load %arg12[%c34_277, %c0_278] : memref<64x32xf32, #tpu.memory_space<vmem>>, vector<1x32xf32>
    tpu.vector_store %arg12[%c34_277, %c0_278], %408 {strides = array<i32>} : memref<64x32xf32, #tpu.memory_space<vmem>>, vector<1x32xf32>,
    %410 = arith.index_cast %349 : i32 to index
    %c3_279 = arith.constant 3 : index
    %411 = memref.load %arg3[%410, %c3_279] : memref<8x8xi32, #tpu.memory_space<smem>>
    %412 = arith.index_cast %411 : i32 to index
    %c0_280 = arith.constant 0 : index
    %413 = vector.load %arg6[%412, %c0_280] : memref<100x32xf32, #tpu.memory_space<vmem>>, vector<1x32xf32>
    %c35_281 = arith.constant 35 : index
    %c0_282 = arith.constant 0 : index
    %414 = vector.load %arg12[%c35_281, %c0_282] : memref<64x32xf32, #tpu.memory_space<vmem>>, vector<1x32xf32>
    tpu.vector_store %arg12[%c35_281, %c0_282], %413 {strides = array<i32>} : memref<64x32xf32, #tpu.memory_space<vmem>>, vector<1x32xf32>,
    %415 = arith.index_cast %349 : i32 to index
    %c4_283 = arith.constant 4 : index
    %416 = memref.load %arg3[%415, %c4_283] : memref<8x8xi32, #tpu.memory_space<smem>>
    %417 = arith.index_cast %416 : i32 to index
    %c0_284 = arith.constant 0 : index
    %418 = vector.load %arg6[%417, %c0_284] : memref<100x32xf32, #tpu.memory_space<vmem>>, vector<1x32xf32>
    %c36_285 = arith.constant 36 : index
    %c0_286 = arith.constant 0 : index
    %419 = vector.load %arg12[%c36_285, %c0_286] : memref<64x32xf32, #tpu.memory_space<vmem>>, vector<1x32xf32>
    tpu.vector_store %arg12[%c36_285, %c0_286], %418 {strides = array<i32>} : memref<64x32xf32, #tpu.memory_space<vmem>>, vector<1x32xf32>,
    %420 = arith.index_cast %349 : i32 to index
    %c5_287 = arith.constant 5 : index
    %421 = memref.load %arg3[%420, %c5_287] : memref<8x8xi32, #tpu.memory_space<smem>>
    %422 = arith.index_cast %421 : i32 to index
    %c0_288 = arith.constant 0 : index
    %423 = vector.load %arg6[%422, %c0_288] : memref<100x32xf32, #tpu.memory_space<vmem>>, vector<1x32xf32>
    %c37_289 = arith.constant 37 : index
    %c0_290 = arith.constant 0 : index
    %424 = vector.load %arg12[%c37_289, %c0_290] : memref<64x32xf32, #tpu.memory_space<vmem>>, vector<1x32xf32>
    tpu.vector_store %arg12[%c37_289, %c0_290], %423 {strides = array<i32>} : memref<64x32xf32, #tpu.memory_space<vmem>>, vector<1x32xf32>,
    %425 = arith.index_cast %349 : i32 to index
    %c6_291 = arith.constant 6 : index
    %426 = memref.load %arg3[%425, %c6_291] : memref<8x8xi32, #tpu.memory_space<smem>>
    %427 = arith.index_cast %426 : i32 to index
    %c0_292 = arith.constant 0 : index
    %428 = vector.load %arg6[%427, %c0_292] : memref<100x32xf32, #tpu.memory_space<vmem>>, vector<1x32xf32>
    %c38_293 = arith.constant 38 : index
    %c0_294 = arith.constant 0 : index
    %429 = vector.load %arg12[%c38_293, %c0_294] : memref<64x32xf32, #tpu.memory_space<vmem>>, vector<1x32xf32>
    tpu.vector_store %arg12[%c38_293, %c0_294], %428 {strides = array<i32>} : memref<64x32xf32, #tpu.memory_space<vmem>>, vector<1x32xf32>,
    %430 = arith.index_cast %349 : i32 to index
    %c7_295 = arith.constant 7 : index
    %431 = memref.load %arg3[%430, %c7_295] : memref<8x8xi32, #tpu.memory_space<smem>>
    %432 = arith.index_cast %431 : i32 to index
    %c0_296 = arith.constant 0 : index
    %433 = vector.load %arg6[%432, %c0_296] : memref<100x32xf32, #tpu.memory_space<vmem>>, vector<1x32xf32>
    %c39_297 = arith.constant 39 : index
    %c0_298 = arith.constant 0 : index
    %434 = vector.load %arg12[%c39_297, %c0_298] : memref<64x32xf32, #tpu.memory_space<vmem>>, vector<1x32xf32>
    tpu.vector_store %arg12[%c39_297, %c0_298], %433 {strides = array<i32>} : memref<64x32xf32, #tpu.memory_space<vmem>>, vector<1x32xf32>,
    %c8_i32_299 = arith.constant 8 : i32
    %435 = arith.muli %arg0, %c8_i32_299 : i32
    %c5_i32 = arith.constant 5 : i32
    %436 = arith.addi %435, %c5_i32 : i32
    %437 = arith.index_cast %436 : i32 to index
    %438 = memref.load %arg1[%437] : memref<8xi32, #tpu.memory_space<smem>>
    %439 = arith.index_cast %438 : i32 to index
    %c0_300 = arith.constant 0 : index
    %440 = vector.load %arg4[%439, %c0_300] : memref<50x32xf32, #tpu.memory_space<vmem>>, vector<1x32xf32>
    %c5_301 = arith.constant 5 : index
    %c0_302 = arith.constant 0 : index
    %441 = vector.load %arg10[%c5_301, %c0_302] : memref<8x32xf32, #tpu.memory_space<vmem>>, vector<1x32xf32>
    tpu.vector_store %arg10[%c5_301, %c0_302], %440 {strides = array<i32>} : memref<8x32xf32, #tpu.memory_space<vmem>>, vector<1x32xf32>,
    %442 = arith.index_cast %436 : i32 to index
    %c0_303 = arith.constant 0 : index
    %443 = memref.load %arg2[%442, %c0_303] : memref<8x8xi32, #tpu.memory_space<smem>>
    %444 = arith.index_cast %443 : i32 to index
    %c0_304 = arith.constant 0 : index
    %445 = vector.load %arg5[%444, %c0_304] : memref<100x32xf32, #tpu.memory_space<vmem>>, vector<1x32xf32>
    %c40 = arith.constant 40 : index
    %c0_305 = arith.constant 0 : index
    %446 = vector.load %arg11[%c40, %c0_305] : memref<64x32xf32, #tpu.memory_space<vmem>>, vector<1x32xf32>
    tpu.vector_store %arg11[%c40, %c0_305], %445 {strides = array<i32>} : memref<64x32xf32, #tpu.memory_space<vmem>>, vector<1x32xf32>,
    %447 = arith.index_cast %436 : i32 to index
    %c1_306 = arith.constant 1 : index
    %448 = memref.load %arg2[%447, %c1_306] : memref<8x8xi32, #tpu.memory_space<smem>>
    %449 = arith.index_cast %448 : i32 to index
    %c0_307 = arith.constant 0 : index
    %450 = vector.load %arg5[%449, %c0_307] : memref<100x32xf32, #tpu.memory_space<vmem>>, vector<1x32xf32>
    %c41 = arith.constant 41 : index
    %c0_308 = arith.constant 0 : index
    %451 = vector.load %arg11[%c41, %c0_308] : memref<64x32xf32, #tpu.memory_space<vmem>>, vector<1x32xf32>
    tpu.vector_store %arg11[%c41, %c0_308], %450 {strides = array<i32>} : memref<64x32xf32, #tpu.memory_space<vmem>>, vector<1x32xf32>,
    %452 = arith.index_cast %436 : i32 to index
    %c2_309 = arith.constant 2 : index
    %453 = memref.load %arg2[%452, %c2_309] : memref<8x8xi32, #tpu.memory_space<smem>>
    %454 = arith.index_cast %453 : i32 to index
    %c0_310 = arith.constant 0 : index
    %455 = vector.load %arg5[%454, %c0_310] : memref<100x32xf32, #tpu.memory_space<vmem>>, vector<1x32xf32>
    %c42 = arith.constant 42 : index
    %c0_311 = arith.constant 0 : index
    %456 = vector.load %arg11[%c42, %c0_311] : memref<64x32xf32, #tpu.memory_space<vmem>>, vector<1x32xf32>
    tpu.vector_store %arg11[%c42, %c0_311], %455 {strides = array<i32>} : memref<64x32xf32, #tpu.memory_space<vmem>>, vector<1x32xf32>,
    %457 = arith.index_cast %436 : i32 to index
    %c3_312 = arith.constant 3 : index
    %458 = memref.load %arg2[%457, %c3_312] : memref<8x8xi32, #tpu.memory_space<smem>>
    %459 = arith.index_cast %458 : i32 to index
    %c0_313 = arith.constant 0 : index
    %460 = vector.load %arg5[%459, %c0_313] : memref<100x32xf32, #tpu.memory_space<vmem>>, vector<1x32xf32>
    %c43 = arith.constant 43 : index
    %c0_314 = arith.constant 0 : index
    %461 = vector.load %arg11[%c43, %c0_314] : memref<64x32xf32, #tpu.memory_space<vmem>>, vector<1x32xf32>
    tpu.vector_store %arg11[%c43, %c0_314], %460 {strides = array<i32>} : memref<64x32xf32, #tpu.memory_space<vmem>>, vector<1x32xf32>,
    %462 = arith.index_cast %436 : i32 to index
    %c4_315 = arith.constant 4 : index
    %463 = memref.load %arg2[%462, %c4_315] : memref<8x8xi32, #tpu.memory_space<smem>>
    %464 = arith.index_cast %463 : i32 to index
    %c0_316 = arith.constant 0 : index
    %465 = vector.load %arg5[%464, %c0_316] : memref<100x32xf32, #tpu.memory_space<vmem>>, vector<1x32xf32>
    %c44 = arith.constant 44 : index
    %c0_317 = arith.constant 0 : index
    %466 = vector.load %arg11[%c44, %c0_317] : memref<64x32xf32, #tpu.memory_space<vmem>>, vector<1x32xf32>
    tpu.vector_store %arg11[%c44, %c0_317], %465 {strides = array<i32>} : memref<64x32xf32, #tpu.memory_space<vmem>>, vector<1x32xf32>,
    %467 = arith.index_cast %436 : i32 to index
    %c5_318 = arith.constant 5 : index
    %468 = memref.load %arg2[%467, %c5_318] : memref<8x8xi32, #tpu.memory_space<smem>>
    %469 = arith.index_cast %468 : i32 to index
    %c0_319 = arith.constant 0 : index
    %470 = vector.load %arg5[%469, %c0_319] : memref<100x32xf32, #tpu.memory_space<vmem>>, vector<1x32xf32>
    %c45 = arith.constant 45 : index
    %c0_320 = arith.constant 0 : index
    %471 = vector.load %arg11[%c45, %c0_320] : memref<64x32xf32, #tpu.memory_space<vmem>>, vector<1x32xf32>
    tpu.vector_store %arg11[%c45, %c0_320], %470 {strides = array<i32>} : memref<64x32xf32, #tpu.memory_space<vmem>>, vector<1x32xf32>,
    %472 = arith.index_cast %436 : i32 to index
    %c6_321 = arith.constant 6 : index
    %473 = memref.load %arg2[%472, %c6_321] : memref<8x8xi32, #tpu.memory_space<smem>>
    %474 = arith.index_cast %473 : i32 to index
    %c0_322 = arith.constant 0 : index
    %475 = vector.load %arg5[%474, %c0_322] : memref<100x32xf32, #tpu.memory_space<vmem>>, vector<1x32xf32>
    %c46 = arith.constant 46 : index
    %c0_323 = arith.constant 0 : index
    %476 = vector.load %arg11[%c46, %c0_323] : memref<64x32xf32, #tpu.memory_space<vmem>>, vector<1x32xf32>
    tpu.vector_store %arg11[%c46, %c0_323], %475 {strides = array<i32>} : memref<64x32xf32, #tpu.memory_space<vmem>>, vector<1x32xf32>,
    %477 = arith.index_cast %436 : i32 to index
    %c7_324 = arith.constant 7 : index
    %478 = memref.load %arg2[%477, %c7_324] : memref<8x8xi32, #tpu.memory_space<smem>>
    %479 = arith.index_cast %478 : i32 to index
    %c0_325 = arith.constant 0 : index
    %480 = vector.load %arg5[%479, %c0_325] : memref<100x32xf32, #tpu.memory_space<vmem>>, vector<1x32xf32>
    %c47 = arith.constant 47 : index
    %c0_326 = arith.constant 0 : index
    %481 = vector.load %arg11[%c47, %c0_326] : memref<64x32xf32, #tpu.memory_space<vmem>>, vector<1x32xf32>
    tpu.vector_store %arg11[%c47, %c0_326], %480 {strides = array<i32>} : memref<64x32xf32, #tpu.memory_space<vmem>>, vector<1x32xf32>,
    %482 = arith.index_cast %436 : i32 to index
    %c0_327 = arith.constant 0 : index
    %483 = memref.load %arg3[%482, %c0_327] : memref<8x8xi32, #tpu.memory_space<smem>>
    %484 = arith.index_cast %483 : i32 to index
    %c0_328 = arith.constant 0 : index
    %485 = vector.load %arg6[%484, %c0_328] : memref<100x32xf32, #tpu.memory_space<vmem>>, vector<1x32xf32>
    %c40_329 = arith.constant 40 : index
    %c0_330 = arith.constant 0 : index
    %486 = vector.load %arg12[%c40_329, %c0_330] : memref<64x32xf32, #tpu.memory_space<vmem>>, vector<1x32xf32>
    tpu.vector_store %arg12[%c40_329, %c0_330], %485 {strides = array<i32>} : memref<64x32xf32, #tpu.memory_space<vmem>>, vector<1x32xf32>,
    %487 = arith.index_cast %436 : i32 to index
    %c1_331 = arith.constant 1 : index
    %488 = memref.load %arg3[%487, %c1_331] : memref<8x8xi32, #tpu.memory_space<smem>>
    %489 = arith.index_cast %488 : i32 to index
    %c0_332 = arith.constant 0 : index
    %490 = vector.load %arg6[%489, %c0_332] : memref<100x32xf32, #tpu.memory_space<vmem>>, vector<1x32xf32>
    %c41_333 = arith.constant 41 : index
    %c0_334 = arith.constant 0 : index
    %491 = vector.load %arg12[%c41_333, %c0_334] : memref<64x32xf32, #tpu.memory_space<vmem>>, vector<1x32xf32>
    tpu.vector_store %arg12[%c41_333, %c0_334], %490 {strides = array<i32>} : memref<64x32xf32, #tpu.memory_space<vmem>>, vector<1x32xf32>,
    %492 = arith.index_cast %436 : i32 to index
    %c2_335 = arith.constant 2 : index
    %493 = memref.load %arg3[%492, %c2_335] : memref<8x8xi32, #tpu.memory_space<smem>>
    %494 = arith.index_cast %493 : i32 to index
    %c0_336 = arith.constant 0 : index
    %495 = vector.load %arg6[%494, %c0_336] : memref<100x32xf32, #tpu.memory_space<vmem>>, vector<1x32xf32>
    %c42_337 = arith.constant 42 : index
    %c0_338 = arith.constant 0 : index
    %496 = vector.load %arg12[%c42_337, %c0_338] : memref<64x32xf32, #tpu.memory_space<vmem>>, vector<1x32xf32>
    tpu.vector_store %arg12[%c42_337, %c0_338], %495 {strides = array<i32>} : memref<64x32xf32, #tpu.memory_space<vmem>>, vector<1x32xf32>,
    %497 = arith.index_cast %436 : i32 to index
    %c3_339 = arith.constant 3 : index
    %498 = memref.load %arg3[%497, %c3_339] : memref<8x8xi32, #tpu.memory_space<smem>>
    %499 = arith.index_cast %498 : i32 to index
    %c0_340 = arith.constant 0 : index
    %500 = vector.load %arg6[%499, %c0_340] : memref<100x32xf32, #tpu.memory_space<vmem>>, vector<1x32xf32>
    %c43_341 = arith.constant 43 : index
    %c0_342 = arith.constant 0 : index
    %501 = vector.load %arg12[%c43_341, %c0_342] : memref<64x32xf32, #tpu.memory_space<vmem>>, vector<1x32xf32>
    tpu.vector_store %arg12[%c43_341, %c0_342], %500 {strides = array<i32>} : memref<64x32xf32, #tpu.memory_space<vmem>>, vector<1x32xf32>,
    %502 = arith.index_cast %436 : i32 to index
    %c4_343 = arith.constant 4 : index
    %503 = memref.load %arg3[%502, %c4_343] : memref<8x8xi32, #tpu.memory_space<smem>>
    %504 = arith.index_cast %503 : i32 to index
    %c0_344 = arith.constant 0 : index
    %505 = vector.load %arg6[%504, %c0_344] : memref<100x32xf32, #tpu.memory_space<vmem>>, vector<1x32xf32>
    %c44_345 = arith.constant 44 : index
    %c0_346 = arith.constant 0 : index
    %506 = vector.load %arg12[%c44_345, %c0_346] : memref<64x32xf32, #tpu.memory_space<vmem>>, vector<1x32xf32>
    tpu.vector_store %arg12[%c44_345, %c0_346], %505 {strides = array<i32>} : memref<64x32xf32, #tpu.memory_space<vmem>>, vector<1x32xf32>,
    %507 = arith.index_cast %436 : i32 to index
    %c5_347 = arith.constant 5 : index
    %508 = memref.load %arg3[%507, %c5_347] : memref<8x8xi32, #tpu.memory_space<smem>>
    %509 = arith.index_cast %508 : i32 to index
    %c0_348 = arith.constant 0 : index
    %510 = vector.load %arg6[%509, %c0_348] : memref<100x32xf32, #tpu.memory_space<vmem>>, vector<1x32xf32>
    %c45_349 = arith.constant 45 : index
    %c0_350 = arith.constant 0 : index
    %511 = vector.load %arg12[%c45_349, %c0_350] : memref<64x32xf32, #tpu.memory_space<vmem>>, vector<1x32xf32>
    tpu.vector_store %arg12[%c45_349, %c0_350], %510 {strides = array<i32>} : memref<64x32xf32, #tpu.memory_space<vmem>>, vector<1x32xf32>,
    %512 = arith.index_cast %436 : i32 to index
    %c6_351 = arith.constant 6 : index
    %513 = memref.load %arg3[%512, %c6_351] : memref<8x8xi32, #tpu.memory_space<smem>>
    %514 = arith.index_cast %513 : i32 to index
    %c0_352 = arith.constant 0 : index
    %515 = vector.load %arg6[%514, %c0_352] : memref<100x32xf32, #tpu.memory_space<vmem>>, vector<1x32xf32>
    %c46_353 = arith.constant 46 : index
    %c0_354 = arith.constant 0 : index
    %516 = vector.load %arg12[%c46_353, %c0_354] : memref<64x32xf32, #tpu.memory_space<vmem>>, vector<1x32xf32>
    tpu.vector_store %arg12[%c46_353, %c0_354], %515 {strides = array<i32>} : memref<64x32xf32, #tpu.memory_space<vmem>>, vector<1x32xf32>,
    %517 = arith.index_cast %436 : i32 to index
    %c7_355 = arith.constant 7 : index
    %518 = memref.load %arg3[%517, %c7_355] : memref<8x8xi32, #tpu.memory_space<smem>>
    %519 = arith.index_cast %518 : i32 to index
    %c0_356 = arith.constant 0 : index
    %520 = vector.load %arg6[%519, %c0_356] : memref<100x32xf32, #tpu.memory_space<vmem>>, vector<1x32xf32>
    %c47_357 = arith.constant 47 : index
    %c0_358 = arith.constant 0 : index
    %521 = vector.load %arg12[%c47_357, %c0_358] : memref<64x32xf32, #tpu.memory_space<vmem>>, vector<1x32xf32>
    tpu.vector_store %arg12[%c47_357, %c0_358], %520 {strides = array<i32>} : memref<64x32xf32, #tpu.memory_space<vmem>>, vector<1x32xf32>,
    %c8_i32_359 = arith.constant 8 : i32
    %522 = arith.muli %arg0, %c8_i32_359 : i32
    %c6_i32 = arith.constant 6 : i32
    %523 = arith.addi %522, %c6_i32 : i32
    %524 = arith.index_cast %523 : i32 to index
    %525 = memref.load %arg1[%524] : memref<8xi32, #tpu.memory_space<smem>>
    %526 = arith.index_cast %525 : i32 to index
    %c0_360 = arith.constant 0 : index
    %527 = vector.load %arg4[%526, %c0_360] : memref<50x32xf32, #tpu.memory_space<vmem>>, vector<1x32xf32>
    %c6_361 = arith.constant 6 : index
    %c0_362 = arith.constant 0 : index
    %528 = vector.load %arg10[%c6_361, %c0_362] : memref<8x32xf32, #tpu.memory_space<vmem>>, vector<1x32xf32>
    tpu.vector_store %arg10[%c6_361, %c0_362], %527 {strides = array<i32>} : memref<8x32xf32, #tpu.memory_space<vmem>>, vector<1x32xf32>,
    %529 = arith.index_cast %523 : i32 to index
    %c0_363 = arith.constant 0 : index
    %530 = memref.load %arg2[%529, %c0_363] : memref<8x8xi32, #tpu.memory_space<smem>>
    %531 = arith.index_cast %530 : i32 to index
    %c0_364 = arith.constant 0 : index
    %532 = vector.load %arg5[%531, %c0_364] : memref<100x32xf32, #tpu.memory_space<vmem>>, vector<1x32xf32>
    %c48 = arith.constant 48 : index
    %c0_365 = arith.constant 0 : index
    %533 = vector.load %arg11[%c48, %c0_365] : memref<64x32xf32, #tpu.memory_space<vmem>>, vector<1x32xf32>
    tpu.vector_store %arg11[%c48, %c0_365], %532 {strides = array<i32>} : memref<64x32xf32, #tpu.memory_space<vmem>>, vector<1x32xf32>,
    %534 = arith.index_cast %523 : i32 to index
    %c1_366 = arith.constant 1 : index
    %535 = memref.load %arg2[%534, %c1_366] : memref<8x8xi32, #tpu.memory_space<smem>>
    %536 = arith.index_cast %535 : i32 to index
    %c0_367 = arith.constant 0 : index
    %537 = vector.load %arg5[%536, %c0_367] : memref<100x32xf32, #tpu.memory_space<vmem>>, vector<1x32xf32>
    %c49 = arith.constant 49 : index
    %c0_368 = arith.constant 0 : index
    %538 = vector.load %arg11[%c49, %c0_368] : memref<64x32xf32, #tpu.memory_space<vmem>>, vector<1x32xf32>
    tpu.vector_store %arg11[%c49, %c0_368], %537 {strides = array<i32>} : memref<64x32xf32, #tpu.memory_space<vmem>>, vector<1x32xf32>,
    %539 = arith.index_cast %523 : i32 to index
    %c2_369 = arith.constant 2 : index
    %540 = memref.load %arg2[%539, %c2_369] : memref<8x8xi32, #tpu.memory_space<smem>>
    %541 = arith.index_cast %540 : i32 to index
    %c0_370 = arith.constant 0 : index
    %542 = vector.load %arg5[%541, %c0_370] : memref<100x32xf32, #tpu.memory_space<vmem>>, vector<1x32xf32>
    %c50 = arith.constant 50 : index
    %c0_371 = arith.constant 0 : index
    %543 = vector.load %arg11[%c50, %c0_371] : memref<64x32xf32, #tpu.memory_space<vmem>>, vector<1x32xf32>
    tpu.vector_store %arg11[%c50, %c0_371], %542 {strides = array<i32>} : memref<64x32xf32, #tpu.memory_space<vmem>>, vector<1x32xf32>,
    %544 = arith.index_cast %523 : i32 to index
    %c3_372 = arith.constant 3 : index
    %545 = memref.load %arg2[%544, %c3_372] : memref<8x8xi32, #tpu.memory_space<smem>>
    %546 = arith.index_cast %545 : i32 to index
    %c0_373 = arith.constant 0 : index
    %547 = vector.load %arg5[%546, %c0_373] : memref<100x32xf32, #tpu.memory_space<vmem>>, vector<1x32xf32>
    %c51 = arith.constant 51 : index
    %c0_374 = arith.constant 0 : index
    %548 = vector.load %arg11[%c51, %c0_374] : memref<64x32xf32, #tpu.memory_space<vmem>>, vector<1x32xf32>
    tpu.vector_store %arg11[%c51, %c0_374], %547 {strides = array<i32>} : memref<64x32xf32, #tpu.memory_space<vmem>>, vector<1x32xf32>,
    %549 = arith.index_cast %523 : i32 to index
    %c4_375 = arith.constant 4 : index
    %550 = memref.load %arg2[%549, %c4_375] : memref<8x8xi32, #tpu.memory_space<smem>>
    %551 = arith.index_cast %550 : i32 to index
    %c0_376 = arith.constant 0 : index
    %552 = vector.load %arg5[%551, %c0_376] : memref<100x32xf32, #tpu.memory_space<vmem>>, vector<1x32xf32>
    %c52 = arith.constant 52 : index
    %c0_377 = arith.constant 0 : index
    %553 = vector.load %arg11[%c52, %c0_377] : memref<64x32xf32, #tpu.memory_space<vmem>>, vector<1x32xf32>
    tpu.vector_store %arg11[%c52, %c0_377], %552 {strides = array<i32>} : memref<64x32xf32, #tpu.memory_space<vmem>>, vector<1x32xf32>,
    %554 = arith.index_cast %523 : i32 to index
    %c5_378 = arith.constant 5 : index
    %555 = memref.load %arg2[%554, %c5_378] : memref<8x8xi32, #tpu.memory_space<smem>>
    %556 = arith.index_cast %555 : i32 to index
    %c0_379 = arith.constant 0 : index
    %557 = vector.load %arg5[%556, %c0_379] : memref<100x32xf32, #tpu.memory_space<vmem>>, vector<1x32xf32>
    %c53 = arith.constant 53 : index
    %c0_380 = arith.constant 0 : index
    %558 = vector.load %arg11[%c53, %c0_380] : memref<64x32xf32, #tpu.memory_space<vmem>>, vector<1x32xf32>
    tpu.vector_store %arg11[%c53, %c0_380], %557 {strides = array<i32>} : memref<64x32xf32, #tpu.memory_space<vmem>>, vector<1x32xf32>,
    %559 = arith.index_cast %523 : i32 to index
    %c6_381 = arith.constant 6 : index
    %560 = memref.load %arg2[%559, %c6_381] : memref<8x8xi32, #tpu.memory_space<smem>>
    %561 = arith.index_cast %560 : i32 to index
    %c0_382 = arith.constant 0 : index
    %562 = vector.load %arg5[%561, %c0_382] : memref<100x32xf32, #tpu.memory_space<vmem>>, vector<1x32xf32>
    %c54 = arith.constant 54 : index
    %c0_383 = arith.constant 0 : index
    %563 = vector.load %arg11[%c54, %c0_383] : memref<64x32xf32, #tpu.memory_space<vmem>>, vector<1x32xf32>
    tpu.vector_store %arg11[%c54, %c0_383], %562 {strides = array<i32>} : memref<64x32xf32, #tpu.memory_space<vmem>>, vector<1x32xf32>,
    %564 = arith.index_cast %523 : i32 to index
    %c7_384 = arith.constant 7 : index
    %565 = memref.load %arg2[%564, %c7_384] : memref<8x8xi32, #tpu.memory_space<smem>>
    %566 = arith.index_cast %565 : i32 to index
    %c0_385 = arith.constant 0 : index
    %567 = vector.load %arg5[%566, %c0_385] : memref<100x32xf32, #tpu.memory_space<vmem>>, vector<1x32xf32>
    %c55 = arith.constant 55 : index
    %c0_386 = arith.constant 0 : index
    %568 = vector.load %arg11[%c55, %c0_386] : memref<64x32xf32, #tpu.memory_space<vmem>>, vector<1x32xf32>
    tpu.vector_store %arg11[%c55, %c0_386], %567 {strides = array<i32>} : memref<64x32xf32, #tpu.memory_space<vmem>>, vector<1x32xf32>,
    %569 = arith.index_cast %523 : i32 to index
    %c0_387 = arith.constant 0 : index
    %570 = memref.load %arg3[%569, %c0_387] : memref<8x8xi32, #tpu.memory_space<smem>>
    %571 = arith.index_cast %570 : i32 to index
    %c0_388 = arith.constant 0 : index
    %572 = vector.load %arg6[%571, %c0_388] : memref<100x32xf32, #tpu.memory_space<vmem>>, vector<1x32xf32>
    %c48_389 = arith.constant 48 : index
    %c0_390 = arith.constant 0 : index
    %573 = vector.load %arg12[%c48_389, %c0_390] : memref<64x32xf32, #tpu.memory_space<vmem>>, vector<1x32xf32>
    tpu.vector_store %arg12[%c48_389, %c0_390], %572 {strides = array<i32>} : memref<64x32xf32, #tpu.memory_space<vmem>>, vector<1x32xf32>,
    %574 = arith.index_cast %523 : i32 to index
    %c1_391 = arith.constant 1 : index
    %575 = memref.load %arg3[%574, %c1_391] : memref<8x8xi32, #tpu.memory_space<smem>>
    %576 = arith.index_cast %575 : i32 to index
    %c0_392 = arith.constant 0 : index
    %577 = vector.load %arg6[%576, %c0_392] : memref<100x32xf32, #tpu.memory_space<vmem>>, vector<1x32xf32>
    %c49_393 = arith.constant 49 : index
    %c0_394 = arith.constant 0 : index
    %578 = vector.load %arg12[%c49_393, %c0_394] : memref<64x32xf32, #tpu.memory_space<vmem>>, vector<1x32xf32>
    tpu.vector_store %arg12[%c49_393, %c0_394], %577 {strides = array<i32>} : memref<64x32xf32, #tpu.memory_space<vmem>>, vector<1x32xf32>,
    %579 = arith.index_cast %523 : i32 to index
    %c2_395 = arith.constant 2 : index
    %580 = memref.load %arg3[%579, %c2_395] : memref<8x8xi32, #tpu.memory_space<smem>>
    %581 = arith.index_cast %580 : i32 to index
    %c0_396 = arith.constant 0 : index
    %582 = vector.load %arg6[%581, %c0_396] : memref<100x32xf32, #tpu.memory_space<vmem>>, vector<1x32xf32>
    %c50_397 = arith.constant 50 : index
    %c0_398 = arith.constant 0 : index
    %583 = vector.load %arg12[%c50_397, %c0_398] : memref<64x32xf32, #tpu.memory_space<vmem>>, vector<1x32xf32>
    tpu.vector_store %arg12[%c50_397, %c0_398], %582 {strides = array<i32>} : memref<64x32xf32, #tpu.memory_space<vmem>>, vector<1x32xf32>,
    %584 = arith.index_cast %523 : i32 to index
    %c3_399 = arith.constant 3 : index
    %585 = memref.load %arg3[%584, %c3_399] : memref<8x8xi32, #tpu.memory_space<smem>>
    %586 = arith.index_cast %585 : i32 to index
    %c0_400 = arith.constant 0 : index
    %587 = vector.load %arg6[%586, %c0_400] : memref<100x32xf32, #tpu.memory_space<vmem>>, vector<1x32xf32>
    %c51_401 = arith.constant 51 : index
    %c0_402 = arith.constant 0 : index
    %588 = vector.load %arg12[%c51_401, %c0_402] : memref<64x32xf32, #tpu.memory_space<vmem>>, vector<1x32xf32>
    tpu.vector_store %arg12[%c51_401, %c0_402], %587 {strides = array<i32>} : memref<64x32xf32, #tpu.memory_space<vmem>>, vector<1x32xf32>,
    %589 = arith.index_cast %523 : i32 to index
    %c4_403 = arith.constant 4 : index
    %590 = memref.load %arg3[%589, %c4_403] : memref<8x8xi32, #tpu.memory_space<smem>>
    %591 = arith.index_cast %590 : i32 to index
    %c0_404 = arith.constant 0 : index
    %592 = vector.load %arg6[%591, %c0_404] : memref<100x32xf32, #tpu.memory_space<vmem>>, vector<1x32xf32>
    %c52_405 = arith.constant 52 : index
    %c0_406 = arith.constant 0 : index
    %593 = vector.load %arg12[%c52_405, %c0_406] : memref<64x32xf32, #tpu.memory_space<vmem>>, vector<1x32xf32>
    tpu.vector_store %arg12[%c52_405, %c0_406], %592 {strides = array<i32>} : memref<64x32xf32, #tpu.memory_space<vmem>>, vector<1x32xf32>,
    %594 = arith.index_cast %523 : i32 to index
    %c5_407 = arith.constant 5 : index
    %595 = memref.load %arg3[%594, %c5_407] : memref<8x8xi32, #tpu.memory_space<smem>>
    %596 = arith.index_cast %595 : i32 to index
    %c0_408 = arith.constant 0 : index
    %597 = vector.load %arg6[%596, %c0_408] : memref<100x32xf32, #tpu.memory_space<vmem>>, vector<1x32xf32>
    %c53_409 = arith.constant 53 : index
    %c0_410 = arith.constant 0 : index
    %598 = vector.load %arg12[%c53_409, %c0_410] : memref<64x32xf32, #tpu.memory_space<vmem>>, vector<1x32xf32>
    tpu.vector_store %arg12[%c53_409, %c0_410], %597 {strides = array<i32>} : memref<64x32xf32, #tpu.memory_space<vmem>>, vector<1x32xf32>,
    %599 = arith.index_cast %523 : i32 to index
    %c6_411 = arith.constant 6 : index
    %600 = memref.load %arg3[%599, %c6_411] : memref<8x8xi32, #tpu.memory_space<smem>>
    %601 = arith.index_cast %600 : i32 to index
    %c0_412 = arith.constant 0 : index
    %602 = vector.load %arg6[%601, %c0_412] : memref<100x32xf32, #tpu.memory_space<vmem>>, vector<1x32xf32>
    %c54_413 = arith.constant 54 : index
    %c0_414 = arith.constant 0 : index
    %603 = vector.load %arg12[%c54_413, %c0_414] : memref<64x32xf32, #tpu.memory_space<vmem>>, vector<1x32xf32>
    tpu.vector_store %arg12[%c54_413, %c0_414], %602 {strides = array<i32>} : memref<64x32xf32, #tpu.memory_space<vmem>>, vector<1x32xf32>,
    %604 = arith.index_cast %523 : i32 to index
    %c7_415 = arith.constant 7 : index
    %605 = memref.load %arg3[%604, %c7_415] : memref<8x8xi32, #tpu.memory_space<smem>>
    %606 = arith.index_cast %605 : i32 to index
    %c0_416 = arith.constant 0 : index
    %607 = vector.load %arg6[%606, %c0_416] : memref<100x32xf32, #tpu.memory_space<vmem>>, vector<1x32xf32>
    %c55_417 = arith.constant 55 : index
    %c0_418 = arith.constant 0 : index
    %608 = vector.load %arg12[%c55_417, %c0_418] : memref<64x32xf32, #tpu.memory_space<vmem>>, vector<1x32xf32>
    tpu.vector_store %arg12[%c55_417, %c0_418], %607 {strides = array<i32>} : memref<64x32xf32, #tpu.memory_space<vmem>>, vector<1x32xf32>,
    %c8_i32_419 = arith.constant 8 : i32
    %609 = arith.muli %arg0, %c8_i32_419 : i32
    %c7_i32 = arith.constant 7 : i32
    %610 = arith.addi %609, %c7_i32 : i32
    %611 = arith.index_cast %610 : i32 to index
    %612 = memref.load %arg1[%611] : memref<8xi32, #tpu.memory_space<smem>>
    %613 = arith.index_cast %612 : i32 to index
    %c0_420 = arith.constant 0 : index
    %614 = vector.load %arg4[%613, %c0_420] : memref<50x32xf32, #tpu.memory_space<vmem>>, vector<1x32xf32>
    %c7_421 = arith.constant 7 : index
    %c0_422 = arith.constant 0 : index
    %615 = vector.load %arg10[%c7_421, %c0_422] : memref<8x32xf32, #tpu.memory_space<vmem>>, vector<1x32xf32>
    tpu.vector_store %arg10[%c7_421, %c0_422], %614 {strides = array<i32>} : memref<8x32xf32, #tpu.memory_space<vmem>>, vector<1x32xf32>,
    %616 = arith.index_cast %610 : i32 to index
    %c0_423 = arith.constant 0 : index
    %617 = memref.load %arg2[%616, %c0_423] : memref<8x8xi32, #tpu.memory_space<smem>>
    %618 = arith.index_cast %617 : i32 to index
    %c0_424 = arith.constant 0 : index
    %619 = vector.load %arg5[%618, %c0_424] : memref<100x32xf32, #tpu.memory_space<vmem>>, vector<1x32xf32>
    %c56 = arith.constant 56 : index
    %c0_425 = arith.constant 0 : index
    %620 = vector.load %arg11[%c56, %c0_425] : memref<64x32xf32, #tpu.memory_space<vmem>>, vector<1x32xf32>
    tpu.vector_store %arg11[%c56, %c0_425], %619 {strides = array<i32>} : memref<64x32xf32, #tpu.memory_space<vmem>>, vector<1x32xf32>,
    %621 = arith.index_cast %610 : i32 to index
    %c1_426 = arith.constant 1 : index
    %622 = memref.load %arg2[%621, %c1_426] : memref<8x8xi32, #tpu.memory_space<smem>>
    %623 = arith.index_cast %622 : i32 to index
    %c0_427 = arith.constant 0 : index
    %624 = vector.load %arg5[%623, %c0_427] : memref<100x32xf32, #tpu.memory_space<vmem>>, vector<1x32xf32>
    %c57 = arith.constant 57 : index
    %c0_428 = arith.constant 0 : index
    %625 = vector.load %arg11[%c57, %c0_428] : memref<64x32xf32, #tpu.memory_space<vmem>>, vector<1x32xf32>
    tpu.vector_store %arg11[%c57, %c0_428], %624 {strides = array<i32>} : memref<64x32xf32, #tpu.memory_space<vmem>>, vector<1x32xf32>,
    %626 = arith.index_cast %610 : i32 to index
    %c2_429 = arith.constant 2 : index
    %627 = memref.load %arg2[%626, %c2_429] : memref<8x8xi32, #tpu.memory_space<smem>>
    %628 = arith.index_cast %627 : i32 to index
    %c0_430 = arith.constant 0 : index
    %629 = vector.load %arg5[%628, %c0_430] : memref<100x32xf32, #tpu.memory_space<vmem>>, vector<1x32xf32>
    %c58 = arith.constant 58 : index
    %c0_431 = arith.constant 0 : index
    %630 = vector.load %arg11[%c58, %c0_431] : memref<64x32xf32, #tpu.memory_space<vmem>>, vector<1x32xf32>
    tpu.vector_store %arg11[%c58, %c0_431], %629 {strides = array<i32>} : memref<64x32xf32, #tpu.memory_space<vmem>>, vector<1x32xf32>,
    %631 = arith.index_cast %610 : i32 to index
    %c3_432 = arith.constant 3 : index
    %632 = memref.load %arg2[%631, %c3_432] : memref<8x8xi32, #tpu.memory_space<smem>>
    %633 = arith.index_cast %632 : i32 to index
    %c0_433 = arith.constant 0 : index
    %634 = vector.load %arg5[%633, %c0_433] : memref<100x32xf32, #tpu.memory_space<vmem>>, vector<1x32xf32>
    %c59 = arith.constant 59 : index
    %c0_434 = arith.constant 0 : index
    %635 = vector.load %arg11[%c59, %c0_434] : memref<64x32xf32, #tpu.memory_space<vmem>>, vector<1x32xf32>
    tpu.vector_store %arg11[%c59, %c0_434], %634 {strides = array<i32>} : memref<64x32xf32, #tpu.memory_space<vmem>>, vector<1x32xf32>,
    %636 = arith.index_cast %610 : i32 to index
    %c4_435 = arith.constant 4 : index
    %637 = memref.load %arg2[%636, %c4_435] : memref<8x8xi32, #tpu.memory_space<smem>>
    %638 = arith.index_cast %637 : i32 to index
    %c0_436 = arith.constant 0 : index
    %639 = vector.load %arg5[%638, %c0_436] : memref<100x32xf32, #tpu.memory_space<vmem>>, vector<1x32xf32>
    %c60 = arith.constant 60 : index
    %c0_437 = arith.constant 0 : index
    %640 = vector.load %arg11[%c60, %c0_437] : memref<64x32xf32, #tpu.memory_space<vmem>>, vector<1x32xf32>
    tpu.vector_store %arg11[%c60, %c0_437], %639 {strides = array<i32>} : memref<64x32xf32, #tpu.memory_space<vmem>>, vector<1x32xf32>,
    %641 = arith.index_cast %610 : i32 to index
    %c5_438 = arith.constant 5 : index
    %642 = memref.load %arg2[%641, %c5_438] : memref<8x8xi32, #tpu.memory_space<smem>>
    %643 = arith.index_cast %642 : i32 to index
    %c0_439 = arith.constant 0 : index
    %644 = vector.load %arg5[%643, %c0_439] : memref<100x32xf32, #tpu.memory_space<vmem>>, vector<1x32xf32>
    %c61 = arith.constant 61 : index
    %c0_440 = arith.constant 0 : index
    %645 = vector.load %arg11[%c61, %c0_440] : memref<64x32xf32, #tpu.memory_space<vmem>>, vector<1x32xf32>
    tpu.vector_store %arg11[%c61, %c0_440], %644 {strides = array<i32>} : memref<64x32xf32, #tpu.memory_space<vmem>>, vector<1x32xf32>,
    %646 = arith.index_cast %610 : i32 to index
    %c6_441 = arith.constant 6 : index
    %647 = memref.load %arg2[%646, %c6_441] : memref<8x8xi32, #tpu.memory_space<smem>>
    %648 = arith.index_cast %647 : i32 to index
    %c0_442 = arith.constant 0 : index
    %649 = vector.load %arg5[%648, %c0_442] : memref<100x32xf32, #tpu.memory_space<vmem>>, vector<1x32xf32>
    %c62 = arith.constant 62 : index
    %c0_443 = arith.constant 0 : index
    %650 = vector.load %arg11[%c62, %c0_443] : memref<64x32xf32, #tpu.memory_space<vmem>>, vector<1x32xf32>
    tpu.vector_store %arg11[%c62, %c0_443], %649 {strides = array<i32>} : memref<64x32xf32, #tpu.memory_space<vmem>>, vector<1x32xf32>,
    %651 = arith.index_cast %610 : i32 to index
    %c7_444 = arith.constant 7 : index
    %652 = memref.load %arg2[%651, %c7_444] : memref<8x8xi32, #tpu.memory_space<smem>>
    %653 = arith.index_cast %652 : i32 to index
    %c0_445 = arith.constant 0 : index
    %654 = vector.load %arg5[%653, %c0_445] : memref<100x32xf32, #tpu.memory_space<vmem>>, vector<1x32xf32>
    %c63 = arith.constant 63 : index
    %c0_446 = arith.constant 0 : index
    %655 = vector.load %arg11[%c63, %c0_446] : memref<64x32xf32, #tpu.memory_space<vmem>>, vector<1x32xf32>
    tpu.vector_store %arg11[%c63, %c0_446], %654 {strides = array<i32>} : memref<64x32xf32, #tpu.memory_space<vmem>>, vector<1x32xf32>,
    %656 = arith.index_cast %610 : i32 to index
    %c0_447 = arith.constant 0 : index
    %657 = memref.load %arg3[%656, %c0_447] : memref<8x8xi32, #tpu.memory_space<smem>>
    %658 = arith.index_cast %657 : i32 to index
    %c0_448 = arith.constant 0 : index
    %659 = vector.load %arg6[%658, %c0_448] : memref<100x32xf32, #tpu.memory_space<vmem>>, vector<1x32xf32>
    %c56_449 = arith.constant 56 : index
    %c0_450 = arith.constant 0 : index
    %660 = vector.load %arg12[%c56_449, %c0_450] : memref<64x32xf32, #tpu.memory_space<vmem>>, vector<1x32xf32>
    tpu.vector_store %arg12[%c56_449, %c0_450], %659 {strides = array<i32>} : memref<64x32xf32, #tpu.memory_space<vmem>>, vector<1x32xf32>,
    %661 = arith.index_cast %610 : i32 to index
    %c1_451 = arith.constant 1 : index
    %662 = memref.load %arg3[%661, %c1_451] : memref<8x8xi32, #tpu.memory_space<smem>>
    %663 = arith.index_cast %662 : i32 to index
    %c0_452 = arith.constant 0 : index
    %664 = vector.load %arg6[%663, %c0_452] : memref<100x32xf32, #tpu.memory_space<vmem>>, vector<1x32xf32>
    %c57_453 = arith.constant 57 : index
    %c0_454 = arith.constant 0 : index
    %665 = vector.load %arg12[%c57_453, %c0_454] : memref<64x32xf32, #tpu.memory_space<vmem>>, vector<1x32xf32>
    tpu.vector_store %arg12[%c57_453, %c0_454], %664 {strides = array<i32>} : memref<64x32xf32, #tpu.memory_space<vmem>>, vector<1x32xf32>,
    %666 = arith.index_cast %610 : i32 to index
    %c2_455 = arith.constant 2 : index
    %667 = memref.load %arg3[%666, %c2_455] : memref<8x8xi32, #tpu.memory_space<smem>>
    %668 = arith.index_cast %667 : i32 to index
    %c0_456 = arith.constant 0 : index
    %669 = vector.load %arg6[%668, %c0_456] : memref<100x32xf32, #tpu.memory_space<vmem>>, vector<1x32xf32>
    %c58_457 = arith.constant 58 : index
    %c0_458 = arith.constant 0 : index
    %670 = vector.load %arg12[%c58_457, %c0_458] : memref<64x32xf32, #tpu.memory_space<vmem>>, vector<1x32xf32>
    tpu.vector_store %arg12[%c58_457, %c0_458], %669 {strides = array<i32>} : memref<64x32xf32, #tpu.memory_space<vmem>>, vector<1x32xf32>,
    %671 = arith.index_cast %610 : i32 to index
    %c3_459 = arith.constant 3 : index
    %672 = memref.load %arg3[%671, %c3_459] : memref<8x8xi32, #tpu.memory_space<smem>>
    %673 = arith.index_cast %672 : i32 to index
    %c0_460 = arith.constant 0 : index
    %674 = vector.load %arg6[%673, %c0_460] : memref<100x32xf32, #tpu.memory_space<vmem>>, vector<1x32xf32>
    %c59_461 = arith.constant 59 : index
    %c0_462 = arith.constant 0 : index
    %675 = vector.load %arg12[%c59_461, %c0_462] : memref<64x32xf32, #tpu.memory_space<vmem>>, vector<1x32xf32>
    tpu.vector_store %arg12[%c59_461, %c0_462], %674 {strides = array<i32>} : memref<64x32xf32, #tpu.memory_space<vmem>>, vector<1x32xf32>,
    %676 = arith.index_cast %610 : i32 to index
    %c4_463 = arith.constant 4 : index
    %677 = memref.load %arg3[%676, %c4_463] : memref<8x8xi32, #tpu.memory_space<smem>>
    %678 = arith.index_cast %677 : i32 to index
    %c0_464 = arith.constant 0 : index
    %679 = vector.load %arg6[%678, %c0_464] : memref<100x32xf32, #tpu.memory_space<vmem>>, vector<1x32xf32>
    %c60_465 = arith.constant 60 : index
    %c0_466 = arith.constant 0 : index
    %680 = vector.load %arg12[%c60_465, %c0_466] : memref<64x32xf32, #tpu.memory_space<vmem>>, vector<1x32xf32>
    tpu.vector_store %arg12[%c60_465, %c0_466], %679 {strides = array<i32>} : memref<64x32xf32, #tpu.memory_space<vmem>>, vector<1x32xf32>,
    %681 = arith.index_cast %610 : i32 to index
    %c5_467 = arith.constant 5 : index
    %682 = memref.load %arg3[%681, %c5_467] : memref<8x8xi32, #tpu.memory_space<smem>>
    %683 = arith.index_cast %682 : i32 to index
    %c0_468 = arith.constant 0 : index
    %684 = vector.load %arg6[%683, %c0_468] : memref<100x32xf32, #tpu.memory_space<vmem>>, vector<1x32xf32>
    %c61_469 = arith.constant 61 : index
    %c0_470 = arith.constant 0 : index
    %685 = vector.load %arg12[%c61_469, %c0_470] : memref<64x32xf32, #tpu.memory_space<vmem>>, vector<1x32xf32>
    tpu.vector_store %arg12[%c61_469, %c0_470], %684 {strides = array<i32>} : memref<64x32xf32, #tpu.memory_space<vmem>>, vector<1x32xf32>,
    %686 = arith.index_cast %610 : i32 to index
    %c6_471 = arith.constant 6 : index
    %687 = memref.load %arg3[%686, %c6_471] : memref<8x8xi32, #tpu.memory_space<smem>>
    %688 = arith.index_cast %687 : i32 to index
    %c0_472 = arith.constant 0 : index
    %689 = vector.load %arg6[%688, %c0_472] : memref<100x32xf32, #tpu.memory_space<vmem>>, vector<1x32xf32>
    %c62_473 = arith.constant 62 : index
    %c0_474 = arith.constant 0 : index
    %690 = vector.load %arg12[%c62_473, %c0_474] : memref<64x32xf32, #tpu.memory_space<vmem>>, vector<1x32xf32>
    tpu.vector_store %arg12[%c62_473, %c0_474], %689 {strides = array<i32>} : memref<64x32xf32, #tpu.memory_space<vmem>>, vector<1x32xf32>,
    %691 = arith.index_cast %610 : i32 to index
    %c7_475 = arith.constant 7 : index
    %692 = memref.load %arg3[%691, %c7_475] : memref<8x8xi32, #tpu.memory_space<smem>>
    %693 = arith.index_cast %692 : i32 to index
    %c0_476 = arith.constant 0 : index
    %694 = vector.load %arg6[%693, %c0_476] : memref<100x32xf32, #tpu.memory_space<vmem>>, vector<1x32xf32>
    %c63_477 = arith.constant 63 : index
    %c0_478 = arith.constant 0 : index
    %695 = vector.load %arg12[%c63_477, %c0_478] : memref<64x32xf32, #tpu.memory_space<vmem>>, vector<1x32xf32>
    tpu.vector_store %arg12[%c63_477, %c0_478], %694 {strides = array<i32>} : memref<64x32xf32, #tpu.memory_space<vmem>>, vector<1x32xf32>,
    %c0_479 = arith.constant 0 : index
    %c0_480 = arith.constant 0 : index
    %696 = vector.load %arg11[%c0_479, %c0_480] : memref<64x32xf32, #tpu.memory_space<vmem>>, vector<64x32xf32>
    %c0_481 = arith.constant 0 : index
    %c0_482 = arith.constant 0 : index
    %697 = vector.load %arg10[%c0_481, %c0_482] : memref<8x32xf32, #tpu.memory_space<vmem>>, vector<8x32xf32>
    %698 = vector.shape_cast %697 : vector<8x32xf32> to vector<8x1x32xf32>
    %699 = vector.shape_cast %698 : vector<8x1x32xf32> to vector<8x1x32xf32>
    %700 = vector.broadcast %699 : vector<8x1x32xf32> to vector<8x8x32xf32>
    %701 = vector.shape_cast %700 : vector<8x8x32xf32> to vector<64x32xf32>
    %702 = tpu.concatenate %696, %701 in 1 : vector<64x32xf32>, vector<64x32xf32> -> vector<64x64xf32>
    %c0_483 = arith.constant 0 : index
    %c0_484 = arith.constant 0 : index
    %703 = vector.load %arg7[%c0_483, %c0_484] : memref<65x32xf32, #tpu.memory_space<vmem>>, vector<64x32xf32>
    %c64 = arith.constant 64 : index
    %c0_485 = arith.constant 0 : index
    %704 = vector.load %arg7[%c64, %c0_485] : memref<65x32xf32, #tpu.memory_space<vmem>>, vector<1x32xf32>
    %cst = arith.constant dense<0.000000e+00> : vector<64x32xf32>
    %705 = tpu.matmul %702, %703, %cst {dimension_numbers = #tpu.dot_dimension_numbers<[1], [0], [0], [1], [0, 0, 1, 1], [], []>} : vector<64x64xf32>, vector<64x32xf32>, vector<64x32xf32> -> vector<64x32xf32>
    %706 = vector.broadcast %704 : vector<1x32xf32> to vector<64x32xf32>
    %707 = arith.addf %705, %706 : vector<64x32xf32>
    %708 = arith.negf %707 : vector<64x32xf32>
    %709 = math.exp %708 : vector<64x32xf32>
    %cst_486 = arith.constant 1.000000e+00 : f32
    %710 = vector.broadcast %cst_486 : f32 to vector<64x32xf32>
    %711 = arith.addf %710, %709 : vector<64x32xf32>
    %712 = arith.divf %710, %711 : vector<64x32xf32>
    %713 = arith.mulf %696, %712 : vector<64x32xf32>
    %c0_487 = arith.constant 0 : index
    %c0_488 = arith.constant 0 : index
    %714 = vector.load %arg8[%c0_487, %c0_488] : memref<9x32xf32, #tpu.memory_space<vmem>>, vector<8x32xf32>
    %c8_489 = arith.constant 8 : index
    %c0_490 = arith.constant 0 : index
    %715 = vector.load %arg8[%c8_489, %c0_490] : memref<9x32xf32, #tpu.memory_space<vmem>>, vector<1x32xf32>
    %716 = vector.shape_cast %714 : vector<8x32xf32> to vector<1x8x32xf32>
    %717 = vector.shape_cast %716 : vector<1x8x32xf32> to vector<1x8x32xf32>
    %718 = vector.broadcast %717 : vector<1x8x32xf32> to vector<8x8x32xf32>
    %719 = vector.shape_cast %718 : vector<8x8x32xf32> to vector<64x32xf32>
    %720 = vector.broadcast %715 : vector<1x32xf32> to vector<64x32xf32>
    %721 = arith.mulf %713, %720 : vector<64x32xf32>
    %cst_491 = arith.constant dense<0.000000e+00> : vector<64xf32>
    %722 = vector.multi_reduction <add>, %721, %cst_491 [1] : vector<64x32xf32> to vector<64xf32>
    %723 = vector.shape_cast %722 : vector<64xf32> to vector<64x1xf32>
    %724 = arith.mulf %701, %719 : vector<64x32xf32>
    %cst_492 = arith.constant dense<0.000000e+00> : vector<64xf32>
    %725 = vector.multi_reduction <add>, %724, %cst_492 [1] : vector<64x32xf32> to vector<64xf32>
    %726 = vector.shape_cast %725 : vector<64xf32> to vector<64x1xf32>
    %727 = arith.addf %723, %726 : vector<64x1xf32>
    %728 = arith.negf %727 : vector<64x1xf32>
    %729 = math.exp %728 : vector<64x1xf32>
    %cst_493 = arith.constant 1.000000e+00 : f32
    %730 = vector.broadcast %cst_493 : f32 to vector<64x1xf32>
    %731 = arith.addf %730, %729 : vector<64x1xf32>
    %732 = arith.divf %730, %731 : vector<64x1xf32>
    %733 = vector.broadcast %732 : vector<64x1xf32> to vector<64x32xf32>
    %734 = arith.mulf %713, %733 : vector<64x32xf32>
    %735 = vector.extract_strided_slice %734 {offsets = [0, 0], sizes = [8, 32], strides = [1, 1]} : vector<64x32xf32> to vector<8x32xf32>
    %cst_494 = arith.constant dense<0.000000e+00> : vector<32xf32>
    %736 = vector.multi_reduction <add>, %735, %cst_494 [0] : vector<8x32xf32> to vector<32xf32>
    %737 = vector.shape_cast %736 : vector<32xf32> to vector<1x32xf32>
    %738 = vector.extract_strided_slice %732 {offsets = [0, 0], sizes = [8, 1], strides = [1, 1]} : vector<64x1xf32> to vector<8x1xf32>
    %cst_495 = arith.constant dense<0.000000e+00> : vector<1xf32>
    %739 = vector.multi_reduction <add>, %738, %cst_495 [0] : vector<8x1xf32> to vector<1xf32>
    %740 = vector.shape_cast %739 : vector<1xf32> to vector<1x1xf32>
    %741 = vector.extract_strided_slice %696 {offsets = [0, 0], sizes = [8, 32], strides = [1, 1]} : vector<64x32xf32> to vector<8x32xf32>
    %cst_496 = arith.constant dense<0.000000e+00> : vector<32xf32>
    %742 = vector.multi_reduction <add>, %741, %cst_496 [0] : vector<8x32xf32> to vector<32xf32>
    %743 = vector.shape_cast %742 : vector<32xf32> to vector<1x32xf32>
    %744 = vector.extract_strided_slice %697 {offsets = [0, 0], sizes = [1, 32], strides = [1, 1]} : vector<8x32xf32> to vector<1x32xf32>
    %745 = vector.broadcast %740 : vector<1x1xf32> to vector<1x32xf32>
    %746 = arith.divf %737, %745 : vector<1x32xf32>
    %747 = arith.addf %744, %746 : vector<1x32xf32>
    %748 = arith.addf %747, %743 : vector<1x32xf32>
    %749 = vector.extract_strided_slice %734 {offsets = [8, 0], sizes = [8, 32], strides = [1, 1]} : vector<64x32xf32> to vector<8x32xf32>
    %cst_497 = arith.constant dense<0.000000e+00> : vector<32xf32>
    %750 = vector.multi_reduction <add>, %749, %cst_497 [0] : vector<8x32xf32> to vector<32xf32>
    %751 = vector.shape_cast %750 : vector<32xf32> to vector<1x32xf32>
    %752 = vector.extract_strided_slice %732 {offsets = [8, 0], sizes = [8, 1], strides = [1, 1]} : vector<64x1xf32> to vector<8x1xf32>
    %cst_498 = arith.constant dense<0.000000e+00> : vector<1xf32>
    %753 = vector.multi_reduction <add>, %752, %cst_498 [0] : vector<8x1xf32> to vector<1xf32>
    %754 = vector.shape_cast %753 : vector<1xf32> to vector<1x1xf32>
    %755 = vector.extract_strided_slice %696 {offsets = [8, 0], sizes = [8, 32], strides = [1, 1]} : vector<64x32xf32> to vector<8x32xf32>
    %cst_499 = arith.constant dense<0.000000e+00> : vector<32xf32>
    %756 = vector.multi_reduction <add>, %755, %cst_499 [0] : vector<8x32xf32> to vector<32xf32>
    %757 = vector.shape_cast %756 : vector<32xf32> to vector<1x32xf32>
    %758 = vector.extract_strided_slice %697 {offsets = [1, 0], sizes = [1, 32], strides = [1, 1]} : vector<8x32xf32> to vector<1x32xf32>
    %759 = vector.broadcast %754 : vector<1x1xf32> to vector<1x32xf32>
    %760 = arith.divf %751, %759 : vector<1x32xf32>
    %761 = arith.addf %758, %760 : vector<1x32xf32>
    %762 = arith.addf %761, %757 : vector<1x32xf32>
    %763 = vector.extract_strided_slice %734 {offsets = [16, 0], sizes = [8, 32], strides = [1, 1]} : vector<64x32xf32> to vector<8x32xf32>
    %cst_500 = arith.constant dense<0.000000e+00> : vector<32xf32>
    %764 = vector.multi_reduction <add>, %763, %cst_500 [0] : vector<8x32xf32> to vector<32xf32>
    %765 = vector.shape_cast %764 : vector<32xf32> to vector<1x32xf32>
    %766 = vector.extract_strided_slice %732 {offsets = [16, 0], sizes = [8, 1], strides = [1, 1]} : vector<64x1xf32> to vector<8x1xf32>
    %cst_501 = arith.constant dense<0.000000e+00> : vector<1xf32>
    %767 = vector.multi_reduction <add>, %766, %cst_501 [0] : vector<8x1xf32> to vector<1xf32>
    %768 = vector.shape_cast %767 : vector<1xf32> to vector<1x1xf32>
    %769 = vector.extract_strided_slice %696 {offsets = [16, 0], sizes = [8, 32], strides = [1, 1]} : vector<64x32xf32> to vector<8x32xf32>
    %cst_502 = arith.constant dense<0.000000e+00> : vector<32xf32>
    %770 = vector.multi_reduction <add>, %769, %cst_502 [0] : vector<8x32xf32> to vector<32xf32>
    %771 = vector.shape_cast %770 : vector<32xf32> to vector<1x32xf32>
    %772 = vector.extract_strided_slice %697 {offsets = [2, 0], sizes = [1, 32], strides = [1, 1]} : vector<8x32xf32> to vector<1x32xf32>
    %773 = vector.broadcast %768 : vector<1x1xf32> to vector<1x32xf32>
    %774 = arith.divf %765, %773 : vector<1x32xf32>
    %775 = arith.addf %772, %774 : vector<1x32xf32>
    %776 = arith.addf %775, %771 : vector<1x32xf32>
    %777 = vector.extract_strided_slice %734 {offsets = [24, 0], sizes = [8, 32], strides = [1, 1]} : vector<64x32xf32> to vector<8x32xf32>
    %cst_503 = arith.constant dense<0.000000e+00> : vector<32xf32>
    %778 = vector.multi_reduction <add>, %777, %cst_503 [0] : vector<8x32xf32> to vector<32xf32>
    %779 = vector.shape_cast %778 : vector<32xf32> to vector<1x32xf32>
    %780 = vector.extract_strided_slice %732 {offsets = [24, 0], sizes = [8, 1], strides = [1, 1]} : vector<64x1xf32> to vector<8x1xf32>
    %cst_504 = arith.constant dense<0.000000e+00> : vector<1xf32>
    %781 = vector.multi_reduction <add>, %780, %cst_504 [0] : vector<8x1xf32> to vector<1xf32>
    %782 = vector.shape_cast %781 : vector<1xf32> to vector<1x1xf32>
    %783 = vector.extract_strided_slice %696 {offsets = [24, 0], sizes = [8, 32], strides = [1, 1]} : vector<64x32xf32> to vector<8x32xf32>
    %cst_505 = arith.constant dense<0.000000e+00> : vector<32xf32>
    %784 = vector.multi_reduction <add>, %783, %cst_505 [0] : vector<8x32xf32> to vector<32xf32>
    %785 = vector.shape_cast %784 : vector<32xf32> to vector<1x32xf32>
    %786 = vector.extract_strided_slice %697 {offsets = [3, 0], sizes = [1, 32], strides = [1, 1]} : vector<8x32xf32> to vector<1x32xf32>
    %787 = vector.broadcast %782 : vector<1x1xf32> to vector<1x32xf32>
    %788 = arith.divf %779, %787 : vector<1x32xf32>
    %789 = arith.addf %786, %788 : vector<1x32xf32>
    %790 = arith.addf %789, %785 : vector<1x32xf32>
    %791 = vector.extract_strided_slice %734 {offsets = [32, 0], sizes = [8, 32], strides = [1, 1]} : vector<64x32xf32> to vector<8x32xf32>
    %cst_506 = arith.constant dense<0.000000e+00> : vector<32xf32>
    %792 = vector.multi_reduction <add>, %791, %cst_506 [0] : vector<8x32xf32> to vector<32xf32>
    %793 = vector.shape_cast %792 : vector<32xf32> to vector<1x32xf32>
    %794 = vector.extract_strided_slice %732 {offsets = [32, 0], sizes = [8, 1], strides = [1, 1]} : vector<64x1xf32> to vector<8x1xf32>
    %cst_507 = arith.constant dense<0.000000e+00> : vector<1xf32>
    %795 = vector.multi_reduction <add>, %794, %cst_507 [0] : vector<8x1xf32> to vector<1xf32>
    %796 = vector.shape_cast %795 : vector<1xf32> to vector<1x1xf32>
    %797 = vector.extract_strided_slice %696 {offsets = [32, 0], sizes = [8, 32], strides = [1, 1]} : vector<64x32xf32> to vector<8x32xf32>
    %cst_508 = arith.constant dense<0.000000e+00> : vector<32xf32>
    %798 = vector.multi_reduction <add>, %797, %cst_508 [0] : vector<8x32xf32> to vector<32xf32>
    %799 = vector.shape_cast %798 : vector<32xf32> to vector<1x32xf32>
    %800 = vector.extract_strided_slice %697 {offsets = [4, 0], sizes = [1, 32], strides = [1, 1]} : vector<8x32xf32> to vector<1x32xf32>
    %801 = vector.broadcast %796 : vector<1x1xf32> to vector<1x32xf32>
    %802 = arith.divf %793, %801 : vector<1x32xf32>
    %803 = arith.addf %800, %802 : vector<1x32xf32>
    %804 = arith.addf %803, %799 : vector<1x32xf32>
    %805 = vector.extract_strided_slice %734 {offsets = [40, 0], sizes = [8, 32], strides = [1, 1]} : vector<64x32xf32> to vector<8x32xf32>
    %cst_509 = arith.constant dense<0.000000e+00> : vector<32xf32>
    %806 = vector.multi_reduction <add>, %805, %cst_509 [0] : vector<8x32xf32> to vector<32xf32>
    %807 = vector.shape_cast %806 : vector<32xf32> to vector<1x32xf32>
    %808 = vector.extract_strided_slice %732 {offsets = [40, 0], sizes = [8, 1], strides = [1, 1]} : vector<64x1xf32> to vector<8x1xf32>
    %cst_510 = arith.constant dense<0.000000e+00> : vector<1xf32>
    %809 = vector.multi_reduction <add>, %808, %cst_510 [0] : vector<8x1xf32> to vector<1xf32>
    %810 = vector.shape_cast %809 : vector<1xf32> to vector<1x1xf32>
    %811 = vector.extract_strided_slice %696 {offsets = [40, 0], sizes = [8, 32], strides = [1, 1]} : vector<64x32xf32> to vector<8x32xf32>
    %cst_511 = arith.constant dense<0.000000e+00> : vector<32xf32>
    %812 = vector.multi_reduction <add>, %811, %cst_511 [0] : vector<8x32xf32> to vector<32xf32>
    %813 = vector.shape_cast %812 : vector<32xf32> to vector<1x32xf32>
    %814 = vector.extract_strided_slice %697 {offsets = [5, 0], sizes = [1, 32], strides = [1, 1]} : vector<8x32xf32> to vector<1x32xf32>
    %815 = vector.broadcast %810 : vector<1x1xf32> to vector<1x32xf32>
    %816 = arith.divf %807, %815 : vector<1x32xf32>
    %817 = arith.addf %814, %816 : vector<1x32xf32>
    %818 = arith.addf %817, %813 : vector<1x32xf32>
    %819 = vector.extract_strided_slice %734 {offsets = [48, 0], sizes = [8, 32], strides = [1, 1]} : vector<64x32xf32> to vector<8x32xf32>
    %cst_512 = arith.constant dense<0.000000e+00> : vector<32xf32>
    %820 = vector.multi_reduction <add>, %819, %cst_512 [0] : vector<8x32xf32> to vector<32xf32>
    %821 = vector.shape_cast %820 : vector<32xf32> to vector<1x32xf32>
    %822 = vector.extract_strided_slice %732 {offsets = [48, 0], sizes = [8, 1], strides = [1, 1]} : vector<64x1xf32> to vector<8x1xf32>
    %cst_513 = arith.constant dense<0.000000e+00> : vector<1xf32>
    %823 = vector.multi_reduction <add>, %822, %cst_513 [0] : vector<8x1xf32> to vector<1xf32>
    %824 = vector.shape_cast %823 : vector<1xf32> to vector<1x1xf32>
    %825 = vector.extract_strided_slice %696 {offsets = [48, 0], sizes = [8, 32], strides = [1, 1]} : vector<64x32xf32> to vector<8x32xf32>
    %cst_514 = arith.constant dense<0.000000e+00> : vector<32xf32>
    %826 = vector.multi_reduction <add>, %825, %cst_514 [0] : vector<8x32xf32> to vector<32xf32>
    %827 = vector.shape_cast %826 : vector<32xf32> to vector<1x32xf32>
    %828 = vector.extract_strided_slice %697 {offsets = [6, 0], sizes = [1, 32], strides = [1, 1]} : vector<8x32xf32> to vector<1x32xf32>
    %829 = vector.broadcast %824 : vector<1x1xf32> to vector<1x32xf32>
    %830 = arith.divf %821, %829 : vector<1x32xf32>
    %831 = arith.addf %828, %830 : vector<1x32xf32>
    %832 = arith.addf %831, %827 : vector<1x32xf32>
    %833 = vector.extract_strided_slice %734 {offsets = [56, 0], sizes = [8, 32], strides = [1, 1]} : vector<64x32xf32> to vector<8x32xf32>
    %cst_515 = arith.constant dense<0.000000e+00> : vector<32xf32>
    %834 = vector.multi_reduction <add>, %833, %cst_515 [0] : vector<8x32xf32> to vector<32xf32>
    %835 = vector.shape_cast %834 : vector<32xf32> to vector<1x32xf32>
    %836 = vector.extract_strided_slice %732 {offsets = [56, 0], sizes = [8, 1], strides = [1, 1]} : vector<64x1xf32> to vector<8x1xf32>
    %cst_516 = arith.constant dense<0.000000e+00> : vector<1xf32>
    %837 = vector.multi_reduction <add>, %836, %cst_516 [0] : vector<8x1xf32> to vector<1xf32>
    %838 = vector.shape_cast %837 : vector<1xf32> to vector<1x1xf32>
    %839 = vector.extract_strided_slice %696 {offsets = [56, 0], sizes = [8, 32], strides = [1, 1]} : vector<64x32xf32> to vector<8x32xf32>
    %cst_517 = arith.constant dense<0.000000e+00> : vector<32xf32>
    %840 = vector.multi_reduction <add>, %839, %cst_517 [0] : vector<8x32xf32> to vector<32xf32>
    %841 = vector.shape_cast %840 : vector<32xf32> to vector<1x32xf32>
    %842 = vector.extract_strided_slice %697 {offsets = [7, 0], sizes = [1, 32], strides = [1, 1]} : vector<8x32xf32> to vector<1x32xf32>
    %843 = vector.broadcast %838 : vector<1x1xf32> to vector<1x32xf32>
    %844 = arith.divf %835, %843 : vector<1x32xf32>
    %845 = arith.addf %842, %844 : vector<1x32xf32>
    %846 = arith.addf %845, %841 : vector<1x32xf32>
    %847 = tpu.concatenate %748, %762, %776, %790, %804, %818, %832, %846 in 0 : vector<1x32xf32>, vector<1x32xf32>, vector<1x32xf32>, vector<1x32xf32>, vector<1x32xf32>, vector<1x32xf32>, vector<1x32xf32>, vector<1x32xf32> -> vector<8x32xf32>
    %c0_518 = arith.constant 0 : index
    %c0_519 = arith.constant 0 : index
    %848 = vector.load %arg12[%c0_518, %c0_519] : memref<64x32xf32, #tpu.memory_space<vmem>>, vector<64x32xf32>
    %849 = vector.shape_cast %848 : vector<64x32xf32> to vector<8x8x32xf32>
    %850 = vector.shape_cast %847 : vector<8x32xf32> to vector<8x1x32xf32>
    %851 = vector.shape_cast %850 : vector<8x1x32xf32> to vector<8x1x32xf32>
    %852 = vector.broadcast %851 : vector<8x1x32xf32> to vector<8x8x32xf32>
    %853 = arith.mulf %852, %849 : vector<8x8x32xf32>
    %cst_520 = arith.constant dense<0.000000e+00> : vector<8x8xf32>
    %854 = vector.multi_reduction <add>, %853, %cst_520 [2] : vector<8x8x32xf32> to vector<8x8xf32>
    %cst_521 = arith.constant 0.000000e+00 : f32
    %855 = vector.broadcast %cst_521 : f32 to vector<8x120xf32>
    %856 = tpu.concatenate %854, %855 in 1 : vector<8x8xf32>, vector<8x120xf32> -> vector<8x128xf32>
    %c0_522 = arith.constant 0 : index
    %c0_523 = arith.constant 0 : index
    %857 = vector.load %arg9[%c0_522, %c0_523] : memref<8x128xf32, #tpu.memory_space<vmem>>, vector<8x128xf32>
    tpu.vector_store %arg9[%c0_522, %c0_523], %856 {strides = array<i32>} : memref<8x128xf32, #tpu.memory_space<vmem>>, vector<8x128xf32>,
    return
  }
  func.func @transform_0(%arg0: i32, %arg1: memref<8xi32, #tpu.memory_space<smem>>, %arg2: memref<8x8xi32, #tpu.memory_space<smem>>, %arg3: memref<8x8xi32, #tpu.memory_space<smem>>) -> (i32, i32) {
    %c0_i32 = arith.constant 0 : i32
    %c0_i32_0 = arith.constant 0 : i32
    %c0_i32_1 = arith.constant 0 : i32
    return %c0_i32, %c0_i32_0 : i32, i32
  }
  func.func @transform_1(%arg0: i32, %arg1: memref<8xi32, #tpu.memory_space<smem>>, %arg2: memref<8x8xi32, #tpu.memory_space<smem>>, %arg3: memref<8x8xi32, #tpu.memory_space<smem>>) -> (i32, i32) {
    %c0_i32 = arith.constant 0 : i32
    %c0_i32_0 = arith.constant 0 : i32
    %c0_i32_1 = arith.constant 0 : i32
    return %c0_i32, %c0_i32_0 : i32, i32
  }
  func.func @transform_2(%arg0: i32, %arg1: memref<8xi32, #tpu.memory_space<smem>>, %arg2: memref<8x8xi32, #tpu.memory_space<smem>>, %arg3: memref<8x8xi32, #tpu.memory_space<smem>>) -> (i32, i32) {
    %c0_i32 = arith.constant 0 : i32
    %c0_i32_0 = arith.constant 0 : i32
    %c0_i32_1 = arith.constant 0 : i32
    return %c0_i32, %c0_i32_0 : i32, i32
  }
  func.func @transform_3(%arg0: i32, %arg1: memref<8xi32, #tpu.memory_space<smem>>, %arg2: memref<8x8xi32, #tpu.memory_space<smem>>, %arg3: memref<8x8xi32, #tpu.memory_space<smem>>) -> (i32, i32) {
    %c0_i32 = arith.constant 0 : i32
    %c0_i32_0 = arith.constant 0 : i32
    %c0_i32_1 = arith.constant 0 : i32
    return %c0_i32, %c0_i32_0 : i32, i32
  }
  func.func @transform_4(%arg0: i32, %arg1: memref<8xi32, #tpu.memory_space<smem>>, %arg2: memref<8x8xi32, #tpu.memory_space<smem>>, %arg3: memref<8x8xi32, #tpu.memory_space<smem>>) -> (i32, i32) {
    %c0_i32 = arith.constant 0 : i32
    %c0_i32_0 = arith.constant 0 : i32
    %c0_i32_1 = arith.constant 0 : i32
    return %c0_i32, %c0_i32_0 : i32, i32
  }
  func.func @transform_5(%arg0: i32, %arg1: memref<8xi32, #tpu.memory_space<smem>>, %arg2: memref<8x8xi32, #tpu.memory_space<smem>>, %arg3: memref<8x8xi32, #tpu.memory_space<smem>>) -> (i32, i32) {
    %c0_i32 = arith.constant 0 : i32
    %c0_i32_0 = arith.constant 0 : i32
    return %arg0, %c0_i32 : i32, i32
  }
}

</mosaic_0001>

<llo_original>
// kernel: tpu_custom_call.1
$region0: #{tpu_custom_call.1}
  #allocation0 [shape = 'u32[]', space=smem, size = 0x4, offset = 0x4, fixed_abs, tag = 'smem constant byte address 0x4 - core index']
  #allocation1 [shape = 'u32[72,128]{1,0:T(1,128)}', space=vmem, size = 0x9000, scoped, tag = 'internal scratch']
  #allocation2 [shape = 'f32[8,32]{1,0:T(8,128)}', space=vmem, size = 0x1000, scoped, tag = 'scratch operand']
  #allocation3 [shape = 'f32[64,32]{1,0:T(8,128)}', space=vmem, size = 0x8000, scoped, tag = 'scratch operand']
  #allocation4 [shape = 'f32[64,32]{1,0:T(8,128)}', space=vmem, size = 0x8000, scoped, tag = 'scratch operand']
  #allocation5 [shape = 's32[1]{0}', space=sflag, size = 0x4, scoped, tag = 'scoped memory for tpu_custom_call.1']
  #allocation6 [shape = 'u8[512]{0}', space=smem, size = 0x200, scoped, tag = 'prefetched SMEM operand 0']
  #allocation7 [shape = 'u8[4096]{0}', space=smem, size = 0x1000, scoped, tag = 'prefetched SMEM operand 1']
  #allocation8 [shape = 'u8[4096]{0}', space=smem, size = 0x1000, scoped, tag = 'prefetched SMEM operand 2']
  %s0 = inlined_call_operand.vmem [shape: s32[8], index: 0, kind: input, shape index: {}]
  %s1 = inlined_call_operand.vmem [shape: s32[8,8], index: 1, kind: input, shape index: {}]
  %s2 = inlined_call_operand.vmem [shape: s32[8,8], index: 2, kind: input, shape index: {}]
  %s3 = inlined_call_operand.vmem [shape: f32[50,32], index: 3, kind: input, shape index: {}]
  %s4 = inlined_call_operand.vmem [shape: f32[100,32], index: 4, kind: input, shape index: {}]
  %s5 = inlined_call_operand.vmem [shape: f32[100,32], index: 5, kind: input, shape index: {}]
  %s6 = inlined_call_operand.vmem [shape: f32[65,32], index: 6, kind: input, shape index: {}]
  %s7 = inlined_call_operand.vmem [shape: f32[9,32], index: 7, kind: input, shape index: {}]
  %s8 = inlined_call_operand.hbm [shape: f32[8,128], index: 8, kind: output, shape index: {}]
  %s9 = sld [smem:[#allocation0]]
  $region30: #{tpu_custom_call.1} parent=0
    _
  %s11 = ssub.s32 1, %s9
  %s12 = scalar_select 0, %s11, %s9
  %s14 = sshll.u32 %s0, 4
  %s15 = int_to_ptr.vmem [resolvable:$true] %s14
  %17 = dma.vmem_to_smem %s15, 16, [#allocation6], [#allocation5]
  %s19 = sshll.u32 %s1, 4
  %s20 = int_to_ptr.vmem [resolvable:$true] %s19
  %22 = dma.vmem_to_smem %s20, 128, [#allocation7], [#allocation5]
  %s24 = sshll.u32 %s2, 4
  %s25 = int_to_ptr.vmem [resolvable:$true] %s24
  %27 = dma.vmem_to_smem %s25, 128, [#allocation8], [#allocation5]
  %29 = dma.done [#allocation5], 272
  %30 = sfence
  $region1: #{tpu_custom_call.1} parent=0
    #allocation9 [shape = 'u8[4096]{0}', space=vmem, size = 0x1000, scoped, tag = 'output window, operand 0, single buffered']
    #allocation10 [shape = 's32[1]{0}', space=sflag, size = 0x4, scoped, tag = 'scoped memory for tpu_custom_call.1']
    %31 = vsyncpa [#allocation10], 0
    // Predicated region
    $region2: #{tpu_custom_call.1} parent=1 // pred_check
      _
    $region3: #{tpu_custom_call.1} parent=1 // pred_check_branch
      %33 = sbr.rel (0) target = $region5
    $region4: #{tpu_custom_call.1} parent=1 // pred_region
      _
    $region5: #{tpu_custom_call.1} parent=1 // pred_fallthru
      _
    // Predicated region
    $region6: #{tpu_custom_call.1} parent=1 // pred_check
      _
    $region7: #{tpu_custom_call.1} parent=1 // pred_check_branch
      %35 = sbr.rel (0) target = $region9
    $region8: #{tpu_custom_call.1} parent=1 // pred_region
      _
    $region9: #{tpu_custom_call.1} parent=1 // pred_fallthru
      _
    // Predicated region
    $region10: #{tpu_custom_call.1} parent=1 // pred_check
      _
    $region11: #{tpu_custom_call.1} parent=1 // pred_check_branch
      %37 = sbr.rel (0) target = $region13
    $region12: #{tpu_custom_call.1} parent=1 // pred_region
      _
    $region13: #{tpu_custom_call.1} parent=1 // pred_fallthru
      _
    // Predicated region
    $region14: #{tpu_custom_call.1} parent=1 // pred_check
      _
    $region15: #{tpu_custom_call.1} parent=1 // pred_check_branch
      %39 = sbr.rel (0) target = $region17
    $region16: #{tpu_custom_call.1} parent=1 // pred_region
      _
    $region17: #{tpu_custom_call.1} parent=1 // pred_fallthru
      _
    // Predicated region
    $region18: #{tpu_custom_call.1} parent=1 // pred_check
      _
    $region19: #{tpu_custom_call.1} parent=1 // pred_check_branch
      %41 = sbr.rel (0) target = $region21
    $region20: #{tpu_custom_call.1} parent=1 // pred_region
      _
    $region21: #{tpu_custom_call.1} parent=1 // pred_fallthru
      _
    %s42 = smul.u32 0, 8
    %s43 = sld [smem:[#allocation6 + %s42]]
    %s44 = scalar_lea.vmem %s3, %s43
    %v45 = vld [vmem:[%s44] sm:$0x1]
    %vm46 = vcmask 253952
    %47 = vst.msk [vmem:[#allocation2] sm:$0x1] %vm46, %v45
    %s48 = smul.u32 %s42, 128
    %s49 = sld [smem:[#allocation7 + %s48]]
    %s50 = scalar_lea.vmem %s4, %s49
    %v51 = vld [vmem:[%s50] sm:$0x1]
    %52 = vst.msk [vmem:[#allocation3] sm:$0x1] %vm46, %v51
    %s53 = sadd.s32 %s48, 1
    %s54 = sld [smem:[#allocation7 + %s53]]
    %s55 = scalar_lea.vmem %s4, %s54
    %v56 = vld [vmem:[%s55] sm:$0x1]
    %57 = vst.msk [vmem:[#allocation3 + $0x1] sm:$0x1] %vm46, %v56
    %s58 = sadd.s32 %s48, 2
    %s59 = sld [smem:[#allocation7 + %s58]]
    %s60 = scalar_lea.vmem %s4, %s59
    %v61 = vld [vmem:[%s60] sm:$0x1]
    %62 = vst.msk [vmem:[#allocation3 + $0x2] sm:$0x1] %vm46, %v61
    %s63 = sadd.s32 %s48, 3
    %s64 = sld [smem:[#allocation7 + %s63]]
    %s65 = scalar_lea.vmem %s4, %s64
    %v66 = vld [vmem:[%s65] sm:$0x1]
    %67 = vst.msk [vmem:[#allocation3 + $0x3] sm:$0x1] %vm46, %v66
    %s68 = sadd.s32 %s48, 4
    %s69 = sld [smem:[#allocation7 + %s68]]
    %s70 = scalar_lea.vmem %s4, %s69
    %v71 = vld [vmem:[%s70] sm:$0x1]
    %72 = vst.msk [vmem:[#allocation3 + $0x4] sm:$0x1] %vm46, %v71
    %s73 = sadd.s32 %s48, 5
    %s74 = sld [smem:[#allocation7 + %s73]]
    %s75 = scalar_lea.vmem %s4, %s74
    %v76 = vld [vmem:[%s75] sm:$0x1]
    %77 = vst.msk [vmem:[#allocation3 + $0x5] sm:$0x1] %vm46, %v76
    %s78 = sadd.s32 %s48, 6
    %s79 = sld [smem:[#allocation7 + %s78]]
    %s80 = scalar_lea.vmem %s4, %s79
    %v81 = vld [vmem:[%s80] sm:$0x1]
    %82 = vst.msk [vmem:[#allocation3 + $0x6] sm:$0x1] %vm46, %v81
    %s83 = sadd.s32 %s48, 7
    %s84 = sld [smem:[#allocation7 + %s83]]
    %s85 = scalar_lea.vmem %s4, %s84
    %v86 = vld [vmem:[%s85] sm:$0x1]
    %87 = vst.msk [vmem:[#allocation3 + $0x7] sm:$0x1] %vm46, %v86
    %s88 = sld [smem:[#allocation8 + %s48]]
    %s89 = scalar_lea.vmem %s5, %s88
    %v90 = vld [vmem:[%s89] sm:$0x1]
    %91 = vst.msk [vmem:[#allocation4] sm:$0x1] %vm46, %v90
    %s92 = sld [smem:[#allocation8 + %s53]]
    %s93 = scalar_lea.vmem %s5, %s92
    %v94 = vld [vmem:[%s93] sm:$0x1]
    %95 = vst.msk [vmem:[#allocation4 + $0x1] sm:$0x1] %vm46, %v94
    %s96 = sld [smem:[#allocation8 + %s58]]
    %s97 = scalar_lea.vmem %s5, %s96
    %v98 = vld [vmem:[%s97] sm:$0x1]
    %99 = vst.msk [vmem:[#allocation4 + $0x2] sm:$0x1] %vm46, %v98
    %s100 = sld [smem:[#allocation8 + %s63]]
    %s101 = scalar_lea.vmem %s5, %s100
    %v102 = vld [vmem:[%s101] sm:$0x1]
    %103 = vst.msk [vmem:[#allocation4 + $0x3] sm:$0x1] %vm46, %v102
    %s104 = sld [smem:[#allocation8 + %s68]]
    %s105 = scalar_lea.vmem %s5, %s104
    %v106 = vld [vmem:[%s105] sm:$0x1]
    %107 = vst.msk [vmem:[#allocation4 + $0x4] sm:$0x1] %vm46, %v106
    %s108 = sld [smem:[#allocation8 + %s73]]
    %s109 = scalar_lea.vmem %s5, %s108
    %v110 = vld [vmem:[%s109] sm:$0x1]
    %111 = vst.msk [vmem:[#allocation4 + $0x5] sm:$0x1] %vm46, %v110
    %s112 = sld [smem:[#allocation8 + %s78]]
    %s113 = scalar_lea.vmem %s5, %s112
    %v114 = vld [vmem:[%s113] sm:$0x1]
    %115 = vst.msk [vmem:[#allocation4 + $0x6] sm:$0x1] %vm46, %v114
    %s116 = sld [smem:[#allocation8 + %s83]]
    %s117 = scalar_lea.vmem %s5, %s116
    %v118 = vld [vmem:[%s117] sm:$0x1]
    %119 = vst.msk [vmem:[#allocation4 + $0x7] sm:$0x1] %vm46, %v118
    %s120 = sadd.s32 %s42, 1
    %s121 = sld [smem:[#allocation6 + %s120]]
    %s122 = scalar_lea.vmem %s3, %s121
    %v123 = vld [vmem:[%s122] sm:$0x1]
    %124 = vst.msk [vmem:[#allocation2 + $0x1] sm:$0x1] %vm46, %v123
    %s125 = smul.u32 %s120, 128
    %s126 = sld [smem:[#allocation7 + %s125]]
    %s127 = scalar_lea.vmem %s4, %s126
    %v128 = vld [vmem:[%s127] sm:$0x1]
    %129 = vst.msk [vmem:[#allocation3 + $0x8] sm:$0x1] %vm46, %v128
    %s130 = sadd.s32 %s125, 1
    %s131 = sld [smem:[#allocation7 + %s130]]
    %s132 = scalar_lea.vmem %s4, %s131
    %v133 = vld [vmem:[%s132] sm:$0x1]
    %134 = vst.msk [vmem:[#allocation3 + $0x9] sm:$0x1] %vm46, %v133
    %s135 = sadd.s32 %s125, 2
    %s136 = sld [smem:[#allocation7 + %s135]]
    %s137 = scalar_lea.vmem %s4, %s136
    %v138 = vld [vmem:[%s137] sm:$0x1]
    %139 = vst.msk [vmem:[#allocation3 + $0xa] sm:$0x1] %vm46, %v138
    %s140 = sadd.s32 %s125, 3
    %s141 = sld [smem:[#allocation7 + %s140]]
    %s142 = scalar_lea.vmem %s4, %s141
    %v143 = vld [vmem:[%s142] sm:$0x1]
    %144 = vst.msk [vmem:[#allocation3 + $0xb] sm:$0x1] %vm46, %v143
    %s145 = sadd.s32 %s125, 4
    %s146 = sld [smem:[#allocation7 + %s145]]
    %s147 = scalar_lea.vmem %s4, %s146
    %v148 = vld [vmem:[%s147] sm:$0x1]
    %149 = vst.msk [vmem:[#allocation3 + $0xc] sm:$0x1] %vm46, %v148
    %s150 = sadd.s32 %s125, 5
    %s151 = sld [smem:[#allocation7 + %s150]]
    %s152 = scalar_lea.vmem %s4, %s151
    %v153 = vld [vmem:[%s152] sm:$0x1]
    %154 = vst.msk [vmem:[#allocation3 + $0xd] sm:$0x1] %vm46, %v153
    %s155 = sadd.s32 %s125, 6
    %s156 = sld [smem:[#allocation7 + %s155]]
    %s157 = scalar_lea.vmem %s4, %s156
    %v158 = vld [vmem:[%s157] sm:$0x1]
    %159 = vst.msk [vmem:[#allocation3 + $0xe] sm:$0x1] %vm46, %v158
    %s160 = sadd.s32 %s125, 7
    %s161 = sld [smem:[#allocation7 + %s160]]
    %s162 = scalar_lea.vmem %s4, %s161
    %v163 = vld [vmem:[%s162] sm:$0x1]
    %164 = vst.msk [vmem:[#allocation3 + $0xf] sm:$0x1] %vm46, %v163
    %s165 = sld [smem:[#allocation8 + %s125]]
    %s166 = scalar_lea.vmem %s5, %s165
    %v167 = vld [vmem:[%s166] sm:$0x1]
    %168 = vst.msk [vmem:[#allocation4 + $0x8] sm:$0x1] %vm46, %v167
    %s169 = sld [smem:[#allocation8 + %s130]]
    %s170 = scalar_lea.vmem %s5, %s169
    %v171 = vld [vmem:[%s170] sm:$0x1]
    %172 = vst.msk [vmem:[#allocation4 + $0x9] sm:$0x1] %vm46, %v171
    %s173 = sld [smem:[#allocation8 + %s135]]
    %s174 = scalar_lea.vmem %s5, %s173
    %v175 = vld [vmem:[%s174] sm:$0x1]
    %176 = vst.msk [vmem:[#allocation4 + $0xa] sm:$0x1] %vm46, %v175
    %s177 = sld [smem:[#allocation8 + %s140]]
    %s178 = scalar_lea.vmem %s5, %s177
    %v179 = vld [vmem:[%s178] sm:$0x1]
    %180 = vst.msk [vmem:[#allocation4 + $0xb] sm:$0x1] %vm46, %v179
    %s181 = sld [smem:[#allocation8 + %s145]]
    %s182 = scalar_lea.vmem %s5, %s181
    %v183 = vld [vmem:[%s182] sm:$0x1]
    %184 = vst.msk [vmem:[#allocation4 + $0xc] sm:$0x1] %vm46, %v183
    %s185 = sld [smem:[#allocation8 + %s150]]
    %s186 = scalar_lea.vmem %s5, %s185
    %v187 = vld [vmem:[%s186] sm:$0x1]
    %188 = vst.msk [vmem:[#allocation4 + $0xd] sm:$0x1] %vm46, %v187
    %s189 = sld [smem:[#allocation8 + %s155]]
    %s190 = scalar_lea.vmem %s5, %s189
    %v191 = vld [vmem:[%s190] sm:$0x1]
    %192 = vst.msk [vmem:[#allocation4 + $0xe] sm:$0x1] %vm46, %v191
    %s193 = sld [smem:[#allocation8 + %s160]]
    %s194 = scalar_lea.vmem %s5, %s193
    %v195 = vld [vmem:[%s194] sm:$0x1]
    %196 = vst.msk [vmem:[#allocation4 + $0xf] sm:$0x1] %vm46, %v195
    %s197 = sadd.s32 %s42, 2
    %s198 = sld [smem:[#allocation6 + %s197]]
    %s199 = scalar_lea.vmem %s3, %s198
    %v200 = vld [vmem:[%s199] sm:$0x1]
    %201 = vst.msk [vmem:[#allocation2 + $0x2] sm:$0x1] %vm46, %v200
    %s202 = smul.u32 %s197, 128
    %s203 = sld [smem:[#allocation7 + %s202]]
    %s204 = scalar_lea.vmem %s4, %s203
    %v205 = vld [vmem:[%s204] sm:$0x1]
    %206 = vst.msk [vmem:[#allocation3 + $0x10] sm:$0x1] %vm46, %v205
    %s207 = sadd.s32 %s202, 1
    %s208 = sld [smem:[#allocation7 + %s207]]
    %s209 = scalar_lea.vmem %s4, %s208
    %v210 = vld [vmem:[%s209] sm:$0x1]
    %211 = vst.msk [vmem:[#allocation3 + $0x11] sm:$0x1] %vm46, %v210
    %s212 = sadd.s32 %s202, 2
    %s213 = sld [smem:[#allocation7 + %s212]]
    %s214 = scalar_lea.vmem %s4, %s213
    %v215 = vld [vmem:[%s214] sm:$0x1]
    %216 = vst.msk [vmem:[#allocation3 + $0x12] sm:$0x1] %vm46, %v215
    %s217 = sadd.s32 %s202, 3
    %s218 = sld [smem:[#allocation7 + %s217]]
    %s219 = scalar_lea.vmem %s4, %s218
    %v220 = vld [vmem:[%s219] sm:$0x1]
    %221 = vst.msk [vmem:[#allocation3 + $0x13] sm:$0x1] %vm46, %v220
    %s222 = sadd.s32 %s202, 4
    %s223 = sld [smem:[#allocation7 + %s222]]
    %s224 = scalar_lea.vmem %s4, %s223
    %v225 = vld [vmem:[%s224] sm:$0x1]
    %226 = vst.msk [vmem:[#allocation3 + $0x14] sm:$0x1] %vm46, %v225
    %s227 = sadd.s32 %s202, 5
    %s228 = sld [smem:[#allocation7 + %s227]]
    %s229 = scalar_lea.vmem %s4, %s228
    %v230 = vld [vmem:[%s229] sm:$0x1]
    %231 = vst.msk [vmem:[#allocation3 + $0x15] sm:$0x1] %vm46, %v230
    %s232 = sadd.s32 %s202, 6
    %s233 = sld [smem:[#allocation7 + %s232]]
    %s234 = scalar_lea.vmem %s4, %s233
    %v235 = vld [vmem:[%s234] sm:$0x1]
    %236 = vst.msk [vmem:[#allocation3 + $0x16] sm:$0x1] %vm46, %v235
    %s237 = sadd.s32 %s202, 7
    %s238 = sld [smem:[#allocation7 + %s237]]
    %s239 = scalar_lea.vmem %s4, %s238
    %v240 = vld [vmem:[%s239] sm:$0x1]
    %241 = vst.msk [vmem:[#allocation3 + $0x17] sm:$0x1] %vm46, %v240
    %s242 = sld [smem:[#allocation8 + %s202]]
    %s243 = scalar_lea.vmem %s5, %s242
    %v244 = vld [vmem:[%s243] sm:$0x1]
    %245 = vst.msk [vmem:[#allocation4 + $0x10] sm:$0x1] %vm46, %v244
    %s246 = sld [smem:[#allocation8 + %s207]]
    %s247 = scalar_lea.vmem %s5, %s246
    %v248 = vld [vmem:[%s247] sm:$0x1]
    %249 = vst.msk [vmem:[#allocation4 + $0x11] sm:$0x1] %vm46, %v248
    %s250 = sld [smem:[#allocation8 + %s212]]
    %s251 = scalar_lea.vmem %s5, %s250
    %v252 = vld [vmem:[%s251] sm:$0x1]
    %253 = vst.msk [vmem:[#allocation4 + $0x12] sm:$0x1] %vm46, %v252
    %s254 = sld [smem:[#allocation8 + %s217]]
    %s255 = scalar_lea.vmem %s5, %s254
    %v256 = vld [vmem:[%s255] sm:$0x1]
    %257 = vst.msk [vmem:[#allocation4 + $0x13] sm:$0x1] %vm46, %v256
    %s258 = sld [smem:[#allocation8 + %s222]]
    %s259 = scalar_lea.vmem %s5, %s258
    %v260 = vld [vmem:[%s259] sm:$0x1]
    %261 = vst.msk [vmem:[#allocation4 + $0x14] sm:$0x1] %vm46, %v260
    %s262 = sld [smem:[#allocation8 + %s227]]
    %s263 = scalar_lea.vmem %s5, %s262
    %v264 = vld [vmem:[%s263] sm:$0x1]
    %265 = vst.msk [vmem:[#allocation4 + $0x15] sm:$0x1] %vm46, %v264
    %s266 = sld [smem:[#allocation8 + %s232]]
    %s267 = scalar_lea.vmem %s5, %s266
    %v268 = vld [vmem:[%s267] sm:$0x1]
    %269 = vst.msk [vmem:[#allocation4 + $0x16] sm:$0x1] %vm46, %v268
    %s270 = sld [smem:[#allocation8 + %s237]]
    %s271 = scalar_lea.vmem %s5, %s270
    %v272 = vld [vmem:[%s271] sm:$0x1]
    %273 = vst.msk [vmem:[#allocation4 + $0x17] sm:$0x1] %vm46, %v272
    %s274 = sadd.s32 %s42, 3
    %s275 = sld [smem:[#allocation6 + %s274]]
    %s276 = scalar_lea.vmem %s3, %s275
    %v277 = vld [vmem:[%s276] sm:$0x1]
    %278 = vst.msk [vmem:[#allocation2 + $0x3] sm:$0x1] %vm46, %v277
    %s279 = smul.u32 %s274, 128
    %s280 = sld [smem:[#allocation7 + %s279]]
    %s281 = scalar_lea.vmem %s4, %s280
    %v282 = vld [vmem:[%s281] sm:$0x1]
    %283 = vst.msk [vmem:[#allocation3 + $0x18] sm:$0x1] %vm46, %v282
    %s284 = sadd.s32 %s279, 1
    %s285 = sld [smem:[#allocation7 + %s284]]
    %s286 = scalar_lea.vmem %s4, %s285
    %v287 = vld [vmem:[%s286] sm:$0x1]
    %288 = vst.msk [vmem:[#allocation3 + $0x19] sm:$0x1] %vm46, %v287
    %s289 = sadd.s32 %s279, 2
    %s290 = sld [smem:[#allocation7 + %s289]]
    %s291 = scalar_lea.vmem %s4, %s290
    %v292 = vld [vmem:[%s291] sm:$0x1]
    %293 = vst.msk [vmem:[#allocation3 + $0x1a] sm:$0x1] %vm46, %v292
    %s294 = sadd.s32 %s279, 3
    %s295 = sld [smem:[#allocation7 + %s294]]
    %s296 = scalar_lea.vmem %s4, %s295
    %v297 = vld [vmem:[%s296] sm:$0x1]
    %298 = vst.msk [vmem:[#allocation3 + $0x1b] sm:$0x1] %vm46, %v297
    %s299 = sadd.s32 %s279, 4
    %s300 = sld [smem:[#allocation7 + %s299]]
    %s301 = scalar_lea.vmem %s4, %s300
    %v302 = vld [vmem:[%s301] sm:$0x1]
    %303 = vst.msk [vmem:[#allocation3 + $0x1c] sm:$0x1] %vm46, %v302
    %s304 = sadd.s32 %s279, 5
    %s305 = sld [smem:[#allocation7 + %s304]]
    %s306 = scalar_lea.vmem %s4, %s305
    %v307 = vld [vmem:[%s306] sm:$0x1]
    %308 = vst.msk [vmem:[#allocation3 + $0x1d] sm:$0x1] %vm46, %v307
    %s309 = sadd.s32 %s279, 6
    %s310 = sld [smem:[#allocation7 + %s309]]
    %s311 = scalar_lea.vmem %s4, %s310
    %v312 = vld [vmem:[%s311] sm:$0x1]
    %313 = vst.msk [vmem:[#allocation3 + $0x1e] sm:$0x1] %vm46, %v312
    %s314 = sadd.s32 %s279, 7
    %s315 = sld [smem:[#allocation7 + %s314]]
    %s316 = scalar_lea.vmem %s4, %s315
    %v317 = vld [vmem:[%s316] sm:$0x1]
    %318 = vst.msk [vmem:[#allocation3 + $0x1f] sm:$0x1] %vm46, %v317
    %s319 = sld [smem:[#allocation8 + %s279]]
    %s320 = scalar_lea.vmem %s5, %s319
    %v321 = vld [vmem:[%s320] sm:$0x1]
    %322 = vst.msk [vmem:[#allocation4 + $0x18] sm:$0x1] %vm46, %v321
    %s323 = sld [smem:[#allocation8 + %s284]]
    %s324 = scalar_lea.vmem %s5, %s323
    %v325 = vld [vmem:[%s324] sm:$0x1]
    %326 = vst.msk [vmem:[#allocation4 + $0x19] sm:$0x1] %vm46, %v325
    %s327 = sld [smem:[#allocation8 + %s289]]
    %s328 = scalar_lea.vmem %s5, %s327
    %v329 = vld [vmem:[%s328] sm:$0x1]
    %330 = vst.msk [vmem:[#allocation4 + $0x1a] sm:$0x1] %vm46, %v329
    %s331 = sld [smem:[#allocation8 + %s294]]
    %s332 = scalar_lea.vmem %s5, %s331
    %v333 = vld [vmem:[%s332] sm:$0x1]
    %334 = vst.msk [vmem:[#allocation4 + $0x1b] sm:$0x1] %vm46, %v333
    %s335 = sld [smem:[#allocation8 + %s299]]
    %s336 = scalar_lea.vmem %s5, %s335
    %v337 = vld [vmem:[%s336] sm:$0x1]
    %338 = vst.msk [vmem:[#allocation4 + $0x1c] sm:$0x1] %vm46, %v337
    %s339 = sld [smem:[#allocation8 + %s304]]
    %s340 = scalar_lea.vmem %s5, %s339
    %v341 = vld [vmem:[%s340] sm:$0x1]
    %342 = vst.msk [vmem:[#allocation4 + $0x1d] sm:$0x1] %vm46, %v341
    %s343 = sld [smem:[#allocation8 + %s309]]
    %s344 = scalar_lea.vmem %s5, %s343
    %v345 = vld [vmem:[%s344] sm:$0x1]
    %346 = vst.msk [vmem:[#allocation4 + $0x1e] sm:$0x1] %vm46, %v345
    %s347 = sld [smem:[#allocation8 + %s314]]
    %s348 = scalar_lea.vmem %s5, %s347
    %v349 = vld [vmem:[%s348] sm:$0x1]
    %350 = vst.msk [vmem:[#allocation4 + $0x1f] sm:$0x1] %vm46, %v349
    %s351 = sadd.s32 %s42, 4
    %s352 = sld [smem:[#allocation6 + %s351]]
    %s353 = scalar_lea.vmem %s3, %s352
    %v354 = vld [vmem:[%s353] sm:$0x1]
    %355 = vst.msk [vmem:[#allocation2 + $0x4] sm:$0x1] %vm46, %v354
    %s356 = smul.u32 %s351, 128
    %s357 = sld [smem:[#allocation7 + %s356]]
    %s358 = scalar_lea.vmem %s4, %s357
    %v359 = vld [vmem:[%s358] sm:$0x1]
    %360 = vst.msk [vmem:[#allocation3 + $0x20] sm:$0x1] %vm46, %v359
    %s361 = sadd.s32 %s356, 1
    %s362 = sld [smem:[#allocation7 + %s361]]
    %s363 = scalar_lea.vmem %s4, %s362
    %v364 = vld [vmem:[%s363] sm:$0x1]
    %365 = vst.msk [vmem:[#allocation3 + $0x21] sm:$0x1] %vm46, %v364
    %s366 = sadd.s32 %s356, 2
    %s367 = sld [smem:[#allocation7 + %s366]]
    %s368 = scalar_lea.vmem %s4, %s367
    %v369 = vld [vmem:[%s368] sm:$0x1]
    %370 = vst.msk [vmem:[#allocation3 + $0x22] sm:$0x1] %vm46, %v369
    %s371 = sadd.s32 %s356, 3
    %s372 = sld [smem:[#allocation7 + %s371]]
    %s373 = scalar_lea.vmem %s4, %s372
    %v374 = vld [vmem:[%s373] sm:$0x1]
    %375 = vst.msk [vmem:[#allocation3 + $0x23] sm:$0x1] %vm46, %v374
    %s376 = sadd.s32 %s356, 4
    %s377 = sld [smem:[#allocation7 + %s376]]
    %s378 = scalar_lea.vmem %s4, %s377
    %v379 = vld [vmem:[%s378] sm:$0x1]
    %380 = vst.msk [vmem:[#allocation3 + $0x24] sm:$0x1] %vm46, %v379
    %s381 = sadd.s32 %s356, 5
    %s382 = sld [smem:[#allocation7 + %s381]]
    %s383 = scalar_lea.vmem %s4, %s382
    %v384 = vld [vmem:[%s383] sm:$0x1]
    %385 = vst.msk [vmem:[#allocation3 + $0x25] sm:$0x1] %vm46, %v384
    %s386 = sadd.s32 %s356, 6
    %s387 = sld [smem:[#allocation7 + %s386]]
    %s388 = scalar_lea.vmem %s4, %s387
    %v389 = vld [vmem:[%s388] sm:$0x1]
    %390 = vst.msk [vmem:[#allocation3 + $0x26] sm:$0x1] %vm46, %v389
    %s391 = sadd.s32 %s356, 7
    %s392 = sld [smem:[#allocation7 + %s391]]
    %s393 = scalar_lea.vmem %s4, %s392
    %v394 = vld [vmem:[%s393] sm:$0x1]
    %395 = vst.msk [vmem:[#allocation3 + $0x27] sm:$0x1] %vm46, %v394
    %s396 = sld [smem:[#allocation8 + %s356]]
    %s397 = scalar_lea.vmem %s5, %s396
    %v398 = vld [vmem:[%s397] sm:$0x1]
    %399 = vst.msk [vmem:[#allocation4 + $0x20] sm:$0x1] %vm46, %v398
    %s400 = sld [smem:[#allocation8 + %s361]]
    %s401 = scalar_lea.vmem %s5, %s400
    %v402 = vld [vmem:[%s401] sm:$0x1]
    %403 = vst.msk [vmem:[#allocation4 + $0x21] sm:$0x1] %vm46, %v402
    %s404 = sld [smem:[#allocation8 + %s366]]
    %s405 = scalar_lea.vmem %s5, %s404
    %v406 = vld [vmem:[%s405] sm:$0x1]
    %407 = vst.msk [vmem:[#allocation4 + $0x22] sm:$0x1] %vm46, %v406
    %s408 = sld [smem:[#allocation8 + %s371]]
    %s409 = scalar_lea.vmem %s5, %s408
    %v410 = vld [vmem:[%s409] sm:$0x1]
    %411 = vst.msk [vmem:[#allocation4 + $0x23] sm:$0x1] %vm46, %v410
    %s412 = sld [smem:[#allocation8 + %s376]]
    %s413 = scalar_lea.vmem %s5, %s412
    %v414 = vld [vmem:[%s413] sm:$0x1]
    %415 = vst.msk [vmem:[#allocation4 + $0x24] sm:$0x1] %vm46, %v414
    %s416 = sld [smem:[#allocation8 + %s381]]
    %s417 = scalar_lea.vmem %s5, %s416
    %v418 = vld [vmem:[%s417] sm:$0x1]
    %419 = vst.msk [vmem:[#allocation4 + $0x25] sm:$0x1] %vm46, %v418
    %s420 = sld [smem:[#allocation8 + %s386]]
    %s421 = scalar_lea.vmem %s5, %s420
    %v422 = vld [vmem:[%s421] sm:$0x1]
    %423 = vst.msk [vmem:[#allocation4 + $0x26] sm:$0x1] %vm46, %v422
    %s424 = sld [smem:[#allocation8 + %s391]]
    %s425 = scalar_lea.vmem %s5, %s424
    %v426 = vld [vmem:[%s425] sm:$0x1]
    %427 = vst.msk [vmem:[#allocation4 + $0x27] sm:$0x1] %vm46, %v426
    %s428 = sadd.s32 %s42, 5
    %s429 = sld [smem:[#allocation6 + %s428]]
    %s430 = scalar_lea.vmem %s3, %s429
    %v431 = vld [vmem:[%s430] sm:$0x1]
    %432 = vst.msk [vmem:[#allocation2 + $0x5] sm:$0x1] %vm46, %v431
    %s433 = smul.u32 %s428, 128
    %s434 = sld [smem:[#allocation7 + %s433]]
    %s435 = scalar_lea.vmem %s4, %s434
    %v436 = vld [vmem:[%s435] sm:$0x1]
    %437 = vst.msk [vmem:[#allocation3 + $0x28] sm:$0x1] %vm46, %v436
    %s438 = sadd.s32 %s433, 1
    %s439 = sld [smem:[#allocation7 + %s438]]
    %s440 = scalar_lea.vmem %s4, %s439
    %v441 = vld [vmem:[%s440] sm:$0x1]
    %442 = vst.msk [vmem:[#allocation3 + $0x29] sm:$0x1] %vm46, %v441
    %s443 = sadd.s32 %s433, 2
    %s444 = sld [smem:[#allocation7 + %s443]]
    %s445 = scalar_lea.vmem %s4, %s444
    %v446 = vld [vmem:[%s445] sm:$0x1]
    %447 = vst.msk [vmem:[#allocation3 + $0x2a] sm:$0x1] %vm46, %v446
    %s448 = sadd.s32 %s433, 3
    %s449 = sld [smem:[#allocation7 + %s448]]
    %s450 = scalar_lea.vmem %s4, %s449
    %v451 = vld [vmem:[%s450] sm:$0x1]
    %452 = vst.msk [vmem:[#allocation3 + $0x2b] sm:$0x1] %vm46, %v451
    %s453 = sadd.s32 %s433, 4
    %s454 = sld [smem:[#allocation7 + %s453]]
    %s455 = scalar_lea.vmem %s4, %s454
    %v456 = vld [vmem:[%s455] sm:$0x1]
    %457 = vst.msk [vmem:[#allocation3 + $0x2c] sm:$0x1] %vm46, %v456
    %s458 = sadd.s32 %s433, 5
    %s459 = sld [smem:[#allocation7 + %s458]]
    %s460 = scalar_lea.vmem %s4, %s459
    %v461 = vld [vmem:[%s460] sm:$0x1]
    %462 = vst.msk [vmem:[#allocation3 + $0x2d] sm:$0x1] %vm46, %v461
    %s463 = sadd.s32 %s433, 6
    %s464 = sld [smem:[#allocation7 + %s463]]
    %s465 = scalar_lea.vmem %s4, %s464
    %v466 = vld [vmem:[%s465] sm:$0x1]
    %467 = vst.msk [vmem:[#allocation3 + $0x2e] sm:$0x1] %vm46, %v466
    %s468 = sadd.s32 %s433, 7
    %s469 = sld [smem:[#allocation7 + %s468]]
    %s470 = scalar_lea.vmem %s4, %s469
    %v471 = vld [vmem:[%s470] sm:$0x1]
    %472 = vst.msk [vmem:[#allocation3 + $0x2f] sm:$0x1] %vm46, %v471
    %s473 = sld [smem:[#allocation8 + %s433]]
    %s474 = scalar_lea.vmem %s5, %s473
    %v475 = vld [vmem:[%s474] sm:$0x1]
    %476 = vst.msk [vmem:[#allocation4 + $0x28] sm:$0x1] %vm46, %v475
    %s477 = sld [smem:[#allocation8 + %s438]]
    %s478 = scalar_lea.vmem %s5, %s477
    %v479 = vld [vmem:[%s478] sm:$0x1]
    %480 = vst.msk [vmem:[#allocation4 + $0x29] sm:$0x1] %vm46, %v479
    %s481 = sld [smem:[#allocation8 + %s443]]
    %s482 = scalar_lea.vmem %s5, %s481
    %v483 = vld [vmem:[%s482] sm:$0x1]
    %484 = vst.msk [vmem:[#allocation4 + $0x2a] sm:$0x1] %vm46, %v483
    %s485 = sld [smem:[#allocation8 + %s448]]
    %s486 = scalar_lea.vmem %s5, %s485
    %v487 = vld [vmem:[%s486] sm:$0x1]
    %488 = vst.msk [vmem:[#allocation4 + $0x2b] sm:$0x1] %vm46, %v487
    %s489 = sld [smem:[#allocation8 + %s453]]
    %s490 = scalar_lea.vmem %s5, %s489
    %v491 = vld [vmem:[%s490] sm:$0x1]
    %492 = vst.msk [vmem:[#allocation4 + $0x2c] sm:$0x1] %vm46, %v491
    %s493 = sld [smem:[#allocation8 + %s458]]
    %s494 = scalar_lea.vmem %s5, %s493
    %v495 = vld [vmem:[%s494] sm:$0x1]
    %496 = vst.msk [vmem:[#allocation4 + $0x2d] sm:$0x1] %vm46, %v495
    %s497 = sld [smem:[#allocation8 + %s463]]
    %s498 = scalar_lea.vmem %s5, %s497
    %v499 = vld [vmem:[%s498] sm:$0x1]
    %500 = vst.msk [vmem:[#allocation4 + $0x2e] sm:$0x1] %vm46, %v499
    %s501 = sld [smem:[#allocation8 + %s468]]
    %s502 = scalar_lea.vmem %s5, %s501
    %v503 = vld [vmem:[%s502] sm:$0x1]
    %504 = vst.msk [vmem:[#allocation4 + $0x2f] sm:$0x1] %vm46, %v503
    %s505 = sadd.s32 %s42, 6
    %s506 = sld [smem:[#allocation6 + %s505]]
    %s507 = scalar_lea.vmem %s3, %s506
    %v508 = vld [vmem:[%s507] sm:$0x1]
    %509 = vst.msk [vmem:[#allocation2 + $0x6] sm:$0x1] %vm46, %v508
    %s510 = smul.u32 %s505, 128
    %s511 = sld [smem:[#allocation7 + %s510]]
    %s512 = scalar_lea.vmem %s4, %s511
    %v513 = vld [vmem:[%s512] sm:$0x1]
    %514 = vst.msk [vmem:[#allocation3 + $0x30] sm:$0x1] %vm46, %v513
    %s515 = sadd.s32 %s510, 1
    %s516 = sld [smem:[#allocation7 + %s515]]
    %s517 = scalar_lea.vmem %s4, %s516
    %v518 = vld [vmem:[%s517] sm:$0x1]
    %519 = vst.msk [vmem:[#allocation3 + $0x31] sm:$0x1] %vm46, %v518
    %s520 = sadd.s32 %s510, 2
    %s521 = sld [smem:[#allocation7 + %s520]]
    %s522 = scalar_lea.vmem %s4, %s521
    %v523 = vld [vmem:[%s522] sm:$0x1]
    %524 = vst.msk [vmem:[#allocation3 + $0x32] sm:$0x1] %vm46, %v523
    %s525 = sadd.s32 %s510, 3
    %s526 = sld [smem:[#allocation7 + %s525]]
    %s527 = scalar_lea.vmem %s4, %s526
    %v528 = vld [vmem:[%s527] sm:$0x1]
    %529 = vst.msk [vmem:[#allocation3 + $0x33] sm:$0x1] %vm46, %v528
    %s530 = sadd.s32 %s510, 4
    %s531 = sld [smem:[#allocation7 + %s530]]
    %s532 = scalar_lea.vmem %s4, %s531
    %v533 = vld [vmem:[%s532] sm:$0x1]
    %534 = vst.msk [vmem:[#allocation3 + $0x34] sm:$0x1] %vm46, %v533
    %s535 = sadd.s32 %s510, 5
    %s536 = sld [smem:[#allocation7 + %s535]]
    %s537 = scalar_lea.vmem %s4, %s536
    %v538 = vld [vmem:[%s537] sm:$0x1]
    %539 = vst.msk [vmem:[#allocation3 + $0x35] sm:$0x1] %vm46, %v538
    %s540 = sadd.s32 %s510, 6
    %s541 = sld [smem:[#allocation7 + %s540]]
    %s542 = scalar_lea.vmem %s4, %s541
    %v543 = vld [vmem:[%s542] sm:$0x1]
    %544 = vst.msk [vmem:[#allocation3 + $0x36] sm:$0x1] %vm46, %v543
    %s545 = sadd.s32 %s510, 7
    %s546 = sld [smem:[#allocation7 + %s545]]
    %s547 = scalar_lea.vmem %s4, %s546
    %v548 = vld [vmem:[%s547] sm:$0x1]
    %549 = vst.msk [vmem:[#allocation3 + $0x37] sm:$0x1] %vm46, %v548
    %s550 = sld [smem:[#allocation8 + %s510]]
    %s551 = scalar_lea.vmem %s5, %s550
    %v552 = vld [vmem:[%s551] sm:$0x1]
    %553 = vst.msk [vmem:[#allocation4 + $0x30] sm:$0x1] %vm46, %v552
    %s554 = sld [smem:[#allocation8 + %s515]]
    %s555 = scalar_lea.vmem %s5, %s554
    %v556 = vld [vmem:[%s555] sm:$0x1]
    %557 = vst.msk [vmem:[#allocation4 + $0x31] sm:$0x1] %vm46, %v556
    %s558 = sld [smem:[#allocation8 + %s520]]
    %s559 = scalar_lea.vmem %s5, %s558
    %v560 = vld [vmem:[%s559] sm:$0x1]
    %561 = vst.msk [vmem:[#allocation4 + $0x32] sm:$0x1] %vm46, %v560
    %s562 = sld [smem:[#allocation8 + %s525]]
    %s563 = scalar_lea.vmem %s5, %s562
    %v564 = vld [vmem:[%s563] sm:$0x1]
    %565 = vst.msk [vmem:[#allocation4 + $0x33] sm:$0x1] %vm46, %v564
    %s566 = sld [smem:[#allocation8 + %s530]]
    %s567 = scalar_lea.vmem %s5, %s566
    %v568 = vld [vmem:[%s567] sm:$0x1]
    %569 = vst.msk [vmem:[#allocation4 + $0x34] sm:$0x1] %vm46, %v568
    %s570 = sld [smem:[#allocation8 + %s535]]
    %s571 = scalar_lea.vmem %s5, %s570
    %v572 = vld [vmem:[%s571] sm:$0x1]
    %573 = vst.msk [vmem:[#allocation4 + $0x35] sm:$0x1] %vm46, %v572
    %s574 = sld [smem:[#allocation8 + %s540]]
    %s575 = scalar_lea.vmem %s5, %s574
    %v576 = vld [vmem:[%s575] sm:$0x1]
    %577 = vst.msk [vmem:[#allocation4 + $0x36] sm:$0x1] %vm46, %v576
    %s578 = sld [smem:[#allocation8 + %s545]]
    %s579 = scalar_lea.vmem %s5, %s578
    %v580 = vld [vmem:[%s579] sm:$0x1]
    %581 = vst.msk [vmem:[#allocation4 + $0x37] sm:$0x1] %vm46, %v580
    %s582 = sadd.s32 %s42, 7
    %s583 = sld [smem:[#allocation6 + %s582]]
    %s584 = scalar_lea.vmem %s3, %s583
    %v585 = vld [vmem:[%s584] sm:$0x1]
    %586 = vst.msk [vmem:[#allocation2 + $0x7] sm:$0x1] %vm46, %v585
    %s587 = smul.u32 %s582, 128
    %s588 = sld [smem:[#allocation7 + %s587]]
    %s589 = scalar_lea.vmem %s4, %s588
    %v590 = vld [vmem:[%s589] sm:$0x1]
    %591 = vst.msk [vmem:[#allocation3 + $0x38] sm:$0x1] %vm46, %v590
    %s592 = sadd.s32 %s587, 1
    %s593 = sld [smem:[#allocation7 + %s592]]
    %s594 = scalar_lea.vmem %s4, %s593
    %v595 = vld [vmem:[%s594] sm:$0x1]
    %596 = vst.msk [vmem:[#allocation3 + $0x39] sm:$0x1] %vm46, %v595
    %s597 = sadd.s32 %s587, 2
    %s598 = sld [smem:[#allocation7 + %s597]]
    %s599 = scalar_lea.vmem %s4, %s598
    %v600 = vld [vmem:[%s599] sm:$0x1]
    %601 = vst.msk [vmem:[#allocation3 + $0x3a] sm:$0x1] %vm46, %v600
    %s602 = sadd.s32 %s587, 3
    %s603 = sld [smem:[#allocation7 + %s602]]
    %s604 = scalar_lea.vmem %s4, %s603
    %v605 = vld [vmem:[%s604] sm:$0x1]
    %606 = vst.msk [vmem:[#allocation3 + $0x3b] sm:$0x1] %vm46, %v605
    %s607 = sadd.s32 %s587, 4
    %s608 = sld [smem:[#allocation7 + %s607]]
    %s609 = scalar_lea.vmem %s4, %s608
    %v610 = vld [vmem:[%s609] sm:$0x1]
    %611 = vst.msk [vmem:[#allocation3 + $0x3c] sm:$0x1] %vm46, %v610
    %s612 = sadd.s32 %s587, 5
    %s613 = sld [smem:[#allocation7 + %s612]]
    %s614 = scalar_lea.vmem %s4, %s613
    %v615 = vld [vmem:[%s614] sm:$0x1]
    %616 = vst.msk [vmem:[#allocation3 + $0x3d] sm:$0x1] %vm46, %v615
    %s617 = sadd.s32 %s587, 6
    %s618 = sld [smem:[#allocation7 + %s617]]
    %s619 = scalar_lea.vmem %s4, %s618
    %v620 = vld [vmem:[%s619] sm:$0x1]
    %621 = vst.msk [vmem:[#allocation3 + $0x3e] sm:$0x1] %vm46, %v620
    %s622 = sadd.s32 %s587, 7
    %s623 = sld [smem:[#allocation7 + %s622]]
    %s624 = scalar_lea.vmem %s4, %s623
    %v625 = vld [vmem:[%s624] sm:$0x1]
    %626 = vst.msk [vmem:[#allocation3 + $0x3f] sm:$0x1] %vm46, %v625
    %s627 = sld [smem:[#allocation8 + %s587]]
    %s628 = scalar_lea.vmem %s5, %s627
    %v629 = vld [vmem:[%s628] sm:$0x1]
    %630 = vst.msk [vmem:[#allocation4 + $0x38] sm:$0x1] %vm46, %v629
    %s631 = sld [smem:[#allocation8 + %s592]]
    %s632 = scalar_lea.vmem %s5, %s631
    %v633 = vld [vmem:[%s632] sm:$0x1]
    %634 = vst.msk [vmem:[#allocation4 + $0x39] sm:$0x1] %vm46, %v633
    %s635 = sld [smem:[#allocation8 + %s597]]
    %s636 = scalar_lea.vmem %s5, %s635
    %v637 = vld [vmem:[%s636] sm:$0x1]
    %638 = vst.msk [vmem:[#allocation4 + $0x3a] sm:$0x1] %vm46, %v637
    %s639 = sld [smem:[#allocation8 + %s602]]
    %s640 = scalar_lea.vmem %s5, %s639
    %v641 = vld [vmem:[%s640] sm:$0x1]
    %642 = vst.msk [vmem:[#allocation4 + $0x3b] sm:$0x1] %vm46, %v641
    %s643 = sld [smem:[#allocation8 + %s607]]
    %s644 = scalar_lea.vmem %s5, %s643
    %v645 = vld [vmem:[%s644] sm:$0x1]
    %646 = vst.msk [vmem:[#allocation4 + $0x3c] sm:$0x1] %vm46, %v645
    %s647 = sld [smem:[#allocation8 + %s612]]
    %s648 = scalar_lea.vmem %s5, %s647
    %v649 = vld [vmem:[%s648] sm:$0x1]
    %650 = vst.msk [vmem:[#allocation4 + $0x3d] sm:$0x1] %vm46, %v649
    %s651 = sld [smem:[#allocation8 + %s617]]
    %s652 = scalar_lea.vmem %s5, %s651
    %v653 = vld [vmem:[%s652] sm:$0x1]
    %654 = vst.msk [vmem:[#allocation4 + $0x3e] sm:$0x1] %vm46, %v653
    %s655 = sld [smem:[#allocation8 + %s622]]
    %s656 = scalar_lea.vmem %s5, %s655
    %v657 = vld [vmem:[%s656] sm:$0x1]
    %658 = vst.msk [vmem:[#allocation4 + $0x3f] sm:$0x1] %vm46, %v657
    %v659 = vld [vmem:[#allocation3] sm:$0xff]
    %v660 = vld [vmem:[#allocation3 + $0x8] sm:$0xff]
    %v661 = vld [vmem:[#allocation3 + $0x10] sm:$0xff]
    %v662 = vld [vmem:[#allocation3 + $0x18] sm:$0xff]
    %v663 = vld [vmem:[#allocation3 + $0x20] sm:$0xff]
    %v664 = vld [vmem:[#allocation3 + $0x28] sm:$0xff]
    %v665 = vld [vmem:[#allocation3 + $0x30] sm:$0xff]
    %v666 = vld [vmem:[#allocation3 + $0x38] sm:$0xff]
    %v667 = vld [vmem:[#allocation2] sm:$0xff]
    %v669 = vrot.slane %v667, 1
    %v670 = vrot.slane %v667, 2
    %v671 = vrot.slane %v667, 3
    %v672 = vrot.slane %v667, 4
    %v673 = vrot.slane %v667, 5
    %v674 = vrot.slane %v667, 6
    %v675 = vrot.slane %v667, 7
    %v676 = vperm.slane %v667, 0
    %v677 = vperm.slane %v669, 0
    %v678 = vperm.slane %v670, 0
    %v679 = vperm.slane %v671, 0
    %v680 = vperm.slane %v672, 0
    %v681 = vperm.slane %v673, 0
    %v682 = vperm.slane %v674, 0
    %v683 = vperm.slane %v675, 0
    %692 = vrot.lane.b32.xlu0 %v676, 32
    %v693 = vpop.permute.xlu0 %692
    %694 = vrot.lane.b32.xlu0 %v677, 32
    %v695 = vpop.permute.xlu0 %694
    %696 = vrot.lane.b32.xlu0 %v678, 32
    %v697 = vpop.permute.xlu0 %696
    %698 = vrot.lane.b32.xlu0 %v679, 32
    %v699 = vpop.permute.xlu0 %698
    %700 = vrot.lane.b32.xlu0 %v680, 32
    %v701 = vpop.permute.xlu0 %700
    %702 = vrot.lane.b32.xlu0 %v681, 32
    %v703 = vpop.permute.xlu0 %702
    %704 = vrot.lane.b32.xlu0 %v682, 32
    %v705 = vpop.permute.xlu0 %704
    %706 = vrot.lane.b32.xlu0 %v683, 32
    %v707 = vpop.permute.xlu0 %706
    %vm716 = vcmask 261120
    %v717 = vsel %vm716, %v659, %v693
    %v718 = vsel %vm716, %v660, %v695
    %v719 = vsel %vm716, %v661, %v697
    %v720 = vsel %vm716, %v662, %v699
    %v721 = vsel %vm716, %v663, %v701
    %v722 = vsel %vm716, %v664, %v703
    %v723 = vsel %vm716, %v665, %v705
    %v724 = vsel %vm716, %v666, %v707
    %v725 = vld [vmem:[%s6] sm:$0xff]
    %v726 = vld [vmem:[%s6 + $0x8] sm:$0xff]
    %v727 = vld [vmem:[%s6 + $0x10] sm:$0xff]
    %v728 = vld [vmem:[%s6 + $0x18] sm:$0xff]
    %v729 = vld [vmem:[%s6 + $0x20] sm:$0xff]
    %v730 = vld [vmem:[%s6 + $0x28] sm:$0xff]
    %v731 = vld [vmem:[%s6 + $0x30] sm:$0xff]
    %v732 = vld [vmem:[%s6 + $0x38] sm:$0xff]
    %v733 = vld [vmem:[%s6 + $0x40] sm:$0x1]
    %v734 = vperm.slane %v733, 0
    %vm735 = vcmask 523264
    %v737 = vsel %vm735, %v717, 0
    %v740 = vsel %vm735, %v718, 0
    %v743 = vsel %vm735, %v719, 0
    %v746 = vsel %vm735, %v720, 0
    %v749 = vsel %vm735, %v721, 0
    %v752 = vsel %vm735, %v722, 0
    %v755 = vsel %vm735, %v723, 0
    %v758 = vsel %vm735, %v724, 0
    %760 = vmatpush.msra.mxu0 0.0
    %761 = vmatpush.msra.mxu0 0.0
    %762 = vmatpush.msra.mxu0 0.0
    %763 = vmatpush.msra.mxu0 0.0
    %764 = vmatpush.msra.mxu0 0.0
    %765 = vmatpush.msra.mxu0 0.0
    %766 = vmatpush.msra.mxu0 0.0
    %767 = vmatpush.msra.mxu0 0.0
    %768 = vmatpush.msra.mxu0 %v732
    %769 = vmatpush.msra.mxu0 %v731
    %770 = vmatpush.msra.mxu0 %v730
    %771 = vmatpush.msra.mxu0 %v729
    %772 = vmatpush.msra.mxu0 %v728
    %773 = vmatpush.msra.mxu0 %v727
    %774 = vmatpush.msra.mxu0 %v726
    %775 = vmatpush.msra.mxu0 %v725
    %776 = vmatmul.f32.gmra.mxu0 %v737
    %v777 = vpop.f32.mrf.mxu0
    %v778 = vadd.f32 %v734, %v777
    %779 = vmatmul.f32.gmra.mxu0 %v740
    %v780 = vpop.f32.mrf.mxu0
    %v781 = vadd.f32 %v734, %v780
    %782 = vmatmul.f32.gmra.mxu0 %v743
    %v783 = vpop.f32.mrf.mxu0
    %v784 = vadd.f32 %v734, %v783
    %785 = vmatmul.f32.gmra.mxu0 %v746
    %v786 = vpop.f32.mrf.mxu0
    %v787 = vadd.f32 %v734, %v786
    %788 = vmatmul.f32.gmra.mxu0 %v749
    %v789 = vpop.f32.mrf.mxu0
    %v790 = vadd.f32 %v734, %v789
    %791 = vmatmul.f32.gmra.mxu0 %v752
    %v792 = vpop.f32.mrf.mxu0
    %v793 = vadd.f32 %v734, %v792
    %794 = vmatmul.f32.gmra.mxu0 %v755
    %v795 = vpop.f32.mrf.mxu0
    %v796 = vadd.f32 %v734, %v795
    %797 = vmatmul.f32.gmra.mxu0 %v758
    %v798 = vpop.f32.mrf.mxu0
    %v799 = vadd.f32 %v734, %v798
    %800 = vdwg.mxu0
    %v801 = vxor.u32 %v778, 2147483648
    %v802 = vxor.u32 %v781, 2147483648
    %v803 = vxor.u32 %v784, 2147483648
    %v804 = vxor.u32 %v787, 2147483648
    %v805 = vxor.u32 %v790, 2147483648
    %v806 = vxor.u32 %v793, 2147483648
    %v807 = vxor.u32 %v796, 2147483648
    %v808 = vxor.u32 %v799, 2147483648
    %v809 = vmul.f32 %v801, 1.442695
    %v810 = vpow.pop %v809
    %v811 = vmul.f32 %v802, 1.442695
    %v812 = vpow.pop %v811
    %v813 = vmul.f32 %v803, 1.442695
    %v814 = vpow.pop %v813
    %v815 = vmul.f32 %v804, 1.442695
    %v816 = vpow.pop %v815
    %v817 = vmul.f32 %v805, 1.442695
    %v818 = vpow.pop %v817
    %v819 = vmul.f32 %v806, 1.442695
    %v820 = vpow.pop %v819
    %v821 = vmul.f32 %v807, 1.442695
    %v822 = vpow.pop %v821
    %v823 = vmul.f32 %v808, 1.442695
    %v824 = vpow.pop %v823
    %v825 = vadd.f32 %v810, 1.0
    %v826 = vadd.f32 %v812, 1.0
    %v827 = vadd.f32 %v814, 1.0
    %v828 = vadd.f32 %v816, 1.0
    %v829 = vadd.f32 %v818, 1.0
    %v830 = vadd.f32 %v820, 1.0
    %v831 = vadd.f32 %v822, 1.0
    %v832 = vadd.f32 %v824, 1.0
    %v833 = vrcp.pop %v825
    %v834 = vmul.f32 %v825, %v833
    %v835 = vsub.f32 1.0, %v834
    %v836 = vmul.f32 %v833, %v835
    %v837 = vadd.f32 %v833, %v836
    %vm838 = vweird.f32 %v825
    %vm839 = vweird.f32 %v833
    %vm840 = vmor %vm838, %vm839
    %v841 = vsel %vm840, %v833, %v837
    %v842 = vand.u32 2147483647, %v825
    %vm843 = vcmp.eq.f32.partialorder %v842, 8.507059e+37
    %v844 = vand.u32 %v825, 2147483648
    %v845 = vor.u32 1.1754944e-38, %v844
    %v846 = vsel %vm843, %v845, %v841
    %v847 = vmul.f32 1.0, %v846
    %v848 = vrcp.pop %v826
    %v849 = vmul.f32 %v826, %v848
    %v850 = vsub.f32 1.0, %v849
    %v851 = vmul.f32 %v848, %v850
    %v852 = vadd.f32 %v848, %v851
    %vm853 = vweird.f32 %v826
    %vm854 = vweird.f32 %v848
    %vm855 = vmor %vm853, %vm854
    %v856 = vsel %vm855, %v848, %v852
    %v857 = vand.u32 2147483647, %v826
    %vm858 = vcmp.eq.f32.partialorder %v857, 8.507059e+37
    %v859 = vand.u32 %v826, 2147483648
    %v860 = vor.u32 1.1754944e-38, %v859
    %v861 = vsel %vm858, %v860, %v856
    %v862 = vmul.f32 1.0, %v861
    %v863 = vrcp.pop %v827
    %v864 = vmul.f32 %v827, %v863
    %v865 = vsub.f32 1.0, %v864
    %v866 = vmul.f32 %v863, %v865
    %v867 = vadd.f32 %v863, %v866
    %vm868 = vweird.f32 %v827
    %vm869 = vweird.f32 %v863
    %vm870 = vmor %vm868, %vm869
    %v871 = vsel %vm870, %v863, %v867
    %v872 = vand.u32 2147483647, %v827
    %vm873 = vcmp.eq.f32.partialorder %v872, 8.507059e+37
    %v874 = vand.u32 %v827, 2147483648
    %v875 = vor.u32 1.1754944e-38, %v874
    %v876 = vsel %vm873, %v875, %v871
    %v877 = vmul.f32 1.0, %v876
    %v878 = vrcp.pop %v828
    %v879 = vmul.f32 %v828, %v878
    %v880 = vsub.f32 1.0, %v879
    %v881 = vmul.f32 %v878, %v880
    %v882 = vadd.f32 %v878, %v881
    %vm883 = vweird.f32 %v828
    %vm884 = vweird.f32 %v878
    %vm885 = vmor %vm883, %vm884
    %v886 = vsel %vm885, %v878, %v882
    %v887 = vand.u32 2147483647, %v828
    %vm888 = vcmp.eq.f32.partialorder %v887, 8.507059e+37
    %v889 = vand.u32 %v828, 2147483648
    %v890 = vor.u32 1.1754944e-38, %v889
    %v891 = vsel %vm888, %v890, %v886
    %v892 = vmul.f32 1.0, %v891
    %v893 = vrcp.pop %v829
    %v894 = vmul.f32 %v829, %v893
    %v895 = vsub.f32 1.0, %v894
    %v896 = vmul.f32 %v893, %v895
    %v897 = vadd.f32 %v893, %v896
    %vm898 = vweird.f32 %v829
    %vm899 = vweird.f32 %v893
    %vm900 = vmor %vm898, %vm899
    %v901 = vsel %vm900, %v893, %v897
    %v902 = vand.u32 2147483647, %v829
    %vm903 = vcmp.eq.f32.partialorder %v902, 8.507059e+37
    %v904 = vand.u32 %v829, 2147483648
    %v905 = vor.u32 1.1754944e-38, %v904
    %v906 = vsel %vm903, %v905, %v901
    %v907 = vmul.f32 1.0, %v906
    %v908 = vrcp.pop %v830
    %v909 = vmul.f32 %v830, %v908
    %v910 = vsub.f32 1.0, %v909
    %v911 = vmul.f32 %v908, %v910
    %v912 = vadd.f32 %v908, %v911
    %vm913 = vweird.f32 %v830
    %vm914 = vweird.f32 %v908
    %vm915 = vmor %vm913, %vm914
    %v916 = vsel %vm915, %v908, %v912
    %v917 = vand.u32 2147483647, %v830
    %vm918 = vcmp.eq.f32.partialorder %v917, 8.507059e+37
    %v919 = vand.u32 %v830, 2147483648
    %v920 = vor.u32 1.1754944e-38, %v919
    %v921 = vsel %vm918, %v920, %v916
    %v922 = vmul.f32 1.0, %v921
    %v923 = vrcp.pop %v831
    %v924 = vmul.f32 %v831, %v923
    %v925 = vsub.f32 1.0, %v924
    %v926 = vmul.f32 %v923, %v925
    %v927 = vadd.f32 %v923, %v926
    %vm928 = vweird.f32 %v831
    %vm929 = vweird.f32 %v923
    %vm930 = vmor %vm928, %vm929
    %v931 = vsel %vm930, %v923, %v927
    %v932 = vand.u32 2147483647, %v831
    %vm933 = vcmp.eq.f32.partialorder %v932, 8.507059e+37
    %v934 = vand.u32 %v831, 2147483648
    %v935 = vor.u32 1.1754944e-38, %v934
    %v936 = vsel %vm933, %v935, %v931
    %v937 = vmul.f32 1.0, %v936
    %v938 = vrcp.pop %v832
    %v939 = vmul.f32 %v832, %v938
    %v940 = vsub.f32 1.0, %v939
    %v941 = vmul.f32 %v938, %v940
    %v942 = vadd.f32 %v938, %v941
    %vm943 = vweird.f32 %v832
    %vm944 = vweird.f32 %v938
    %vm945 = vmor %vm943, %vm944
    %v946 = vsel %vm945, %v938, %v942
    %v947 = vand.u32 2147483647, %v832
    %vm948 = vcmp.eq.f32.partialorder %v947, 8.507059e+37
    %v949 = vand.u32 %v832, 2147483648
    %v950 = vor.u32 1.1754944e-38, %v949
    %v951 = vsel %vm948, %v950, %v946
    %v952 = vmul.f32 1.0, %v951
    %v953 = vmul.f32 %v659, %v847
    %v954 = vmul.f32 %v660, %v862
    %v955 = vmul.f32 %v661, %v877
    %v956 = vmul.f32 %v662, %v892
    %v957 = vmul.f32 %v663, %v907
    %v958 = vmul.f32 %v664, %v922
    %v959 = vmul.f32 %v665, %v937
    %v960 = vmul.f32 %v666, %v952
    %v961 = vld [vmem:[%s7] sm:$0xff]
    %v962 = vld [vmem:[%s7 + $0x8] sm:$0x1]
    %v963 = vperm.slane %v962, 0
    %v964 = vmul.f32 %v953, %v963
    %v965 = vmul.f32 %v954, %v963
    %v966 = vmul.f32 %v955, %v963
    %v967 = vmul.f32 %v956, %v963
    %v968 = vmul.f32 %v957, %v963
    %v969 = vmul.f32 %v958, %v963
    %v970 = vmul.f32 %v959, %v963
    %v971 = vmul.f32 %v960, %v963
    %v972 = vsel %vm716, %v964, 0.0
    %973 = vadd.xlane.f32.xlu0 %v972
    %v974 = vpop.xlane.xlu0 %973
    %v975 = vsel %vm716, %v965, 0.0
    %976 = vadd.xlane.f32.xlu0 %v975
    %v977 = vpop.xlane.xlu0 %976
    %v978 = vsel %vm716, %v966, 0.0
    %979 = vadd.xlane.f32.xlu0 %v978
    %v980 = vpop.xlane.xlu0 %979
    %v981 = vsel %vm716, %v967, 0.0
    %982 = vadd.xlane.f32.xlu0 %v981
    %v983 = vpop.xlane.xlu0 %982
    %v984 = vsel %vm716, %v968, 0.0
    %985 = vadd.xlane.f32.xlu0 %v984
    %v986 = vpop.xlane.xlu0 %985
    %v987 = vsel %vm716, %v969, 0.0
    %988 = vadd.xlane.f32.xlu0 %v987
    %v989 = vpop.xlane.xlu0 %988
    %v990 = vsel %vm716, %v970, 0.0
    %991 = vadd.xlane.f32.xlu0 %v990
    %v992 = vpop.xlane.xlu0 %991
    %v993 = vsel %vm716, %v971, 0.0
    %994 = vadd.xlane.f32.xlu0 %v993
    %v995 = vpop.xlane.xlu0 %994
    %v996 = vmul.f32 %v676, %v961
    %v997 = vmul.f32 %v677, %v961
    %v998 = vmul.f32 %v678, %v961
    %v999 = vmul.f32 %v679, %v961
    %v1000 = vmul.f32 %v680, %v961
    %v1001 = vmul.f32 %v681, %v961
    %v1002 = vmul.f32 %v682, %v961
    %v1003 = vmul.f32 %v683, %v961
    %v1004 = vsel %vm716, %v996, 0.0
    %1005 = vadd.xlane.f32.xlu0 %v1004
    %v1006 = vpop.xlane.xlu0 %1005
    %v1007 = vsel %vm716, %v997, 0.0
    %1008 = vadd.xlane.f32.xlu0 %v1007
    %v1009 = vpop.xlane.xlu0 %1008
    %v1010 = vsel %vm716, %v998, 0.0
    %1011 = vadd.xlane.f32.xlu0 %v1010
    %v1012 = vpop.xlane.xlu0 %1011
    %v1013 = vsel %vm716, %v999, 0.0
    %1014 = vadd.xlane.f32.xlu0 %v1013
    %v1015 = vpop.xlane.xlu0 %1014
    %v1016 = vsel %vm716, %v1000, 0.0
    %1017 = vadd.xlane.f32.xlu0 %v1016
    %v1018 = vpop.xlane.xlu0 %1017
    %v1019 = vsel %vm716, %v1001, 0.0
    %1020 = vadd.xlane.f32.xlu0 %v1019
    %v1021 = vpop.xlane.xlu0 %1020
    %v1022 = vsel %vm716, %v1002, 0.0
    %1023 = vadd.xlane.f32.xlu0 %v1022
    %v1024 = vpop.xlane.xlu0 %1023
    %v1025 = vsel %vm716, %v1003, 0.0
    %1026 = vadd.xlane.f32.xlu0 %v1025
    %v1027 = vpop.xlane.xlu0 %1026
    %v1028 = vadd.f32 %v974, %v1006
    %v1029 = vadd.f32 %v977, %v1009
    %v1030 = vadd.f32 %v980, %v1012
    %v1031 = vadd.f32 %v983, %v1015
    %v1032 = vadd.f32 %v986, %v1018
    %v1033 = vadd.f32 %v989, %v1021
    %v1034 = vadd.f32 %v992, %v1024
    %v1035 = vadd.f32 %v995, %v1027
    %v1036 = vxor.u32 %v1028, 2147483648
    %v1037 = vxor.u32 %v1029, 2147483648
    %v1038 = vxor.u32 %v1030, 2147483648
    %v1039 = vxor.u32 %v1031, 2147483648
    %v1040 = vxor.u32 %v1032, 2147483648
    %v1041 = vxor.u32 %v1033, 2147483648
    %v1042 = vxor.u32 %v1034, 2147483648
    %v1043 = vxor.u32 %v1035, 2147483648
    %v1044 = vmul.f32 %v1036, 1.442695
    %v1045 = vpow.pop %v1044
    %v1046 = vmul.f32 %v1037, 1.442695
    %v1047 = vpow.pop %v1046
    %v1048 = vmul.f32 %v1038, 1.442695
    %v1049 = vpow.pop %v1048
    %v1050 = vmul.f32 %v1039, 1.442695
    %v1051 = vpow.pop %v1050
    %v1052 = vmul.f32 %v1040, 1.442695
    %v1053 = vpow.pop %v1052
    %v1054 = vmul.f32 %v1041, 1.442695
    %v1055 = vpow.pop %v1054
    %v1056 = vmul.f32 %v1042, 1.442695
    %v1057 = vpow.pop %v1056
    %v1058 = vmul.f32 %v1043, 1.442695
    %v1059 = vpow.pop %v1058
    %v1060 = vadd.f32 %v1045, 1.0
    %v1061 = vadd.f32 %v1047, 1.0
    %v1062 = vadd.f32 %v1049, 1.0
    %v1063 = vadd.f32 %v1051, 1.0
    %v1064 = vadd.f32 %v1053, 1.0
    %v1065 = vadd.f32 %v1055, 1.0
    %v1066 = vadd.f32 %v1057, 1.0
    %v1067 = vadd.f32 %v1059, 1.0
    %v1068 = vrcp.pop %v1060
    %v1069 = vmul.f32 %v1060, %v1068
    %v1070 = vsub.f32 1.0, %v1069
    %v1071 = vmul.f32 %v1068, %v1070
    %v1072 = vadd.f32 %v1068, %v1071
    %vm1073 = vweird.f32 %v1060
    %vm1074 = vweird.f32 %v1068
    %vm1075 = vmor %vm1073, %vm1074
    %v1076 = vsel %vm1075, %v1068, %v1072
    %v1077 = vand.u32 2147483647, %v1060
    %vm1078 = vcmp.eq.f32.partialorder %v1077, 8.507059e+37
    %v1079 = vand.u32 %v1060, 2147483648
    %v1080 = vor.u32 1.1754944e-38, %v1079
    %v1081 = vsel %vm1078, %v1080, %v1076
    %v1082 = vmul.f32 1.0, %v1081
    %v1083 = vrcp.pop %v1061
    %v1084 = vmul.f32 %v1061, %v1083
    %v1085 = vsub.f32 1.0, %v1084
    %v1086 = vmul.f32 %v1083, %v1085
    %v1087 = vadd.f32 %v1083, %v1086
    %vm1088 = vweird.f32 %v1061
    %vm1089 = vweird.f32 %v1083
    %vm1090 = vmor %vm1088, %vm1089
    %v1091 = vsel %vm1090, %v1083, %v1087
    %v1092 = vand.u32 2147483647, %v1061
    %vm1093 = vcmp.eq.f32.partialorder %v1092, 8.507059e+37
    %v1094 = vand.u32 %v1061, 2147483648
    %v1095 = vor.u32 1.1754944e-38, %v1094
    %v1096 = vsel %vm1093, %v1095, %v1091
    %v1097 = vmul.f32 1.0, %v1096
    %v1098 = vrcp.pop %v1062
    %v1099 = vmul.f32 %v1062, %v1098
    %v1100 = vsub.f32 1.0, %v1099
    %v1101 = vmul.f32 %v1098, %v1100
    %v1102 = vadd.f32 %v1098, %v1101
    %vm1103 = vweird.f32 %v1062
    %vm1104 = vweird.f32 %v1098
    %vm1105 = vmor %vm1103, %vm1104
    %v1106 = vsel %vm1105, %v1098, %v1102
    %v1107 = vand.u32 2147483647, %v1062
    %vm1108 = vcmp.eq.f32.partialorder %v1107, 8.507059e+37
    %v1109 = vand.u32 %v1062, 2147483648
    %v1110 = vor.u32 1.1754944e-38, %v1109
    %v1111 = vsel %vm1108, %v1110, %v1106
    %v1112 = vmul.f32 1.0, %v1111
    %v1113 = vrcp.pop %v1063
    %v1114 = vmul.f32 %v1063, %v1113
    %v1115 = vsub.f32 1.0, %v1114
    %v1116 = vmul.f32 %v1113, %v1115
    %v1117 = vadd.f32 %v1113, %v1116
    %vm1118 = vweird.f32 %v1063
    %vm1119 = vweird.f32 %v1113
    %vm1120 = vmor %vm1118, %vm1119
    %v1121 = vsel %vm1120, %v1113, %v1117
    %v1122 = vand.u32 2147483647, %v1063
    %vm1123 = vcmp.eq.f32.partialorder %v1122, 8.507059e+37
    %v1124 = vand.u32 %v1063, 2147483648
    %v1125 = vor.u32 1.1754944e-38, %v1124
    %v1126 = vsel %vm1123, %v1125, %v1121
    %v1127 = vmul.f32 1.0, %v1126
    %v1128 = vrcp.pop %v1064
    %v1129 = vmul.f32 %v1064, %v1128
    %v1130 = vsub.f32 1.0, %v1129
    %v1131 = vmul.f32 %v1128, %v1130
    %v1132 = vadd.f32 %v1128, %v1131
    %vm1133 = vweird.f32 %v1064
    %vm1134 = vweird.f32 %v1128
    %vm1135 = vmor %vm1133, %vm1134
    %v1136 = vsel %vm1135, %v1128, %v1132
    %v1137 = vand.u32 2147483647, %v1064
    %vm1138 = vcmp.eq.f32.partialorder %v1137, 8.507059e+37
    %v1139 = vand.u32 %v1064, 2147483648
    %v1140 = vor.u32 1.1754944e-38, %v1139
    %v1141 = vsel %vm1138, %v1140, %v1136
    %v1142 = vmul.f32 1.0, %v1141
    %v1143 = vrcp.pop %v1065
    %v1144 = vmul.f32 %v1065, %v1143
    %v1145 = vsub.f32 1.0, %v1144
    %v1146 = vmul.f32 %v1143, %v1145
    %v1147 = vadd.f32 %v1143, %v1146
    %vm1148 = vweird.f32 %v1065
    %vm1149 = vweird.f32 %v1143
    %vm1150 = vmor %vm1148, %vm1149
    %v1151 = vsel %vm1150, %v1143, %v1147
    %v1152 = vand.u32 2147483647, %v1065
    %vm1153 = vcmp.eq.f32.partialorder %v1152, 8.507059e+37
    %v1154 = vand.u32 %v1065, 2147483648
    %v1155 = vor.u32 1.1754944e-38, %v1154
    %v1156 = vsel %vm1153, %v1155, %v1151
    %v1157 = vmul.f32 1.0, %v1156
    %v1158 = vrcp.pop %v1066
    %v1159 = vmul.f32 %v1066, %v1158
    %v1160 = vsub.f32 1.0, %v1159
    %v1161 = vmul.f32 %v1158, %v1160
    %v1162 = vadd.f32 %v1158, %v1161
    %vm1163 = vweird.f32 %v1066
    %vm1164 = vweird.f32 %v1158
    %vm1165 = vmor %vm1163, %vm1164
    %v1166 = vsel %vm1165, %v1158, %v1162
    %v1167 = vand.u32 2147483647, %v1066
    %vm1168 = vcmp.eq.f32.partialorder %v1167, 8.507059e+37
    %v1169 = vand.u32 %v1066, 2147483648
    %v1170 = vor.u32 1.1754944e-38, %v1169
    %v1171 = vsel %vm1168, %v1170, %v1166
    %v1172 = vmul.f32 1.0, %v1171
    %v1173 = vrcp.pop %v1067
    %v1174 = vmul.f32 %v1067, %v1173
    %v1175 = vsub.f32 1.0, %v1174
    %v1176 = vmul.f32 %v1173, %v1175
    %v1177 = vadd.f32 %v1173, %v1176
    %vm1178 = vweird.f32 %v1067
    %vm1179 = vweird.f32 %v1173
    %vm1180 = vmor %vm1178, %vm1179
    %v1181 = vsel %vm1180, %v1173, %v1177
    %v1182 = vand.u32 2147483647, %v1067
    %vm1183 = vcmp.eq.f32.partialorder %v1182, 8.507059e+37
    %v1184 = vand.u32 %v1067, 2147483648
    %v1185 = vor.u32 1.1754944e-38, %v1184
    %v1186 = vsel %vm1183, %v1185, %v1181
    %v1187 = vmul.f32 1.0, %v1186
    %v1188 = vmul.f32 %v953, %v1082
    %v1189 = vmul.f32 %v954, %v1097
    %v1190 = vmul.f32 %v955, %v1112
    %v1191 = vmul.f32 %v956, %v1127
    %v1192 = vmul.f32 %v957, %v1142
    %v1193 = vmul.f32 %v958, %v1157
    %v1194 = vmul.f32 %v959, %v1172
    %v1195 = vmul.f32 %v960, %v1187
    %v1196 = vsel %vm716, %v1188, 0.0
    %v1197 = vrot.slane %v1196, 4
    %v1198 = vadd.f32 %v1196, %v1197
    %v1199 = vrot.slane %v1198, 2
    %v1200 = vadd.f32 %v1198, %v1199
    %v1201 = vrot.slane %v1200, 1
    %v1202 = vadd.f32 %v1200, %v1201
    %v1203 = vrot.slane %v1082, 4
    %v1204 = vadd.f32 %v1082, %v1203
    %v1205 = vrot.slane %v1204, 2
    %v1206 = vadd.f32 %v1204, %v1205
    %v1207 = vrot.slane %v1206, 1
    %v1208 = vadd.f32 %v1206, %v1207
    %v1209 = vsel %vm716, %v659, 0.0
    %v1210 = vrot.slane %v1209, 4
    %v1211 = vadd.f32 %v1209, %v1210
    %v1212 = vrot.slane %v1211, 2
    %v1213 = vadd.f32 %v1211, %v1212
    %v1214 = vrot.slane %v1213, 1
    %v1215 = vadd.f32 %v1213, %v1214
    %v1216 = vrcp.pop %v1208
    %v1217 = vmul.f32 %v1208, %v1216
    %v1218 = vsub.f32 1.0, %v1217
    %v1219 = vmul.f32 %v1216, %v1218
    %v1220 = vadd.f32 %v1216, %v1219
    %vm1221 = vweird.f32 %v1208
    %vm1222 = vweird.f32 %v1216
    %vm1223 = vmor %vm1221, %vm1222
    %v1224 = vsel %vm1223, %v1216, %v1220
    %v1225 = vand.u32 2147483647, %v1208
    %vm1226 = vcmp.eq.f32.partialorder %v1225, 8.507059e+37
    %v1227 = vand.u32 %v1208, 2147483648
    %v1228 = vor.u32 1.1754944e-38, %v1227
    %v1229 = vsel %vm1226, %v1228, %v1224
    %v1230 = vmul.f32 %v1202, %v1229
    %v1231 = vadd.f32 %v667, %v1230
    %v1232 = vadd.f32 %v1231, %v1215
    %v1233 = vsel %vm716, %v1189, 0.0
    %v1234 = vrot.slane %v1233, 4
    %v1235 = vadd.f32 %v1233, %v1234
    %v1236 = vrot.slane %v1235, 2
    %v1237 = vadd.f32 %v1235, %v1236
    %v1238 = vrot.slane %v1237, 1
    %v1239 = vadd.f32 %v1237, %v1238
    %v1240 = vrot.slane %v1097, 4
    %v1241 = vadd.f32 %v1097, %v1240
    %v1242 = vrot.slane %v1241, 2
    %v1243 = vadd.f32 %v1241, %v1242
    %v1244 = vrot.slane %v1243, 1
    %v1245 = vadd.f32 %v1243, %v1244
    %v1246 = vsel %vm716, %v660, 0.0
    %v1247 = vrot.slane %v1246, 4
    %v1248 = vadd.f32 %v1246, %v1247
    %v1249 = vrot.slane %v1248, 2
    %v1250 = vadd.f32 %v1248, %v1249
    %v1251 = vrot.slane %v1250, 1
    %v1252 = vadd.f32 %v1250, %v1251
    %v1253 = vrcp.pop %v1245
    %v1254 = vmul.f32 %v1245, %v1253
    %v1255 = vsub.f32 1.0, %v1254
    %v1256 = vmul.f32 %v1253, %v1255
    %v1257 = vadd.f32 %v1253, %v1256
    %vm1258 = vweird.f32 %v1245
    %vm1259 = vweird.f32 %v1253
    %vm1260 = vmor %vm1258, %vm1259
    %v1261 = vsel %vm1260, %v1253, %v1257
    %v1262 = vand.u32 2147483647, %v1245
    %vm1263 = vcmp.eq.f32.partialorder %v1262, 8.507059e+37
    %v1264 = vand.u32 %v1245, 2147483648
    %v1265 = vor.u32 1.1754944e-38, %v1264
    %v1266 = vsel %vm1263, %v1265, %v1261
    %v1267 = vmul.f32 %v1239, %v1266
    %v1268 = vadd.f32 %v667, %v1267
    %v1269 = vadd.f32 %v1268, %v1252
    %v1270 = vsel %vm716, %v1190, 0.0
    %v1271 = vrot.slane %v1270, 4
    %v1272 = vadd.f32 %v1270, %v1271
    %v1273 = vrot.slane %v1272, 2
    %v1274 = vadd.f32 %v1272, %v1273
    %v1275 = vrot.slane %v1274, 1
    %v1276 = vadd.f32 %v1274, %v1275
    %v1277 = vrot.slane %v1112, 4
    %v1278 = vadd.f32 %v1112, %v1277
    %v1279 = vrot.slane %v1278, 2
    %v1280 = vadd.f32 %v1278, %v1279
    %v1281 = vrot.slane %v1280, 1
    %v1282 = vadd.f32 %v1280, %v1281
    %v1283 = vsel %vm716, %v661, 0.0
    %v1284 = vrot.slane %v1283, 4
    %v1285 = vadd.f32 %v1283, %v1284
    %v1286 = vrot.slane %v1285, 2
    %v1287 = vadd.f32 %v1285, %v1286
    %v1288 = vrot.slane %v1287, 1
    %v1289 = vadd.f32 %v1287, %v1288
    %v1290 = vrcp.pop %v1282
    %v1291 = vmul.f32 %v1282, %v1290
    %v1292 = vsub.f32 1.0, %v1291
    %v1293 = vmul.f32 %v1290, %v1292
    %v1294 = vadd.f32 %v1290, %v1293
    %vm1295 = vweird.f32 %v1282
    %vm1296 = vweird.f32 %v1290
    %vm1297 = vmor %vm1295, %vm1296
    %v1298 = vsel %vm1297, %v1290, %v1294
    %v1299 = vand.u32 2147483647, %v1282
    %vm1300 = vcmp.eq.f32.partialorder %v1299, 8.507059e+37
    %v1301 = vand.u32 %v1282, 2147483648
    %v1302 = vor.u32 1.1754944e-38, %v1301
    %v1303 = vsel %vm1300, %v1302, %v1298
    %v1304 = vmul.f32 %v1276, %v1303
    %v1305 = vadd.f32 %v667, %v1304
    %v1306 = vadd.f32 %v1305, %v1289
    %v1307 = vsel %vm716, %v1191, 0.0
    %v1308 = vrot.slane %v1307, 4
    %v1309 = vadd.f32 %v1307, %v1308
    %v1310 = vrot.slane %v1309, 2
    %v1311 = vadd.f32 %v1309, %v1310
    %v1312 = vrot.slane %v1311, 1
    %v1313 = vadd.f32 %v1311, %v1312
    %v1314 = vrot.slane %v1127, 4
    %v1315 = vadd.f32 %v1127, %v1314
    %v1316 = vrot.slane %v1315, 2
    %v1317 = vadd.f32 %v1315, %v1316
    %v1318 = vrot.slane %v1317, 1
    %v1319 = vadd.f32 %v1317, %v1318
    %v1320 = vsel %vm716, %v662, 0.0
    %v1321 = vrot.slane %v1320, 4
    %v1322 = vadd.f32 %v1320, %v1321
    %v1323 = vrot.slane %v1322, 2
    %v1324 = vadd.f32 %v1322, %v1323
    %v1325 = vrot.slane %v1324, 1
    %v1326 = vadd.f32 %v1324, %v1325
    %v1327 = vrcp.pop %v1319
    %v1328 = vmul.f32 %v1319, %v1327
    %v1329 = vsub.f32 1.0, %v1328
    %v1330 = vmul.f32 %v1327, %v1329
    %v1331 = vadd.f32 %v1327, %v1330
    %vm1332 = vweird.f32 %v1319
    %vm1333 = vweird.f32 %v1327
    %vm1334 = vmor %vm1332, %vm1333
    %v1335 = vsel %vm1334, %v1327, %v1331
    %v1336 = vand.u32 2147483647, %v1319
    %vm1337 = vcmp.eq.f32.partialorder %v1336, 8.507059e+37
    %v1338 = vand.u32 %v1319, 2147483648
    %v1339 = vor.u32 1.1754944e-38, %v1338
    %v1340 = vsel %vm1337, %v1339, %v1335
    %v1341 = vmul.f32 %v1313, %v1340
    %v1342 = vadd.f32 %v667, %v1341
    %v1343 = vadd.f32 %v1342, %v1326
    %v1344 = vsel %vm716, %v1192, 0.0
    %v1345 = vrot.slane %v1344, 4
    %v1346 = vadd.f32 %v1344, %v1345
    %v1347 = vrot.slane %v1346, 2
    %v1348 = vadd.f32 %v1346, %v1347
    %v1349 = vrot.slane %v1348, 1
    %v1350 = vadd.f32 %v1348, %v1349
    %v1351 = vrot.slane %v1142, 4
    %v1352 = vadd.f32 %v1142, %v1351
    %v1353 = vrot.slane %v1352, 2
    %v1354 = vadd.f32 %v1352, %v1353
    %v1355 = vrot.slane %v1354, 1
    %v1356 = vadd.f32 %v1354, %v1355
    %v1357 = vsel %vm716, %v663, 0.0
    %v1358 = vrot.slane %v1357, 4
    %v1359 = vadd.f32 %v1357, %v1358
    %v1360 = vrot.slane %v1359, 2
    %v1361 = vadd.f32 %v1359, %v1360
    %v1362 = vrot.slane %v1361, 1
    %v1363 = vadd.f32 %v1361, %v1362
    %v1364 = vrcp.pop %v1356
    %v1365 = vmul.f32 %v1356, %v1364
    %v1366 = vsub.f32 1.0, %v1365
    %v1367 = vmul.f32 %v1364, %v1366
    %v1368 = vadd.f32 %v1364, %v1367
    %vm1369 = vweird.f32 %v1356
    %vm1370 = vweird.f32 %v1364
    %vm1371 = vmor %vm1369, %vm1370
    %v1372 = vsel %vm1371, %v1364, %v1368
    %v1373 = vand.u32 2147483647, %v1356
    %vm1374 = vcmp.eq.f32.partialorder %v1373, 8.507059e+37
    %v1375 = vand.u32 %v1356, 2147483648
    %v1376 = vor.u32 1.1754944e-38, %v1375
    %v1377 = vsel %vm1374, %v1376, %v1372
    %v1378 = vmul.f32 %v1350, %v1377
    %v1379 = vadd.f32 %v667, %v1378
    %v1380 = vadd.f32 %v1379, %v1363
    %v1381 = vsel %vm716, %v1193, 0.0
    %v1382 = vrot.slane %v1381, 4
    %v1383 = vadd.f32 %v1381, %v1382
    %v1384 = vrot.slane %v1383, 2
    %v1385 = vadd.f32 %v1383, %v1384
    %v1386 = vrot.slane %v1385, 1
    %v1387 = vadd.f32 %v1385, %v1386
    %v1388 = vrot.slane %v1157, 4
    %v1389 = vadd.f32 %v1157, %v1388
    %v1390 = vrot.slane %v1389, 2
    %v1391 = vadd.f32 %v1389, %v1390
    %v1392 = vrot.slane %v1391, 1
    %v1393 = vadd.f32 %v1391, %v1392
    %v1394 = vsel %vm716, %v664, 0.0
    %v1395 = vrot.slane %v1394, 4
    %v1396 = vadd.f32 %v1394, %v1395
    %v1397 = vrot.slane %v1396, 2
    %v1398 = vadd.f32 %v1396, %v1397
    %v1399 = vrot.slane %v1398, 1
    %v1400 = vadd.f32 %v1398, %v1399
    %v1401 = vrcp.pop %v1393
    %v1402 = vmul.f32 %v1393, %v1401
    %v1403 = vsub.f32 1.0, %v1402
    %v1404 = vmul.f32 %v1401, %v1403
    %v1405 = vadd.f32 %v1401, %v1404
    %vm1406 = vweird.f32 %v1393
    %vm1407 = vweird.f32 %v1401
    %vm1408 = vmor %vm1406, %vm1407
    %v1409 = vsel %vm1408, %v1401, %v1405
    %v1410 = vand.u32 2147483647, %v1393
    %vm1411 = vcmp.eq.f32.partialorder %v1410, 8.507059e+37
    %v1412 = vand.u32 %v1393, 2147483648
    %v1413 = vor.u32 1.1754944e-38, %v1412
    %v1414 = vsel %vm1411, %v1413, %v1409
    %v1415 = vmul.f32 %v1387, %v1414
    %v1416 = vadd.f32 %v667, %v1415
    %v1417 = vadd.f32 %v1416, %v1400
    %v1418 = vsel %vm716, %v1194, 0.0
    %v1419 = vrot.slane %v1418, 4
    %v1420 = vadd.f32 %v1418, %v1419
    %v1421 = vrot.slane %v1420, 2
    %v1422 = vadd.f32 %v1420, %v1421
    %v1423 = vrot.slane %v1422, 1
    %v1424 = vadd.f32 %v1422, %v1423
    %v1425 = vrot.slane %v1172, 4
    %v1426 = vadd.f32 %v1172, %v1425
    %v1427 = vrot.slane %v1426, 2
    %v1428 = vadd.f32 %v1426, %v1427
    %v1429 = vrot.slane %v1428, 1
    %v1430 = vadd.f32 %v1428, %v1429
    %v1431 = vsel %vm716, %v665, 0.0
    %v1432 = vrot.slane %v1431, 4
    %v1433 = vadd.f32 %v1431, %v1432
    %v1434 = vrot.slane %v1433, 2
    %v1435 = vadd.f32 %v1433, %v1434
    %v1436 = vrot.slane %v1435, 1
    %v1437 = vadd.f32 %v1435, %v1436
    %v1438 = vrcp.pop %v1430
    %v1439 = vmul.f32 %v1430, %v1438
    %v1440 = vsub.f32 1.0, %v1439
    %v1441 = vmul.f32 %v1438, %v1440
    %v1442 = vadd.f32 %v1438, %v1441
    %vm1443 = vweird.f32 %v1430
    %vm1444 = vweird.f32 %v1438
    %vm1445 = vmor %vm1443, %vm1444
    %v1446 = vsel %vm1445, %v1438, %v1442
    %v1447 = vand.u32 2147483647, %v1430
    %vm1448 = vcmp.eq.f32.partialorder %v1447, 8.507059e+37
    %v1449 = vand.u32 %v1430, 2147483648
    %v1450 = vor.u32 1.1754944e-38, %v1449
    %v1451 = vsel %vm1448, %v1450, %v1446
    %v1452 = vmul.f32 %v1424, %v1451
    %v1453 = vadd.f32 %v667, %v1452
    %v1454 = vadd.f32 %v1453, %v1437
    %v1455 = vsel %vm716, %v1195, 0.0
    %v1456 = vrot.slane %v1455, 4
    %v1457 = vadd.f32 %v1455, %v1456
    %v1458 = vrot.slane %v1457, 2
    %v1459 = vadd.f32 %v1457, %v1458
    %v1460 = vrot.slane %v1459, 1
    %v1461 = vadd.f32 %v1459, %v1460
    %v1462 = vrot.slane %v1187, 4
    %v1463 = vadd.f32 %v1187, %v1462
    %v1464 = vrot.slane %v1463, 2
    %v1465 = vadd.f32 %v1463, %v1464
    %v1466 = vrot.slane %v1465, 1
    %v1467 = vadd.f32 %v1465, %v1466
    %v1468 = vsel %vm716, %v666, 0.0
    %v1469 = vrot.slane %v1468, 4
    %v1470 = vadd.f32 %v1468, %v1469
    %v1471 = vrot.slane %v1470, 2
    %v1472 = vadd.f32 %v1470, %v1471
    %v1473 = vrot.slane %v1472, 1
    %v1474 = vadd.f32 %v1472, %v1473
    %v1475 = vrcp.pop %v1467
    %v1476 = vmul.f32 %v1467, %v1475
    %v1477 = vsub.f32 1.0, %v1476
    %v1478 = vmul.f32 %v1475, %v1477
    %v1479 = vadd.f32 %v1475, %v1478
    %vm1480 = vweird.f32 %v1467
    %vm1481 = vweird.f32 %v1475
    %vm1482 = vmor %vm1480, %vm1481
    %v1483 = vsel %vm1482, %v1475, %v1479
    %v1484 = vand.u32 2147483647, %v1467
    %vm1485 = vcmp.eq.f32.partialorder %v1484, 8.507059e+37
    %v1486 = vand.u32 %v1467, 2147483648
    %v1487 = vor.u32 1.1754944e-38, %v1486
    %v1488 = vsel %vm1485, %v1487, %v1483
    %v1489 = vmul.f32 %v1461, %v1488
    %v1490 = vadd.f32 %v667, %v1489
    %v1491 = vadd.f32 %v1490, %v1474
    %vm1492 = vcmask 1040384
    %v1493 = vsel %vm1492, %v1232, %v1269
    %vm1494 = vcmask 1041408
    %v1495 = vsel %vm1494, %v1493, %v1306
    %vm1496 = vcmask 1042432
    %v1497 = vsel %vm1496, %v1495, %v1343
    %vm1498 = vcmask 1043456
    %v1499 = vsel %vm1498, %v1497, %v1380
    %vm1500 = vcmask 1044480
    %v1501 = vsel %vm1500, %v1499, %v1417
    %vm1502 = vcmask 1045504
    %v1503 = vsel %vm1502, %v1501, %v1454
    %vm1504 = vcmask 1046528
    %v1505 = vsel %vm1504, %v1503, %v1491
    %v1506 = vld [vmem:[#allocation4] sm:$0xff]
    %v1507 = vld [vmem:[#allocation4 + $0x8] sm:$0xff]
    %v1508 = vld [vmem:[#allocation4 + $0x10] sm:$0xff]
    %v1509 = vld [vmem:[#allocation4 + $0x18] sm:$0xff]
    %v1510 = vld [vmem:[#allocation4 + $0x20] sm:$0xff]
    %v1511 = vld [vmem:[#allocation4 + $0x28] sm:$0xff]
    %v1512 = vld [vmem:[#allocation4 + $0x30] sm:$0xff]
    %v1513 = vld [vmem:[#allocation4 + $0x38] sm:$0xff]
    %v1515 = vrot.slane %v1505, 1
    %v1516 = vrot.slane %v1505, 2
    %v1517 = vrot.slane %v1505, 3
    %v1518 = vrot.slane %v1505, 4
    %v1519 = vrot.slane %v1505, 5
    %v1520 = vrot.slane %v1505, 6
    %v1521 = vrot.slane %v1505, 7
    %v1522 = vperm.slane %v1505, 0
    %v1523 = vperm.slane %v1515, 0
    %v1524 = vperm.slane %v1516, 0
    %v1525 = vperm.slane %v1517, 0
    %v1526 = vperm.slane %v1518, 0
    %v1527 = vperm.slane %v1519, 0
    %v1528 = vperm.slane %v1520, 0
    %v1529 = vperm.slane %v1521, 0
    %v1538 = vmul.f32 %v1522, %v1506
    %v1539 = vmul.f32 %v1523, %v1507
    %v1540 = vmul.f32 %v1524, %v1508
    %v1541 = vmul.f32 %v1525, %v1509
    %v1542 = vmul.f32 %v1526, %v1510
    %v1543 = vmul.f32 %v1527, %v1511
    %v1544 = vmul.f32 %v1528, %v1512
    %v1545 = vmul.f32 %v1529, %v1513
    %v1546 = vsel %vm716, %v1538, 0.0
    %1547 = vadd.xlane.f32.xlu0 %v1546
    %v1548 = vpop.xlane.xlu0 %1547
    %v1549 = vsel %vm716, %v1539, 0.0
    %1550 = vadd.xlane.f32.xlu0 %v1549
    %v1551 = vpop.xlane.xlu0 %1550
    %v1552 = vsel %vm716, %v1540, 0.0
    %1553 = vadd.xlane.f32.xlu0 %v1552
    %v1554 = vpop.xlane.xlu0 %1553
    %v1555 = vsel %vm716, %v1541, 0.0
    %1556 = vadd.xlane.f32.xlu0 %v1555
    %v1557 = vpop.xlane.xlu0 %1556
    %v1558 = vsel %vm716, %v1542, 0.0
    %1559 = vadd.xlane.f32.xlu0 %v1558
    %v1560 = vpop.xlane.xlu0 %1559
    %v1561 = vsel %vm716, %v1543, 0.0
    %1562 = vadd.xlane.f32.xlu0 %v1561
    %v1563 = vpop.xlane.xlu0 %1562
    %v1564 = vsel %vm716, %v1544, 0.0
    %1565 = vadd.xlane.f32.xlu0 %v1564
    %v1566 = vpop.xlane.xlu0 %1565
    %v1567 = vsel %vm716, %v1545, 0.0
    %1568 = vadd.xlane.f32.xlu0 %v1567
    %v1569 = vpop.xlane.xlu0 %1568
    %v1578 = vlaneseq
    %v1579 = vand.u32 %v1578, 127
    %v1580 = vperm.slane %v1548, %v1579
    %v1581 = vperm.slane %v1551, %v1579
    %v1582 = vperm.slane %v1554, %v1579
    %v1583 = vperm.slane %v1557, %v1579
    %v1584 = vperm.slane %v1560, %v1579
    %v1585 = vperm.slane %v1563, %v1579
    %v1586 = vperm.slane %v1566, %v1579
    %v1587 = vperm.slane %v1569, %v1579
    %vm1588 = vcmask 1041409
    %v1589 = vsel %vm1588, %v1581, %v1580
    %vm1590 = vcmask 1042434
    %v1591 = vsel %vm1590, %v1582, %v1589
    %vm1592 = vcmask 1043459
    %v1593 = vsel %vm1592, %v1583, %v1591
    %vm1594 = vcmask 1044484
    %v1595 = vsel %vm1594, %v1584, %v1593
    %vm1596 = vcmask 1045509
    %v1597 = vsel %vm1596, %v1585, %v1595
    %vm1598 = vcmask 1046534
    %v1599 = vsel %vm1598, %v1586, %v1597
    %vm1600 = vcmask 1047559
    %v1601 = vsel %vm1600, %v1587, %v1599
    %vm1603 = vcmask 64512
    %v1604 = vsel %vm1603, %v1601, 0.0
    %1605 = vst [vmem:[#allocation9] sm:$0xff] %v1604
    // Predicated region
    $region22: #{tpu_custom_call.1} parent=1 // pred_check
      _
    $region23: #{tpu_custom_call.1} parent=1 // pred_check_branch
      %1607 = sbr.rel (0) target = $region25
    $region24: #{tpu_custom_call.1} parent=1 // pred_region
      %1609 = vsyncadd [#allocation10], 0
      %s1611 = sshll.u32 [#allocation9], 4
      %s1612 = int_to_ptr.vmem [resolvable:$true] %s1611
      %s1613 = sshll.u32 %s8, 4
      %s1614 = int_to_ptr.hbm [resolvable:$true] %s1613
      %1616 = dma.vmem_to_hbm [thread:$0]  %s1612, 128, %s1614, [#allocation10]
    $region25: #{tpu_custom_call.1} parent=1 // pred_fallthru
      _
    // Predicated region
    $region26: #{tpu_custom_call.1} parent=1 // pred_check
      _
    $region27: #{tpu_custom_call.1} parent=1 // pred_check_branch
      %1618 = sbr.rel (0) target = $region29
    $region28: #{tpu_custom_call.1} parent=1 // pred_region
      %1620 = dma.done [#allocation10], 128
    $region29: #{tpu_custom_call.1} parent=1 // pred_fallthru
      _
    %1621 = vsyncpa [#allocation10], 1

</llo_original>
